<compile_context>
chip_gen: v6e
topology: v6e:2x2x1
jax: 0.10.0
libtpu: 0.0.40
codegen_flags: <defaults>
</compile_context>

<pallas_src>
import functools

import jax
import jax.numpy as jnp
from jax.experimental import pallas as pl
from jax.experimental.pallas import tpu as pltpu

# Module config from the spec: n_head = 6, n_embd = 64 * n_head, block_size = 1024.
N_HEAD = 6
N_EMBD = 64 * N_HEAD            # 384
HEAD_SIZE = N_EMBD // N_HEAD    # 64 (canonical head_size for this model)
BLOCK_SIZE = 1024               # tril buffer extent (max sequence length)
NEG_INF = -1e30                 # finite stand-in for -inf (NaN-free online softmax)

# TODO(synk): nn.Dropout(p=0.2) on the attention weights is omitted
# (identity at inference / eval mode).


# ---------------------------------------------------------------------------
# Kernel 1: fused q/k/v projection over the folded (B*T, C) slab.
# ---------------------------------------------------------------------------
def qkv_kernel(x_ref, w_ref, q_ref, k_ref, v_ref):
    hs = q_ref.shape[-1]
    x = x_ref[...].astype(jnp.bfloat16)
    qkv = jnp.dot(x, w_ref[...], preferred_element_type=jnp.float32)  # (rows, 3*hs)
    q_ref[...] = qkv[:, :hs].astype(q_ref.dtype)
    k_ref[...] = qkv[:, hs:2 * hs].astype(k_ref.dtype)
    v_ref[...] = qkv[:, 2 * hs:].astype(v_ref.dtype)


# ---------------------------------------------------------------------------
# Kernel 2: causal flash-attention.  grid = (B, q_tiles, kv_tiles).
# ---------------------------------------------------------------------------
def attention_kernel(q_ref, k_ref, v_ref, o_ref, m_sc, l_sc, acc_sc,
                     *, scale, q_tile, kv_tile):
    qi = pl.program_id(1)
    ki = pl.program_id(2)

    @pl.when(ki == 0)
    def _init():
        m_sc[...] = jnp.full(m_sc.shape, NEG_INF, jnp.float32)
        l_sc[...] = jnp.zeros(l_sc.shape, jnp.float32)
        acc_sc[...] = jnp.zeros(acc_sc.shape, jnp.float32)

    # Block-causal gate: with q_tile == kv_tile, kv block ki only contributes
    # to query block qi when ki <= qi.  Strictly-future blocks are skipped.
    @pl.when(ki <= qi)
    def _update():
        q = q_ref[0]                      # (q_tile, hs) bf16
        k = k_ref[0]                      # (kv_tile, hs) bf16
        v = v_ref[0]                      # (kv_tile, hs) bf16
        # q @ k^T via dot_general contraction (no explicit transpose)
        s = jax.lax.dot_general(q, k, (((1,), (1,)), ((), ())),
                                preferred_element_type=jnp.float32) * scale
        rows = qi * q_tile + jax.lax.broadcasted_iota(jnp.int32, s.shape, 0)
        cols = ki * kv_tile + jax.lax.broadcasted_iota(jnp.int32, s.shape, 1)
        s = jnp.where(rows >= cols, s, NEG_INF)            # exact causal mask

        m_prev = m_sc[...]
        m_new = jnp.maximum(m_prev, jnp.max(s, axis=-1, keepdims=True))
        alpha = jnp.exp(m_prev - m_new)
        p = jnp.exp(s - m_new)
        l_sc[...] = alpha * l_sc[...] + jnp.sum(p, axis=-1, keepdims=True)
        acc_sc[...] = alpha * acc_sc[...] + jnp.dot(
            p.astype(jnp.bfloat16), v, preferred_element_type=jnp.float32)
        m_sc[...] = m_new

    @pl.when(ki == pl.num_programs(2) - 1)
    def _finalize():
        o_ref[0] = (acc_sc[...] *
                    pl.reciprocal(l_sc[...], approx=True)).astype(o_ref.dtype)


# ---------------------------------------------------------------------------
# Wrapper: Head.forward(x) -> (B, T, head_size)
# ---------------------------------------------------------------------------
def head_forward(x, wqkv, *, q_tile=128, kv_tile=128, row_tile=256):
    B, T, C = x.shape
    hs = wqkv.shape[-1] // 3
    assert T <= BLOCK_SIZE
    q_tile = min(q_tile, T)
    kv_tile = min(kv_tile, T)
    assert q_tile == kv_tile and T % q_tile == 0
    M = B * T
    row_tile = min(row_tile, M)
    assert M % row_tile == 0

    # ---- fused qkv projection over (B*T, C) --------------------------------
    q, k, v = pl.pallas_call(
        qkv_kernel,
        out_shape=(jax.ShapeDtypeStruct((M, hs), jnp.bfloat16),) * 3,
        grid=(M // row_tile,),
        in_specs=[pl.BlockSpec((row_tile, C), lambda i: (i, 0)),
                  pl.BlockSpec((C, 3 * hs), lambda i: (0, 0))],
        out_specs=(pl.BlockSpec((row_tile, hs), lambda i: (i, 0)),) * 3,
        compiler_params=pltpu.CompilerParams(
            dimension_semantics=("parallel",),
            vmem_limit_bytes=32 * 1024 * 1024),
        cost_estimate=pl.CostEstimate(
            flops=2 * M * C * 3 * hs, transcendentals=0,
            bytes_accessed=M * C * 4 + C * 3 * hs * 2 + 3 * M * hs * 2),
    )(x.reshape(M, C), wqkv)

    q = q.reshape(B, T, hs)
    k = k.reshape(B, T, hs)
    v = v.reshape(B, T, hs)

    # ---- causal flash attention ---------------------------------------------
    nq, nk = T // q_tile, T // kv_tile
    kernel = functools.partial(attention_kernel, scale=float(C) ** -0.5,
                               q_tile=q_tile, kv_tile=kv_tile)
    out = pl.pallas_call(
        kernel,
        out_shape=jax.ShapeDtypeStruct((B, T, hs), jnp.float32),
        grid=(B, nq, nk),
        in_specs=[pl.BlockSpec((1, q_tile, hs), lambda b, i, j: (b, i, 0)),
                  pl.BlockSpec((1, kv_tile, hs), lambda b, i, j: (b, j, 0)),
                  pl.BlockSpec((1, kv_tile, hs), lambda b, i, j: (b, j, 0))],
        out_specs=pl.BlockSpec((1, q_tile, hs), lambda b, i, j: (b, i, 0)),
        scratch_shapes=[pltpu.VMEM((q_tile, 1), jnp.float32),   # running max
                        pltpu.VMEM((q_tile, 1), jnp.float32),   # running denom
                        pltpu.VMEM((q_tile, hs), jnp.float32)], # output accum
        compiler_params=pltpu.CompilerParams(
            dimension_semantics=("parallel", "parallel", "arbitrary"),
            vmem_limit_bytes=32 * 1024 * 1024),
        cost_estimate=pl.CostEstimate(
            flops=2 * B * T * T * hs,            # ~half masked away by causality
            transcendentals=B * T * T // 2,
            bytes_accessed=3 * B * T * hs * 2 + B * T * hs * 4),
    )(q, k, v)
    return out


# ---------------------------------------------------------------------------
# Pure-JAX reference (matching bf16 matmul casts) for validation.
# ---------------------------------------------------------------------------
def reference_head(x, wqkv):
    B, T, C = x.shape
    hs = wqkv.shape[-1] // 3
    qkv = jnp.dot(x.reshape(B * T, C).astype(jnp.bfloat16), wqkv,
                  preferred_element_type=jnp.float32)
    q = qkv[:, :hs].astype(jnp.bfloat16).reshape(B, T, hs)
    k = qkv[:, hs:2 * hs].astype(jnp.bfloat16).reshape(B, T, hs)
    v = qkv[:, 2 * hs:].astype(jnp.bfloat16).reshape(B, T, hs)
    wei = jnp.einsum("btd,bsd->bts", q, k,
                     preferred_element_type=jnp.float32) * (C ** -0.5)
    causal = jnp.tril(jnp.ones((T, T), dtype=bool))
    wei = jnp.where(causal[None], wei, -jnp.inf)
    wei = jax.nn.softmax(wei, axis=-1)
    out = jnp.einsum("bts,bsd->btd", wei.astype(jnp.bfloat16), v,
                     preferred_element_type=jnp.float32)
    return out


if __name__ == "__main__":
    key = jax.random.PRNGKey(0)
    kx, kw = jax.random.split(key)

    B, T = 2, 256
    x = jax.random.normal(kx, (B, T, N_EMBD), jnp.float32)
    # Fused [Wq.T | Wk.T | Wv.T] of the three bias-free nn.Linear layers,
    # stored (C, 3*head_size) in bf16 for the MXU.
    wqkv = (jax.random.normal(kw, (N_EMBD, 3 * HEAD_SIZE), jnp.float32)
            * 0.05).astype(jnp.bfloat16)

    out = jax.jit(head_forward)(x, wqkv)
    jax.block_until_ready(out)

    assert out.shape == (B, T, HEAD_SIZE)
    assert bool(jnp.all(jnp.isfinite(out)))

    ref = reference_head(x, wqkv)
    max_err = float(jnp.max(jnp.abs(out - ref)))
    assert bool(jnp.allclose(out, ref, atol=2e-2, rtol=2e-2)), max_err

    print("KERNEL_OK")
</pallas_src>

<mosaic_0001>
module attributes {stable_mosaic.version = 11 : i64} {
  func.func @qkv_kernel(%arg0: i32, %arg1: memref<256x384xf32, #tpu.memory_space<vmem>>, %arg2: memref<384x192xbf16, #tpu.memory_space<vmem>>, %arg3: memref<256x64xbf16, #tpu.memory_space<vmem>>, %arg4: memref<256x64xbf16, #tpu.memory_space<vmem>>, %arg5: memref<256x64xbf16, #tpu.memory_space<vmem>>) attributes {dimension_semantics = [#tpu.dimension_semantics<parallel>], iteration_bounds = array<i64: 2>, scalar_prefetch = 0 : i64, scratch_operands = 0 : i64, tpu.core_type = #tpu.core_type<tc>, window_params = [{transform_indices = @transform_0, window_bounds = array<i64: 256, 384>}, {pipeline_mode = #tpu.pipeline_mode<synchronous>, transform_indices = @transform_1, window_bounds = array<i64: 384, 192>}, {transform_indices = @transform_2, window_bounds = array<i64: 256, 64>}, {transform_indices = @transform_3, window_bounds = array<i64: 256, 64>}, {transform_indices = @transform_4, window_bounds = array<i64: 256, 64>}]} {
    %c0 = arith.constant 0 : index
    %c0_0 = arith.constant 0 : index
    %0 = vector.load %arg1[%c0, %c0_0] : memref<256x384xf32, #tpu.memory_space<vmem>>, vector<256x384xf32>
    %1 = arith.truncf %0 : vector<256x384xf32> to vector<256x384xbf16>
    %c0_1 = arith.constant 0 : index
    %c0_2 = arith.constant 0 : index
    %2 = vector.load %arg2[%c0_1, %c0_2] : memref<384x192xbf16, #tpu.memory_space<vmem>>, vector<384x192xbf16>
    %cst = arith.constant dense<0.000000e+00> : vector<256x192xf32>
    %3 = tpu.matmul %1, %2, %cst {dimension_numbers = #tpu.dot_dimension_numbers<[1], [0], [0], [1], [0, 0, 1, 1], [], []>} : vector<256x384xbf16>, vector<384x192xbf16>, vector<256x192xf32> -> vector<256x192xf32>
    %4 = vector.extract_strided_slice %3 {offsets = [0, 0], sizes = [256, 64], strides = [1, 1]} : vector<256x192xf32> to vector<256x64xf32>
    %5 = arith.truncf %4 : vector<256x64xf32> to vector<256x64xbf16>
    %c0_3 = arith.constant 0 : index
    %c0_4 = arith.constant 0 : index
    %6 = vector.load %arg3[%c0_3, %c0_4] : memref<256x64xbf16, #tpu.memory_space<vmem>>, vector<256x64xbf16>
    tpu.vector_store %arg3[%c0_3, %c0_4], %5 {strides = array<i32>} : memref<256x64xbf16, #tpu.memory_space<vmem>>, vector<256x64xbf16>,
    %7 = vector.extract_strided_slice %3 {offsets = [0, 64], sizes = [256, 64], strides = [1, 1]} : vector<256x192xf32> to vector<256x64xf32>
    %8 = arith.truncf %7 : vector<256x64xf32> to vector<256x64xbf16>
    %c0_5 = arith.constant 0 : index
    %c0_6 = arith.constant 0 : index
    %9 = vector.load %arg4[%c0_5, %c0_6] : memref<256x64xbf16, #tpu.memory_space<vmem>>, vector<256x64xbf16>
    tpu.vector_store %arg4[%c0_5, %c0_6], %8 {strides = array<i32>} : memref<256x64xbf16, #tpu.memory_space<vmem>>, vector<256x64xbf16>,
    %10 = vector.extract_strided_slice %3 {offsets = [0, 128], sizes = [256, 64], strides = [1, 1]} : vector<256x192xf32> to vector<256x64xf32>
    %11 = arith.truncf %10 : vector<256x64xf32> to vector<256x64xbf16>
    %c0_7 = arith.constant 0 : index
    %c0_8 = arith.constant 0 : index
    %12 = vector.load %arg5[%c0_7, %c0_8] : memref<256x64xbf16, #tpu.memory_space<vmem>>, vector<256x64xbf16>
    tpu.vector_store %arg5[%c0_7, %c0_8], %11 {strides = array<i32>} : memref<256x64xbf16, #tpu.memory_space<vmem>>, vector<256x64xbf16>,
    return
  }
  func.func @transform_0(%arg0: i32) -> (i32, i32) {
    %c0_i32 = arith.constant 0 : i32
    %c0_i32_0 = arith.constant 0 : i32
    return %arg0, %c0_i32 : i32, i32
  }
  func.func @transform_1(%arg0: i32) -> (i32, i32) {
    %c0_i32 = arith.constant 0 : i32
    %c0_i32_0 = arith.constant 0 : i32
    %c0_i32_1 = arith.constant 0 : i32
    return %c0_i32, %c0_i32_0 : i32, i32
  }
  func.func @transform_2(%arg0: i32) -> (i32, i32) {
    %c0_i32 = arith.constant 0 : i32
    %c0_i32_0 = arith.constant 0 : i32
    return %arg0, %c0_i32 : i32, i32
  }
  func.func @transform_3(%arg0: i32) -> (i32, i32) {
    %c0_i32 = arith.constant 0 : i32
    %c0_i32_0 = arith.constant 0 : i32
    return %arg0, %c0_i32 : i32, i32
  }
  func.func @transform_4(%arg0: i32) -> (i32, i32) {
    %c0_i32 = arith.constant 0 : i32
    %c0_i32_0 = arith.constant 0 : i32
    return %arg0, %c0_i32 : i32, i32
  }
}

module attributes {stable_mosaic.version = 11 : i64} {
  func.func @attention_kernel(%arg0: i32, %arg1: i32, %arg2: i32, %arg3: memref<1x128x64xbf16, #tpu.memory_space<vmem>>, %arg4: memref<1x128x64xbf16, #tpu.memory_space<vmem>>, %arg5: memref<1x128x64xbf16, #tpu.memory_space<vmem>>, %arg6: memref<1x128x64xf32, #tpu.memory_space<vmem>>, %arg7: memref<128x1xf32, #tpu.memory_space<vmem>>, %arg8: memref<128x1xf32, #tpu.memory_space<vmem>>, %arg9: memref<128x64xf32, #tpu.memory_space<vmem>>) attributes {dimension_semantics = [#tpu.dimension_semantics<parallel>, #tpu.dimension_semantics<parallel>, #tpu.dimension_semantics<arbitrary>], iteration_bounds = array<i64: 2, 2, 2>, scalar_prefetch = 0 : i64, scratch_operands = 3 : i64, tpu.core_type = #tpu.core_type<tc>, window_params = [{transform_indices = @transform_0, window_bounds = array<i64: 1, 128, 64>}, {transform_indices = @transform_1, window_bounds = array<i64: 1, 128, 64>}, {transform_indices = @transform_2, window_bounds = array<i64: 1, 128, 64>}, {transform_indices = @transform_3, window_bounds = array<i64: 1, 128, 64>}]} {
    %c0_i32 = arith.constant 0 : i32
    %0 = arith.cmpi eq, %arg2, %c0_i32 : i32
    %1 = arith.extui %0 : i1 to i32
    %c0_i32_0 = arith.constant 0 : i32
    %2 = arith.cmpi ne, %1, %c0_i32_0 : i32
    scf.if %2 {
      %cst = arith.constant -1.000000e+30 : f32
      %9 = vector.broadcast %cst : f32 to vector<128x1xf32>
      %c0 = arith.constant 0 : index
      %c0_3 = arith.constant 0 : index
      %10 = vector.load %arg7[%c0, %c0_3] : memref<128x1xf32, #tpu.memory_space<vmem>>, vector<128x1xf32>
      tpu.vector_store %arg7[%c0, %c0_3], %9 {strides = array<i32>} : memref<128x1xf32, #tpu.memory_space<vmem>>, vector<128x1xf32>,
      %cst_4 = arith.constant 0.000000e+00 : f32
      %11 = vector.broadcast %cst_4 : f32 to vector<128x1xf32>
      %c0_5 = arith.constant 0 : index
      %c0_6 = arith.constant 0 : index
      %12 = vector.load %arg8[%c0_5, %c0_6] : memref<128x1xf32, #tpu.memory_space<vmem>>, vector<128x1xf32>
      tpu.vector_store %arg8[%c0_5, %c0_6], %11 {strides = array<i32>} : memref<128x1xf32, #tpu.memory_space<vmem>>, vector<128x1xf32>,
      %cst_7 = arith.constant 0.000000e+00 : f32
      %13 = vector.broadcast %cst_7 : f32 to vector<128x64xf32>
      %c0_8 = arith.constant 0 : index
      %c0_9 = arith.constant 0 : index
      %14 = vector.load %arg9[%c0_8, %c0_9] : memref<128x64xf32, #tpu.memory_space<vmem>>, vector<128x64xf32>
      tpu.vector_store %arg9[%c0_8, %c0_9], %13 {strides = array<i32>} : memref<128x64xf32, #tpu.memory_space<vmem>>, vector<128x64xf32>,
    } else {
    }
    %3 = arith.cmpi sle, %arg2, %arg1 : i32
    %4 = arith.extui %3 : i1 to i32
    %c0_i32_1 = arith.constant 0 : i32
    %5 = arith.cmpi ne, %4, %c0_i32_1 : i32
    scf.if %5 {
      %c0 = arith.constant 0 : index
      %c0_3 = arith.constant 0 : index
      %c0_4 = arith.constant 0 : index
      %9 = vector.load %arg3[%c0, %c0_3, %c0_4] : memref<1x128x64xbf16, #tpu.memory_space<vmem>>, vector<1x128x64xbf16>
      %10 = vector.shape_cast %9 : vector<1x128x64xbf16> to vector<128x64xbf16>
      %c0_5 = arith.constant 0 : index
      %c0_6 = arith.constant 0 : index
      %c0_7 = arith.constant 0 : index
      %11 = vector.load %arg4[%c0_5, %c0_6, %c0_7] : memref<1x128x64xbf16, #tpu.memory_space<vmem>>, vector<1x128x64xbf16>
      %12 = vector.shape_cast %11 : vector<1x128x64xbf16> to vector<128x64xbf16>
      %c0_8 = arith.constant 0 : index
      %c0_9 = arith.constant 0 : index
      %c0_10 = arith.constant 0 : index
      %13 = vector.load %arg5[%c0_8, %c0_9, %c0_10] : memref<1x128x64xbf16, #tpu.memory_space<vmem>>, vector<1x128x64xbf16>
      %14 = vector.shape_cast %13 : vector<1x128x64xbf16> to vector<128x64xbf16>
      %cst = arith.constant dense<0.000000e+00> : vector<128x128xf32>
      %15 = tpu.matmul %10, %12, %cst {dimension_numbers = #tpu.dot_dimension_numbers<[1], [1], [0], [0], [0, 0, 1, 0], [], []>} : vector<128x64xbf16>, vector<128x64xbf16>, vector<128x128xf32> -> vector<128x128xf32>
      %cst_11 = arith.constant 0.0510310382 : f32
      %16 = vector.broadcast %cst_11 : f32 to vector<128x128xf32>
      %17 = arith.mulf %15, %16 : vector<128x128xf32>
      %c128_i32 = arith.constant 128 : i32
      %18 = arith.muli %arg1, %c128_i32 : i32
      %19 = tpu.iota {dimensions = array<i32: 0>} : vector<128x128xi32>
      %20 = vector.broadcast %18 : i32 to vector<128x128xi32>
      %21 = arith.addi %20, %19 : vector<128x128xi32>
      %c128_i32_12 = arith.constant 128 : i32
      %22 = arith.muli %arg2, %c128_i32_12 : i32
      %23 = tpu.iota {dimensions = array<i32: 1>} : vector<128x128xi32>
      %24 = vector.broadcast %22 : i32 to vector<128x128xi32>
      %25 = arith.addi %24, %23 : vector<128x128xi32>
      %26 = arith.cmpi sge, %21, %25 : vector<128x128xi32>
      %cst_13 = arith.constant -1.000000e+30 : f32
      %27 = vector.broadcast %cst_13 : f32 to vector<128x128xf32>
      %28 = arith.select %26, %17, %27 : vector<128x128xi1>, vector<128x128xf32>
      %c0_14 = arith.constant 0 : index
      %c0_15 = arith.constant 0 : index
      %29 = vector.load %arg7[%c0_14, %c0_15] : memref<128x1xf32, #tpu.memory_space<vmem>>, vector<128x1xf32>
      %cst_16 = arith.constant dense<0xFF800000> : vector<128xf32>
      %30 = vector.multi_reduction <maximumf>, %28, %cst_16 [1] : vector<128x128xf32> to vector<128xf32>
      %31 = vector.shape_cast %30 : vector<128xf32> to vector<128x1xf32>
      %32 = arith.maximumf %29, %31 : vector<128x1xf32>
      %33 = arith.subf %29, %32 : vector<128x1xf32>
      %34 = math.exp %33 : vector<128x1xf32>
      %35 = vector.broadcast %32 : vector<128x1xf32> to vector<128x128xf32>
      %36 = arith.subf %28, %35 : vector<128x128xf32>
      %37 = math.exp %36 : vector<128x128xf32>
      %c0_17 = arith.constant 0 : index
      %c0_18 = arith.constant 0 : index
      %38 = vector.load %arg8[%c0_17, %c0_18] : memref<128x1xf32, #tpu.memory_space<vmem>>, vector<128x1xf32>
      %39 = arith.mulf %34, %38 : vector<128x1xf32>
      %cst_19 = arith.constant dense<0.000000e+00> : vector<128xf32>
      %40 = vector.multi_reduction <add>, %37, %cst_19 [1] : vector<128x128xf32> to vector<128xf32>
      %41 = vector.shape_cast %40 : vector<128xf32> to vector<128x1xf32>
      %42 = arith.addf %39, %41 : vector<128x1xf32>
      %c0_20 = arith.constant 0 : index
      %c0_21 = arith.constant 0 : index
      %43 = vector.load %arg8[%c0_20, %c0_21] : memref<128x1xf32, #tpu.memory_space<vmem>>, vector<128x1xf32>
      tpu.vector_store %arg8[%c0_20, %c0_21], %42 {strides = array<i32>} : memref<128x1xf32, #tpu.memory_space<vmem>>, vector<128x1xf32>,
      %c0_22 = arith.constant 0 : index
      %c0_23 = arith.constant 0 : index
      %44 = vector.load %arg9[%c0_22, %c0_23] : memref<128x64xf32, #tpu.memory_space<vmem>>, vector<128x64xf32>
      %45 = vector.broadcast %34 : vector<128x1xf32> to vector<128x64xf32>
      %46 = arith.mulf %45, %44 : vector<128x64xf32>
      %47 = arith.truncf %37 : vector<128x128xf32> to vector<128x128xbf16>
      %cst_24 = arith.constant dense<0.000000e+00> : vector<128x64xf32>
      %48 = tpu.matmul %47, %14, %cst_24 {dimension_numbers = #tpu.dot_dimension_numbers<[1], [0], [0], [1], [0, 0, 1, 1], [], []>} : vector<128x128xbf16>, vector<128x64xbf16>, vector<128x64xf32> -> vector<128x64xf32>
      %49 = arith.addf %46, %48 : vector<128x64xf32>
      %c0_25 = arith.constant 0 : index
      %c0_26 = arith.constant 0 : index
      %50 = vector.load %arg9[%c0_25, %c0_26] : memref<128x64xf32, #tpu.memory_space<vmem>>, vector<128x64xf32>
      tpu.vector_store %arg9[%c0_25, %c0_26], %49 {strides = array<i32>} : memref<128x64xf32, #tpu.memory_space<vmem>>, vector<128x64xf32>,
      %c0_27 = arith.constant 0 : index
      %c0_28 = arith.constant 0 : index
      %51 = vector.load %arg7[%c0_27, %c0_28] : memref<128x1xf32, #tpu.memory_space<vmem>>, vector<128x1xf32>
      tpu.vector_store %arg7[%c0_27, %c0_28], %32 {strides = array<i32>} : memref<128x1xf32, #tpu.memory_space<vmem>>, vector<128x1xf32>,
    } else {
    }
    %c1_i32 = arith.constant 1 : i32
    %6 = arith.cmpi eq, %arg2, %c1_i32 : i32
    %7 = arith.extui %6 : i1 to i32
    %c0_i32_2 = arith.constant 0 : i32
    %8 = arith.cmpi ne, %7, %c0_i32_2 : i32
    scf.if %8 {
      %c0 = arith.constant 0 : index
      %c0_3 = arith.constant 0 : index
      %9 = vector.load %arg9[%c0, %c0_3] : memref<128x64xf32, #tpu.memory_space<vmem>>, vector<128x64xf32>
      %c0_4 = arith.constant 0 : index
      %c0_5 = arith.constant 0 : index
      %10 = vector.load %arg8[%c0_4, %c0_5] : memref<128x1xf32, #tpu.memory_space<vmem>>, vector<128x1xf32>
      %11 = tpu.reciprocal %10 {approx = true} : vector<128x1xf32> -> vector<128x1xf32>
      %12 = vector.broadcast %11 : vector<128x1xf32> to vector<128x64xf32>
      %13 = arith.mulf %9, %12 : vector<128x64xf32>
      %c0_6 = arith.constant 0 : index
      %c0_7 = arith.constant 0 : index
      %c0_8 = arith.constant 0 : index
      %14 = vector.load %arg6[%c0_6, %c0_7, %c0_8] : memref<1x128x64xf32, #tpu.memory_space<vmem>>, vector<1x128x64xf32>
      %15 = vector.shape_cast %14 : vector<1x128x64xf32> to vector<128x64xf32>
      %16 = vector.shape_cast %13 : vector<128x64xf32> to vector<1x128x64xf32>
      tpu.vector_store %arg6[%c0_6, %c0_7, %c0_8], %16 {strides = array<i32>} : memref<1x128x64xf32, #tpu.memory_space<vmem>>, vector<1x128x64xf32>,
    } else {
    }
    return
  }
  func.func @transform_0(%arg0: i32, %arg1: i32, %arg2: i32) -> (i32, i32, i32) {
    %c0_i32 = arith.constant 0 : i32
    %c0_i32_0 = arith.constant 0 : i32
    return %arg0, %arg1, %c0_i32 : i32, i32, i32
  }
  func.func @transform_1(%arg0: i32, %arg1: i32, %arg2: i32) -> (i32, i32, i32) {
    %c0_i32 = arith.constant 0 : i32
    %c0_i32_0 = arith.constant 0 : i32
    return %arg0, %arg2, %c0_i32 : i32, i32, i32
  }
  func.func @transform_2(%arg0: i32, %arg1: i32, %arg2: i32) -> (i32, i32, i32) {
    %c0_i32 = arith.constant 0 : i32
    %c0_i32_0 = arith.constant 0 : i32
    return %arg0, %arg2, %c0_i32 : i32, i32, i32
  }
  func.func @transform_3(%arg0: i32, %arg1: i32, %arg2: i32) -> (i32, i32, i32) {
    %c0_i32 = arith.constant 0 : i32
    %c0_i32_0 = arith.constant 0 : i32
    return %arg0, %arg1, %c0_i32 : i32, i32, i32
  }
}

</mosaic_0001>

<llo_original>
// kernel: head_forward.3
$region0: #{head_forward.3}
  #allocation0 [shape = 'u32[]', space=smem, size = 0x4, offset = 0x4, fixed_abs, tag = 'smem constant byte address 0x4 - core index']
  #allocation1 [shape = 'u32[144,128]{1,0:T(1,128)}', space=vmem, size = 0x12000, scoped, tag = 'internal scratch']
  #allocation2 [shape = 'f32[128,1]{1,0:T(8,128)}', space=vmem, size = 0x10000, scoped, tag = 'scratch operand']
  #allocation3 [shape = 'f32[128,1]{1,0:T(8,128)}', space=vmem, size = 0x10000, scoped, tag = 'scratch operand']
  #allocation4 [shape = 'f32[128,64]{1,0:T(8,128)}', space=vmem, size = 0x10000, scoped, tag = 'scratch operand']
  %s0 = inlined_call_operand.vmem [shape: bf16[2,256,64], index: 0, kind: input, shape index: {}]
  %s1 = inlined_call_operand.vmem [shape: bf16[2,256,64], index: 1, kind: input, shape index: {}]
  %s2 = inlined_call_operand.vmem [shape: bf16[2,256,64], index: 2, kind: input, shape index: {}]
  %s3 = inlined_call_operand.vmem [shape: f32[2,256,64], index: 3, kind: output, shape index: {}]
  %s4 = sld [smem:[#allocation0]]
  $region57: #{head_forward.3} parent=0
    _
  %s6 = ssub.s32 1, %s4
  %s7 = scalar_select 0, %s6, %s4
  loop: start=0, step=1, limit=10
  $region2: #{head_forward.3} parent=0 // loop_pre_header
    _
  $region3: #{head_forward.3} parent=0 // loop_header
    %s9 = sphi 0, %s13
    %p10 = scmp.ge.s32.totalorder %s9, 10
    %s16 = sphi 0, %s35
    %s17 = sphi 0, %s31
    %s18 = sphi 0, %s27
    %s19 = sphi 0, %s16
    %s20 = sphi 0, %s17
    %s21 = sphi 0, %s18
    %s22 = sphi 0, %s19
    %s23 = sphi 0, %s20
    %s24 = sphi 0, %s21
    %s40 = sphi 0, %s42
    %s43 = sphi 0, %s40
    %s44 = sphi 0, %s43
    %s60 = sphi 0, %s44
    %s68 = sphi 0, %s70
    %s71 = sphi 0, %s68
    %s72 = sphi 0, %s71
    %s88 = sphi 0, %s72
    %s96 = sphi 0, %s98
    %s99 = sphi 0, %s96
    %s100 = sphi 0, %s99
    %s116 = sphi 0, %s100
    %s124 = sphi 0, %s126
    %s127 = sphi 0, %s124
    %s128 = sphi 0, %s127
    %s144 = sphi 0, %s128
  $region4: #{head_forward.3} parent=0 // loop_header_branch
    %12 = sbr.rel (%p10) target = $region8
  $region5: #{head_forward.3} parent=0 // loop_body
    %s14 = ssub.s32 %s9, 1
    %s15 = ssub.s32 %s9, 2
    %s25 = sadd.s32 1, %s18
    %p26 = scmp.ge.s32.totalorder %s25, 2
    %s27 = scalar_select %p26, 0, %s25
    %s28 = sadd.s32 1, %s17
    %s29 = scalar_select %p26, %s28, %s17
    %p30 = scmp.ge.s32.totalorder %s29, 2
    %s31 = scalar_select %p30, 0, %s29
    %s32 = sadd.s32 1, %s16
    %s33 = scalar_select %p30, %s32, %s16
    %p34 = scmp.ge.s32.totalorder %s33, 2
    %s35 = scalar_select %p34, 0, %s33
    %s36 = ssub.s32 %s16, %s35
    %s37 = ssub.s32 %s17, %s31
    %s38 = sor.u32 %s36, %s37
    %p39 = scmp.eq.s32.totalorder %s38, 0
    %s41 = sadd.s32 %s40, 1
    %s42 = scalar_select %p39, %s40, %s41
    %p45 = pneg %p39
    %p46 = scmp.eq.s32.totalorder %s9, 7
    %p47 = por %p45, %p46
    %p48 = scmp.ne.s32.totalorder %s40, %s43
    %p49 = scmp.eq.s32.totalorder %s9, 0
    %p50 = por %p48, %p49
    %p51 = scmp.ne.s32.totalorder %s40, %s43
    %p52 = scmp.eq.s32.totalorder %s14, 7
    %p53 = por %p51, %p52
    %p54 = scmp.ne.s32.totalorder %s43, %s44
    %p55 = scmp.eq.s32.totalorder %s14, 0
    %p56 = por %p54, %p55
    %p57 = scmp.ne.s32.totalorder %s43, %s44
    %p58 = scmp.eq.s32.totalorder %s15, 7
    %p59 = por %p57, %p58
    %p61 = scmp.ne.s32.totalorder %s44, %s60
    %p62 = scmp.eq.s32.totalorder %s15, 0
    %p63 = por %p61, %p62
    %s64 = ssub.s32 %s16, %s35
    %s65 = ssub.s32 %s18, %s27
    %s66 = sor.u32 %s64, %s65
    %p67 = scmp.eq.s32.totalorder %s66, 0
    %s69 = sadd.s32 %s68, 1
    %s70 = scalar_select %p67, %s68, %s69
    %p73 = pneg %p67
    %p74 = scmp.eq.s32.totalorder %s9, 7
    %p75 = por %p73, %p74
    %p76 = scmp.ne.s32.totalorder %s68, %s71
    %p77 = scmp.eq.s32.totalorder %s9, 0
    %p78 = por %p76, %p77
    %p79 = scmp.ne.s32.totalorder %s68, %s71
    %p80 = scmp.eq.s32.totalorder %s14, 7
    %p81 = por %p79, %p80
    %p82 = scmp.ne.s32.totalorder %s71, %s72
    %p83 = scmp.eq.s32.totalorder %s14, 0
    %p84 = por %p82, %p83
    %p85 = scmp.ne.s32.totalorder %s71, %s72
    %p86 = scmp.eq.s32.totalorder %s15, 7
    %p87 = por %p85, %p86
    %p89 = scmp.ne.s32.totalorder %s72, %s88
    %p90 = scmp.eq.s32.totalorder %s15, 0
    %p91 = por %p89, %p90
    %s92 = ssub.s32 %s16, %s35
    %s93 = ssub.s32 %s18, %s27
    %s94 = sor.u32 %s92, %s93
    %p95 = scmp.eq.s32.totalorder %s94, 0
    %s97 = sadd.s32 %s96, 1
    %s98 = scalar_select %p95, %s96, %s97
    %p101 = pneg %p95
    %p102 = scmp.eq.s32.totalorder %s9, 7
    %p103 = por %p101, %p102
    %p104 = scmp.ne.s32.totalorder %s96, %s99
    %p105 = scmp.eq.s32.totalorder %s9, 0
    %p106 = por %p104, %p105
    %p107 = scmp.ne.s32.totalorder %s96, %s99
    %p108 = scmp.eq.s32.totalorder %s14, 7
    %p109 = por %p107, %p108
    %p110 = scmp.ne.s32.totalorder %s99, %s100
    %p111 = scmp.eq.s32.totalorder %s14, 0
    %p112 = por %p110, %p111
    %p113 = scmp.ne.s32.totalorder %s99, %s100
    %p114 = scmp.eq.s32.totalorder %s15, 7
    %p115 = por %p113, %p114
    %p117 = scmp.ne.s32.totalorder %s100, %s116
    %p118 = scmp.eq.s32.totalorder %s15, 0
    %p119 = por %p117, %p118
    %s120 = ssub.s32 %s16, %s35
    %s121 = ssub.s32 %s17, %s31
    %s122 = sor.u32 %s120, %s121
    %p123 = scmp.eq.s32.totalorder %s122, 0
    %s125 = sadd.s32 %s124, 1
    %s126 = scalar_select %p123, %s124, %s125
    %p129 = pneg %p123
    %p130 = scmp.eq.s32.totalorder %s9, 7
    %p131 = por %p129, %p130
    %p132 = scmp.ne.s32.totalorder %s124, %s127
    %p133 = scmp.eq.s32.totalorder %s9, 0
    %p134 = por %p132, %p133
    %p135 = scmp.ne.s32.totalorder %s124, %s127
    %p136 = scmp.eq.s32.totalorder %s14, 7
    %p137 = por %p135, %p136
    %p138 = scmp.ne.s32.totalorder %s127, %s128
    %p139 = scmp.eq.s32.totalorder %s14, 0
    %p140 = por %p138, %p139
    %p141 = scmp.ne.s32.totalorder %s127, %s128
    %p142 = scmp.eq.s32.totalorder %s15, 7
    %p143 = por %p141, %p142
    %p145 = scmp.ne.s32.totalorder %s128, %s144
    %p146 = scmp.eq.s32.totalorder %s15, 0
    %p147 = por %p145, %p146
    %p148 = scmp.le.s32.totalorder 1, %s9
    %p149 = scmp.lt.s32.totalorder %s9, 9
    %p150 = pnand %p148, %p149
    %p151 = pneg %p150
    // Predicated region
    $region9: #{head_forward.3} parent=5 // pred_check
      _
    $region10: #{head_forward.3} parent=5 // pred_check_branch
      %153 = sbr.rel (%p150) target = $region12
    $region11: #{head_forward.3} parent=5 // pred_region
      %s154 = ssub.s32 %s9, 1
    $region12: #{head_forward.3} parent=5 // pred_fallthru
      _
    %p155 = scmp.lt.s32.totalorder %s9, 8
    // Predicated region
    $region13: #{head_forward.3} parent=5 // pred_check
      %p156 = pneg %p155
    $region14: #{head_forward.3} parent=5 // pred_check_branch
      %158 = sbr.rel (%p156) target = $region16
    $region15: #{head_forward.3} parent=5 // pred_region
      // Predicated region
      $region17: #{head_forward.3} parent=15 // pred_check
        %p159 = pneg %p50
      $region18: #{head_forward.3} parent=15 // pred_check_branch
        %161 = sbr.rel (%p159) target = $region20
      $region19: #{head_forward.3} parent=15 // pred_region
        %s162 = smul.u32 16, %s17
        %p163 = scmp.lt.s32.totalorder %s16, 1
        %s164 = scalar_select %p163, %s16, 1
        %p165 = scmp.lt.s32.totalorder %s162, 31
        %s166 = scalar_select %p165, %s162, 31
        %s167 = smul.addr %s164, 32
        %s168 = sadd.s32 %s166, %s167
        %s169 = smul.addr %s168, 4
        %s170 = scalar_lea.vmem %s0, %s169
        %s171 = smul.u32 16, %s17
      $region20: #{head_forward.3} parent=15 // pred_fallthru
        _
      // Predicated region
      $region21: #{head_forward.3} parent=15 // pred_check
        %p172 = pneg %p78
      $region22: #{head_forward.3} parent=15 // pred_check_branch
        %174 = sbr.rel (%p172) target = $region24
      $region23: #{head_forward.3} parent=15 // pred_region
        %s175 = smul.u32 16, %s18
        %p176 = scmp.lt.s32.totalorder %s16, 1
        %s177 = scalar_select %p176, %s16, 1
        %p178 = scmp.lt.s32.totalorder %s175, 31
        %s179 = scalar_select %p178, %s175, 31
        %s180 = smul.addr %s177, 32
        %s181 = sadd.s32 %s179, %s180
        %s182 = smul.addr %s181, 4
        %s183 = scalar_lea.vmem %s1, %s182
        %s184 = smul.u32 16, %s18
      $region24: #{head_forward.3} parent=15 // pred_fallthru
        _
      // Predicated region
      $region25: #{head_forward.3} parent=15 // pred_check
        %p185 = pneg %p106
      $region26: #{head_forward.3} parent=15 // pred_check_branch
        %187 = sbr.rel (%p185) target = $region28
      $region27: #{head_forward.3} parent=15 // pred_region
        %s188 = smul.u32 16, %s18
        %p189 = scmp.lt.s32.totalorder %s16, 1
        %s190 = scalar_select %p189, %s16, 1
        %p191 = scmp.lt.s32.totalorder %s188, 31
        %s192 = scalar_select %p191, %s188, 31
        %s193 = smul.addr %s190, 32
        %s194 = sadd.s32 %s192, %s193
        %s195 = smul.addr %s194, 4
        %s196 = scalar_lea.vmem %s2, %s195
        %s197 = smul.u32 16, %s18
      $region28: #{head_forward.3} parent=15 // pred_fallthru
        _
    $region16: #{head_forward.3} parent=5 // pred_fallthru
      _
    %p198 = scmp.le.s32.totalorder 1, %s9
    %p199 = scmp.lt.s32.totalorder %s9, 9
    %p200 = pnand %p198, %p199
    %p201 = pneg %p200
    // Predicated region
    $region29: #{head_forward.3} parent=5 // pred_check
      _
    $region30: #{head_forward.3} parent=5 // pred_check_branch
      %203 = sbr.rel (%p200) target = $region32
    $region31: #{head_forward.3} parent=5 // pred_region
      %s204 = ssub.s32 %s9, 1
      %s205 = smul.u32 16, %s20
      %p206 = scmp.lt.s32.totalorder %s19, 1
      %s207 = scalar_select %p206, %s19, 1
      %p208 = scmp.lt.s32.totalorder %s205, 31
      %s209 = scalar_select %p208, %s205, 31
      %s210 = smul.addr %s207, 32
      %s211 = sadd.s32 %s209, %s210
      %s212 = smul.addr %s211, 4
      %s213 = scalar_lea.vmem %s0, %s212
      %p214 = pneg %p56
      %p215 = pneg %p53
      %s216 = smul.u32 16, %s21
      %p217 = scmp.lt.s32.totalorder %s19, 1
      %s218 = scalar_select %p217, %s19, 1
      %p219 = scmp.lt.s32.totalorder %s216, 31
      %s220 = scalar_select %p219, %s216, 31
      %s221 = smul.addr %s218, 32
      %s222 = sadd.s32 %s220, %s221
      %s223 = smul.addr %s222, 4
      %s224 = scalar_lea.vmem %s1, %s223
      %p225 = pneg %p84
      %p226 = pneg %p81
      %s227 = smul.u32 16, %s21
      %p228 = scmp.lt.s32.totalorder %s19, 1
      %s229 = scalar_select %p228, %s19, 1
      %p230 = scmp.lt.s32.totalorder %s227, 31
      %s231 = scalar_select %p230, %s227, 31
      %s232 = smul.addr %s229, 32
      %s233 = sadd.s32 %s231, %s232
      %s234 = smul.addr %s233, 4
      %s235 = scalar_lea.vmem %s2, %s234
      %p236 = pneg %p112
      %p237 = pneg %p109
      %p238 = pneg %p140
      %p239 = pneg %p137
      %s240 = smul.u32 16, %s20
      %p241 = scmp.lt.s32.totalorder %s19, 1
      %s242 = scalar_select %p241, %s19, 1
      %p243 = scmp.lt.s32.totalorder %s240, 31
      %s244 = scalar_select %p243, %s240, 31
      %s245 = smul.addr %s242, 32
      %s246 = sadd.s32 %s244, %s245
      %s247 = smul.addr %s246, 8
      %s248 = scalar_lea.vmem %s3, %s247
      %s249 = smul.u32 16, %s20
      %p250 = scmp.lt.s32.totalorder %s19, 1
      %s251 = scalar_select %p250, %s19, 1
      %p252 = scmp.lt.s32.totalorder %s249, 31
      %s253 = scalar_select %p252, %s249, 31
      %s254 = smul.addr %s251, 32
      %s255 = sadd.s32 %s253, %s254
      %s256 = smul.addr %s255, 4
      %s257 = scalar_lea.vmem %s0, %s256
      %s258 = smul.u32 16, %s20
      %s259 = smul.u32 16, %s21
      %p260 = scmp.lt.s32.totalorder %s19, 1
      %s261 = scalar_select %p260, %s19, 1
      %p262 = scmp.lt.s32.totalorder %s259, 31
      %s263 = scalar_select %p262, %s259, 31
      %s264 = smul.addr %s261, 32
      %s265 = sadd.s32 %s263, %s264
      %s266 = smul.addr %s265, 4
      %s267 = scalar_lea.vmem %s1, %s266
      %s268 = smul.u32 16, %s21
      %s269 = smul.u32 16, %s21
      %p270 = scmp.lt.s32.totalorder %s19, 1
      %s271 = scalar_select %p270, %s19, 1
      %p272 = scmp.lt.s32.totalorder %s269, 31
      %s273 = scalar_select %p272, %s269, 31
      %s274 = smul.addr %s271, 32
      %s275 = sadd.s32 %s273, %s274
      %s276 = smul.addr %s275, 4
      %s277 = scalar_lea.vmem %s2, %s276
      %s278 = smul.u32 16, %s21
      %s279 = smul.u32 16, %s20
      %p280 = scmp.lt.s32.totalorder %s19, 1
      %s281 = scalar_select %p280, %s19, 1
      %p282 = scmp.lt.s32.totalorder %s279, 31
      %s283 = scalar_select %p282, %s279, 31
      %s284 = smul.addr %s281, 32
      %s285 = sadd.s32 %s283, %s284
      %s286 = smul.addr %s285, 8
      %s287 = scalar_lea.vmem %s3, %s286
      %s288 = smul.u32 16, %s20
      %p290 = scmp.eq.s32.totalorder %s21, 0
      // Predicated region
      $region33: #{head_forward.3} parent=31 // pred_check
        %p291 = pneg %p290
      $region34: #{head_forward.3} parent=31 // pred_check_branch
        %293 = sbr.rel (%p291) target = $region36
      $region35: #{head_forward.3} parent=31 // pred_region
        %vm294 = vcmask 7168
        %295 = vst.msk [vmem:[#allocation2] sm:$0xff] %vm294, -1e+30
        %296 = vst.msk [vmem:[#allocation2 + $0x8] sm:$0xff] %vm294, -1e+30
        %297 = vst.msk [vmem:[#allocation2 + $0x10] sm:$0xff] %vm294, -1e+30
        %298 = vst.msk [vmem:[#allocation2 + $0x18] sm:$0xff] %vm294, -1e+30
        %299 = vst.msk [vmem:[#allocation2 + $0x20] sm:$0xff] %vm294, -1e+30
        %300 = vst.msk [vmem:[#allocation2 + $0x28] sm:$0xff] %vm294, -1e+30
        %301 = vst.msk [vmem:[#allocation2 + $0x30] sm:$0xff] %vm294, -1e+30
        %302 = vst.msk [vmem:[#allocation2 + $0x38] sm:$0xff] %vm294, -1e+30
        %303 = vst.msk [vmem:[#allocation2 + $0x40] sm:$0xff] %vm294, -1e+30
        %304 = vst.msk [vmem:[#allocation2 + $0x48] sm:$0xff] %vm294, -1e+30
        %305 = vst.msk [vmem:[#allocation2 + $0x50] sm:$0xff] %vm294, -1e+30
        %306 = vst.msk [vmem:[#allocation2 + $0x58] sm:$0xff] %vm294, -1e+30
        %307 = vst.msk [vmem:[#allocation2 + $0x60] sm:$0xff] %vm294, -1e+30
        %308 = vst.msk [vmem:[#allocation2 + $0x68] sm:$0xff] %vm294, -1e+30
        %309 = vst.msk [vmem:[#allocation2 + $0x70] sm:$0xff] %vm294, -1e+30
        %310 = vst.msk [vmem:[#allocation2 + $0x78] sm:$0xff] %vm294, -1e+30
        %311 = vst.msk [vmem:[#allocation3] sm:$0xff] %vm294, 0.0
        %312 = vst.msk [vmem:[#allocation3 + $0x8] sm:$0xff] %vm294, 0.0
        %313 = vst.msk [vmem:[#allocation3 + $0x10] sm:$0xff] %vm294, 0.0
        %314 = vst.msk [vmem:[#allocation3 + $0x18] sm:$0xff] %vm294, 0.0
        %315 = vst.msk [vmem:[#allocation3 + $0x20] sm:$0xff] %vm294, 0.0
        %316 = vst.msk [vmem:[#allocation3 + $0x28] sm:$0xff] %vm294, 0.0
        %317 = vst.msk [vmem:[#allocation3 + $0x30] sm:$0xff] %vm294, 0.0
        %318 = vst.msk [vmem:[#allocation3 + $0x38] sm:$0xff] %vm294, 0.0
        %319 = vst.msk [vmem:[#allocation3 + $0x40] sm:$0xff] %vm294, 0.0
        %320 = vst.msk [vmem:[#allocation3 + $0x48] sm:$0xff] %vm294, 0.0
        %321 = vst.msk [vmem:[#allocation3 + $0x50] sm:$0xff] %vm294, 0.0
        %322 = vst.msk [vmem:[#allocation3 + $0x58] sm:$0xff] %vm294, 0.0
        %323 = vst.msk [vmem:[#allocation3 + $0x60] sm:$0xff] %vm294, 0.0
        %324 = vst.msk [vmem:[#allocation3 + $0x68] sm:$0xff] %vm294, 0.0
        %325 = vst.msk [vmem:[#allocation3 + $0x70] sm:$0xff] %vm294, 0.0
        %326 = vst.msk [vmem:[#allocation3 + $0x78] sm:$0xff] %vm294, 0.0
        %vm327 = vcmask 523264
        %328 = vst.msk [vmem:[#allocation4] sm:$0xff] %vm327, 0.0
        %329 = vst.msk [vmem:[#allocation4 + $0x8] sm:$0xff] %vm327, 0.0
        %330 = vst.msk [vmem:[#allocation4 + $0x10] sm:$0xff] %vm327, 0.0
        %331 = vst.msk [vmem:[#allocation4 + $0x18] sm:$0xff] %vm327, 0.0
        %332 = vst.msk [vmem:[#allocation4 + $0x20] sm:$0xff] %vm327, 0.0
        %333 = vst.msk [vmem:[#allocation4 + $0x28] sm:$0xff] %vm327, 0.0
        %334 = vst.msk [vmem:[#allocation4 + $0x30] sm:$0xff] %vm327, 0.0
        %335 = vst.msk [vmem:[#allocation4 + $0x38] sm:$0xff] %vm327, 0.0
        %336 = vst.msk [vmem:[#allocation4 + $0x40] sm:$0xff] %vm327, 0.0
        %337 = vst.msk [vmem:[#allocation4 + $0x48] sm:$0xff] %vm327, 0.0
        %338 = vst.msk [vmem:[#allocation4 + $0x50] sm:$0xff] %vm327, 0.0
        %339 = vst.msk [vmem:[#allocation4 + $0x58] sm:$0xff] %vm327, 0.0
        %340 = vst.msk [vmem:[#allocation4 + $0x60] sm:$0xff] %vm327, 0.0
        %341 = vst.msk [vmem:[#allocation4 + $0x68] sm:$0xff] %vm327, 0.0
        %342 = vst.msk [vmem:[#allocation4 + $0x70] sm:$0xff] %vm327, 0.0
        %343 = vst.msk [vmem:[#allocation4 + $0x78] sm:$0xff] %vm327, 0.0
      $region36: #{head_forward.3} parent=31 // pred_fallthru
        _
      %p344 = scmp.le.s32.totalorder %s21, %s20
      // Predicated region
      $region37: #{head_forward.3} parent=31 // pred_check
        %p345 = pneg %p344
      $region38: #{head_forward.3} parent=31 // pred_check_branch
        %347 = sbr.rel (%p345) target = $region40
      $region39: #{head_forward.3} parent=31 // pred_region
        %v348 = vld [vmem:[%s257] sm:$0xf]
        %v349 = vld [vmem:[%s257 + $0x4] sm:$0xf]
        %v350 = vld [vmem:[%s257 + $0x8] sm:$0xf]
        %v351 = vld [vmem:[%s257 + $0xc] sm:$0xf]
        %v352 = vld [vmem:[%s257 + $0x10] sm:$0xf]
        %v353 = vld [vmem:[%s257 + $0x14] sm:$0xf]
        %v354 = vld [vmem:[%s257 + $0x18] sm:$0xf]
        %v355 = vld [vmem:[%s257 + $0x1c] sm:$0xf]
        %v356 = vld [vmem:[%s257 + $0x20] sm:$0xf]
        %v357 = vld [vmem:[%s257 + $0x24] sm:$0xf]
        %v358 = vld [vmem:[%s257 + $0x28] sm:$0xf]
        %v359 = vld [vmem:[%s257 + $0x2c] sm:$0xf]
        %v360 = vld [vmem:[%s257 + $0x30] sm:$0xf]
        %v361 = vld [vmem:[%s257 + $0x34] sm:$0xf]
        %v362 = vld [vmem:[%s257 + $0x38] sm:$0xf]
        %v363 = vld [vmem:[%s257 + $0x3c] sm:$0xf]
        %v364 = vld [vmem:[%s267] sm:$0xf]
        %v365 = vld [vmem:[%s267 + $0x4] sm:$0xf]
        %v366 = vld [vmem:[%s267 + $0x8] sm:$0xf]
        %v367 = vld [vmem:[%s267 + $0xc] sm:$0xf]
        %v368 = vld [vmem:[%s267 + $0x10] sm:$0xf]
        %v369 = vld [vmem:[%s267 + $0x14] sm:$0xf]
        %v370 = vld [vmem:[%s267 + $0x18] sm:$0xf]
        %v371 = vld [vmem:[%s267 + $0x1c] sm:$0xf]
        %v372 = vld [vmem:[%s267 + $0x20] sm:$0xf]
        %v373 = vld [vmem:[%s267 + $0x24] sm:$0xf]
        %v374 = vld [vmem:[%s267 + $0x28] sm:$0xf]
        %v375 = vld [vmem:[%s267 + $0x2c] sm:$0xf]
        %v376 = vld [vmem:[%s267 + $0x30] sm:$0xf]
        %v377 = vld [vmem:[%s267 + $0x34] sm:$0xf]
        %v378 = vld [vmem:[%s267 + $0x38] sm:$0xf]
        %v379 = vld [vmem:[%s267 + $0x3c] sm:$0xf]
        %v380 = vld [vmem:[%s277] sm:$0xf]
        %v381 = vld [vmem:[%s277 + $0x4] sm:$0xf]
        %v382 = vld [vmem:[%s277 + $0x8] sm:$0xf]
        %v383 = vld [vmem:[%s277 + $0xc] sm:$0xf]
        %v384 = vld [vmem:[%s277 + $0x10] sm:$0xf]
        %v385 = vld [vmem:[%s277 + $0x14] sm:$0xf]
        %v386 = vld [vmem:[%s277 + $0x18] sm:$0xf]
        %v387 = vld [vmem:[%s277 + $0x1c] sm:$0xf]
        %v388 = vld [vmem:[%s277 + $0x20] sm:$0xf]
        %v389 = vld [vmem:[%s277 + $0x24] sm:$0xf]
        %v390 = vld [vmem:[%s277 + $0x28] sm:$0xf]
        %v391 = vld [vmem:[%s277 + $0x2c] sm:$0xf]
        %v392 = vld [vmem:[%s277 + $0x30] sm:$0xf]
        %v393 = vld [vmem:[%s277 + $0x34] sm:$0xf]
        %v394 = vld [vmem:[%s277 + $0x38] sm:$0xf]
        %v395 = vld [vmem:[%s277 + $0x3c] sm:$0xf]
        %v412 = vunpack.c.l.b16 %v348
        %v413 = vunpack.c.l.b16 %v349
        %v414 = vunpack.c.l.b16 %v350
        %v415 = vunpack.c.l.b16 %v351
        %v416 = vunpack.c.l.b16 %v352
        %v417 = vunpack.c.l.b16 %v353
        %v418 = vunpack.c.l.b16 %v354
        %v419 = vunpack.c.l.b16 %v355
        %v420 = vunpack.c.l.b16 %v356
        %v421 = vunpack.c.l.b16 %v357
        %v422 = vunpack.c.l.b16 %v358
        %v423 = vunpack.c.l.b16 %v359
        %v424 = vunpack.c.l.b16 %v360
        %v425 = vunpack.c.l.b16 %v361
        %v426 = vunpack.c.l.b16 %v362
        %v427 = vunpack.c.l.b16 %v363
        %v428 = vpack.c.b16 %v413, %v412
        %v429 = vpack.c.b16 %v415, %v414
        %v430 = vpack.c.b16 %v417, %v416
        %v431 = vpack.c.b16 %v419, %v418
        %v432 = vpack.c.b16 %v421, %v420
        %v433 = vpack.c.b16 %v423, %v422
        %v434 = vpack.c.b16 %v425, %v424
        %v435 = vpack.c.b16 %v427, %v426
        %v452 = vunpack.c.l.b16 %v364
        %v453 = vunpack.c.l.b16 %v365
        %v454 = vunpack.c.l.b16 %v366
        %v455 = vunpack.c.l.b16 %v367
        %v456 = vunpack.c.l.b16 %v368
        %v457 = vunpack.c.l.b16 %v369
        %v458 = vunpack.c.l.b16 %v370
        %v459 = vunpack.c.l.b16 %v371
        %v460 = vunpack.c.l.b16 %v372
        %v461 = vunpack.c.l.b16 %v373
        %v462 = vunpack.c.l.b16 %v374
        %v463 = vunpack.c.l.b16 %v375
        %v464 = vunpack.c.l.b16 %v376
        %v465 = vunpack.c.l.b16 %v377
        %v466 = vunpack.c.l.b16 %v378
        %v467 = vunpack.c.l.b16 %v379
        %v468 = vpack.c.b16 %v453, %v452
        %v469 = vpack.c.b16 %v455, %v454
        %v470 = vpack.c.b16 %v457, %v456
        %v471 = vpack.c.b16 %v459, %v458
        %v472 = vpack.c.b16 %v461, %v460
        %v473 = vpack.c.b16 %v463, %v462
        %v474 = vpack.c.b16 %v465, %v464
        %v475 = vpack.c.b16 %v467, %v466
        %vm476 = vcmask 523264
        %v478 = vsel %vm476, %v428, 0
        %v481 = vsel %vm476, %v429, 0
        %v484 = vsel %vm476, %v430, 0
        %v487 = vsel %vm476, %v431, 0
        %v490 = vsel %vm476, %v432, 0
        %v493 = vsel %vm476, %v433, 0
        %v496 = vsel %vm476, %v434, 0
        %v499 = vsel %vm476, %v435, 0
        %v502 = vsel %vm476, %v468, 0
        %v505 = vsel %vm476, %v469, 0
        %v508 = vsel %vm476, %v470, 0
        %v511 = vsel %vm476, %v471, 0
        %v514 = vsel %vm476, %v472, 0
        %v517 = vsel %vm476, %v473, 0
        %v520 = vsel %vm476, %v474, 0
        %v523 = vsel %vm476, %v475, 0
        %525 = vmatprep.subr.bf16.mxu0 0
        %526 = vmatpush1.bf16.xpose.msra.mxu0 %v523
        %527 = vmatprep.subr.bf16.mxu0 0
        %528 = vmatpush1.bf16.xpose.msra.mxu0 %v520
        %529 = vmatprep.subr.bf16.mxu0 0
        %530 = vmatpush1.bf16.xpose.msra.mxu0 %v517
        %531 = vmatprep.subr.bf16.mxu0 0
        %532 = vmatpush1.bf16.xpose.msra.mxu0 %v514
        %533 = vmatprep.subr.bf16.mxu0 0
        %534 = vmatpush1.bf16.xpose.msra.mxu0 %v511
        %535 = vmatprep.subr.bf16.mxu0 0
        %536 = vmatpush1.bf16.xpose.msra.mxu0 %v508
        %537 = vmatprep.subr.bf16.mxu0 0
        %538 = vmatpush1.bf16.xpose.msra.mxu0 %v505
        %539 = vmatprep.subr.bf16.mxu0 0
        %540 = vmatpush1.bf16.xpose.msra.mxu0 %v502
        %541 = vmatprep.subr.bf16.mxu0 0
        %542 = vmatpush2.bf16.xpose.msra.mxu0 0
        %543 = vmatprep.subr.bf16.mxu0 0
        %544 = vmatpush2.bf16.xpose.msra.mxu0 0
        %545 = vmatprep.subr.bf16.mxu0 0
        %546 = vmatpush2.bf16.xpose.msra.mxu0 0
        %547 = vmatprep.subr.bf16.mxu0 0
        %548 = vmatpush2.bf16.xpose.msra.mxu0 0
        %549 = vmatprep.subr.bf16.mxu0 0
        %550 = vmatpush2.bf16.xpose.msra.mxu0 0
        %551 = vmatprep.subr.bf16.mxu0 0
        %552 = vmatpush2.bf16.xpose.msra.mxu0 0
        %553 = vmatprep.subr.bf16.mxu0 0
        %554 = vmatpush2.bf16.xpose.msra.mxu0 0
        %555 = vmatprep.subr.bf16.mxu0 0
        %556 = vmatpush2.bf16.xpose.msra.mxu0 0
        %557 = vmatprep.mubr.bf16.mxu0 0
        %558 = vmatmul.mubr.bf16.gmra.mxu0 %v478
        %v559 = vpop.f32.mrf.mxu0
        %v560 = vadd.f32 0.0, %v559
        %v561 = vpop.f32.mrf.mxu0
        %v562 = vpop.f32.mrf.mxu0
        %v563 = vadd.f32 0.0, %v562
        %v564 = vpop.f32.mrf.mxu0
        %565 = vmatprep.mubr.bf16.mxu0 0
        %566 = vmatmul.mubr.bf16.gmra.mxu0 %v481
        %v567 = vpop.f32.mrf.mxu0
        %v568 = vadd.f32 0.0, %v567
        %v569 = vpop.f32.mrf.mxu0
        %v570 = vpop.f32.mrf.mxu0
        %v571 = vadd.f32 0.0, %v570
        %v572 = vpop.f32.mrf.mxu0
        %573 = vmatprep.mubr.bf16.mxu0 0
        %574 = vmatmul.mubr.bf16.gmra.mxu0 %v484
        %v575 = vpop.f32.mrf.mxu0
        %v576 = vadd.f32 0.0, %v575
        %v577 = vpop.f32.mrf.mxu0
        %v578 = vpop.f32.mrf.mxu0
        %v579 = vadd.f32 0.0, %v578
        %v580 = vpop.f32.mrf.mxu0
        %581 = vmatprep.mubr.bf16.mxu0 0
        %582 = vmatmul.mubr.bf16.gmra.mxu0 %v487
        %v583 = vpop.f32.mrf.mxu0
        %v584 = vadd.f32 0.0, %v583
        %v585 = vpop.f32.mrf.mxu0
        %v586 = vpop.f32.mrf.mxu0
        %v587 = vadd.f32 0.0, %v586
        %v588 = vpop.f32.mrf.mxu0
        %589 = vmatprep.mubr.bf16.mxu0 0
        %590 = vmatmul.mubr.bf16.gmra.mxu0 %v490
        %v591 = vpop.f32.mrf.mxu0
        %v592 = vadd.f32 0.0, %v591
        %v593 = vpop.f32.mrf.mxu0
        %v594 = vpop.f32.mrf.mxu0
        %v595 = vadd.f32 0.0, %v594
        %v596 = vpop.f32.mrf.mxu0
        %597 = vmatprep.mubr.bf16.mxu0 0
        %598 = vmatmul.mubr.bf16.gmra.mxu0 %v493
        %v599 = vpop.f32.mrf.mxu0
        %v600 = vadd.f32 0.0, %v599
        %v601 = vpop.f32.mrf.mxu0
        %v602 = vpop.f32.mrf.mxu0
        %v603 = vadd.f32 0.0, %v602
        %v604 = vpop.f32.mrf.mxu0
        %605 = vmatprep.mubr.bf16.mxu0 0
        %606 = vmatmul.mubr.bf16.gmra.mxu0 %v496
        %v607 = vpop.f32.mrf.mxu0
        %v608 = vadd.f32 0.0, %v607
        %v609 = vpop.f32.mrf.mxu0
        %v610 = vpop.f32.mrf.mxu0
        %v611 = vadd.f32 0.0, %v610
        %v612 = vpop.f32.mrf.mxu0
        %613 = vmatprep.mubr.bf16.mxu0 0
        %614 = vmatmul.mubr.bf16.gmra.mxu0 %v499
        %v615 = vpop.f32.mrf.mxu0
        %v616 = vadd.f32 0.0, %v615
        %v617 = vpop.f32.mrf.mxu0
        %v618 = vpop.f32.mrf.mxu0
        %v619 = vadd.f32 0.0, %v618
        %v620 = vpop.f32.mrf.mxu0
        %621 = vdwg.mxu0
        %v622 = vmul.f32 %v560, 0.05103104
        %v623 = vmul.f32 %v563, 0.05103104
        %v624 = vmul.f32 %v568, 0.05103104
        %v625 = vmul.f32 %v571, 0.05103104
        %v626 = vmul.f32 %v576, 0.05103104
        %v627 = vmul.f32 %v579, 0.05103104
        %v628 = vmul.f32 %v584, 0.05103104
        %v629 = vmul.f32 %v587, 0.05103104
        %v630 = vmul.f32 %v592, 0.05103104
        %v631 = vmul.f32 %v595, 0.05103104
        %v632 = vmul.f32 %v600, 0.05103104
        %v633 = vmul.f32 %v603, 0.05103104
        %v634 = vmul.f32 %v608, 0.05103104
        %v635 = vmul.f32 %v611, 0.05103104
        %v636 = vmul.f32 %v616, 0.05103104
        %v637 = vmul.f32 %v619, 0.05103104
        %s638 = smul.u32 %s20, 128
        %v639 = vlaneseq
        %v640 = vshrl.u32 %v639, 7
        %v641 = vadd.s32 %v640, 8
        %v642 = vadd.s32 %v640, 16
        %v643 = vadd.s32 %v640, 24
        %v644 = vadd.s32 %v640, 32
        %v645 = vadd.s32 %v640, 40
        %v646 = vadd.s32 %v640, 48
        %v647 = vadd.s32 %v640, 56
        %v648 = vadd.s32 %v640, 64
        %v649 = vadd.s32 %v640, 72
        %v650 = vadd.s32 %v640, 80
        %v651 = vadd.s32 %v640, 88
        %v652 = vadd.s32 %v640, 96
        %v653 = vadd.s32 %v640, 104
        %v654 = vadd.s32 %v640, 112
        %v655 = vadd.s32 %v640, 120
        %v656 = vstv %s638
        %v657 = vadd.s32 %v656, %v640
        %v658 = vadd.s32 %v656, %v641
        %v659 = vadd.s32 %v656, %v642
        %v660 = vadd.s32 %v656, %v643
        %v661 = vadd.s32 %v656, %v644
        %v662 = vadd.s32 %v656, %v645
        %v663 = vadd.s32 %v656, %v646
        %v664 = vadd.s32 %v656, %v647
        %v665 = vadd.s32 %v656, %v648
        %v666 = vadd.s32 %v656, %v649
        %v667 = vadd.s32 %v656, %v650
        %v668 = vadd.s32 %v656, %v651
        %v669 = vadd.s32 %v656, %v652
        %v670 = vadd.s32 %v656, %v653
        %v671 = vadd.s32 %v656, %v654
        %v672 = vadd.s32 %v656, %v655
        %s673 = smul.u32 %s21, 128
        %v674 = vlaneseq
        %v675 = vand.u32 %v674, 127
        %v676 = vstv %s673
        %v677 = vadd.s32 %v676, %v675
        %vm678 = vcmp.ge.s32.totalorder %v657, %v677
        %vm679 = vcmp.ge.s32.totalorder %v658, %v677
        %vm680 = vcmp.ge.s32.totalorder %v659, %v677
        %vm681 = vcmp.ge.s32.totalorder %v660, %v677
        %vm682 = vcmp.ge.s32.totalorder %v661, %v677
        %vm683 = vcmp.ge.s32.totalorder %v662, %v677
        %vm684 = vcmp.ge.s32.totalorder %v663, %v677
        %vm685 = vcmp.ge.s32.totalorder %v664, %v677
        %vm686 = vcmp.ge.s32.totalorder %v665, %v677
        %vm687 = vcmp.ge.s32.totalorder %v666, %v677
        %vm688 = vcmp.ge.s32.totalorder %v667, %v677
        %vm689 = vcmp.ge.s32.totalorder %v668, %v677
        %vm690 = vcmp.ge.s32.totalorder %v669, %v677
        %vm691 = vcmp.ge.s32.totalorder %v670, %v677
        %vm692 = vcmp.ge.s32.totalorder %v671, %v677
        %vm693 = vcmp.ge.s32.totalorder %v672, %v677
        %v694 = vsel %vm678, %v622, -1e+30
        %v695 = vsel %vm679, %v623, -1e+30
        %v696 = vsel %vm680, %v624, -1e+30
        %v697 = vsel %vm681, %v625, -1e+30
        %v698 = vsel %vm682, %v626, -1e+30
        %v699 = vsel %vm683, %v627, -1e+30
        %v700 = vsel %vm684, %v628, -1e+30
        %v701 = vsel %vm685, %v629, -1e+30
        %v702 = vsel %vm686, %v630, -1e+30
        %v703 = vsel %vm687, %v631, -1e+30
        %v704 = vsel %vm688, %v632, -1e+30
        %v705 = vsel %vm689, %v633, -1e+30
        %v706 = vsel %vm690, %v634, -1e+30
        %v707 = vsel %vm691, %v635, -1e+30
        %v708 = vsel %vm692, %v636, -1e+30
        %v709 = vsel %vm693, %v637, -1e+30
        %v710 = vld [vmem:[#allocation2] sm:$0xff]
        %v711 = vld [vmem:[#allocation2 + $0x8] sm:$0xff]
        %v712 = vld [vmem:[#allocation2 + $0x10] sm:$0xff]
        %v713 = vld [vmem:[#allocation2 + $0x18] sm:$0xff]
        %v714 = vld [vmem:[#allocation2 + $0x20] sm:$0xff]
        %v715 = vld [vmem:[#allocation2 + $0x28] sm:$0xff]
        %v716 = vld [vmem:[#allocation2 + $0x30] sm:$0xff]
        %v717 = vld [vmem:[#allocation2 + $0x38] sm:$0xff]
        %v718 = vld [vmem:[#allocation2 + $0x40] sm:$0xff]
        %v719 = vld [vmem:[#allocation2 + $0x48] sm:$0xff]
        %v720 = vld [vmem:[#allocation2 + $0x50] sm:$0xff]
        %v721 = vld [vmem:[#allocation2 + $0x58] sm:$0xff]
        %v722 = vld [vmem:[#allocation2 + $0x60] sm:$0xff]
        %v723 = vld [vmem:[#allocation2 + $0x68] sm:$0xff]
        %v724 = vld [vmem:[#allocation2 + $0x70] sm:$0xff]
        %v725 = vld [vmem:[#allocation2 + $0x78] sm:$0xff]
        %726 = vmax.xlane.f32.xlu0 %v694
        %v727 = vpop.xlane.xlu0 %726
        %728 = vmax.xlane.f32.xlu0 %v695
        %v729 = vpop.xlane.xlu0 %728
        %730 = vmax.xlane.f32.xlu0 %v696
        %v731 = vpop.xlane.xlu0 %730
        %732 = vmax.xlane.f32.xlu0 %v697
        %v733 = vpop.xlane.xlu0 %732
        %734 = vmax.xlane.f32.xlu0 %v698
        %v735 = vpop.xlane.xlu0 %734
        %736 = vmax.xlane.f32.xlu0 %v699
        %v737 = vpop.xlane.xlu0 %736
        %738 = vmax.xlane.f32.xlu0 %v700
        %v739 = vpop.xlane.xlu0 %738
        %740 = vmax.xlane.f32.xlu0 %v701
        %v741 = vpop.xlane.xlu0 %740
        %742 = vmax.xlane.f32.xlu0 %v702
        %v743 = vpop.xlane.xlu0 %742
        %744 = vmax.xlane.f32.xlu0 %v703
        %v745 = vpop.xlane.xlu0 %744
        %746 = vmax.xlane.f32.xlu0 %v704
        %v747 = vpop.xlane.xlu0 %746
        %748 = vmax.xlane.f32.xlu0 %v705
        %v749 = vpop.xlane.xlu0 %748
        %750 = vmax.xlane.f32.xlu0 %v706
        %v751 = vpop.xlane.xlu0 %750
        %752 = vmax.xlane.f32.xlu0 %v707
        %v753 = vpop.xlane.xlu0 %752
        %754 = vmax.xlane.f32.xlu0 %v708
        %v755 = vpop.xlane.xlu0 %754
        %756 = vmax.xlane.f32.xlu0 %v709
        %v757 = vpop.xlane.xlu0 %756
        %v758 = vmax.f32 %v710, %v727
        %v759 = vmax.f32 %v711, %v729
        %v760 = vmax.f32 %v712, %v731
        %v761 = vmax.f32 %v713, %v733
        %v762 = vmax.f32 %v714, %v735
        %v763 = vmax.f32 %v715, %v737
        %v764 = vmax.f32 %v716, %v739
        %v765 = vmax.f32 %v717, %v741
        %v766 = vmax.f32 %v718, %v743
        %v767 = vmax.f32 %v719, %v745
        %v768 = vmax.f32 %v720, %v747
        %v769 = vmax.f32 %v721, %v749
        %v770 = vmax.f32 %v722, %v751
        %v771 = vmax.f32 %v723, %v753
        %v772 = vmax.f32 %v724, %v755
        %v773 = vmax.f32 %v725, %v757
        %v774 = vsub.f32 %v710, %v758
        %v775 = vsub.f32 %v711, %v759
        %v776 = vsub.f32 %v712, %v760
        %v777 = vsub.f32 %v713, %v761
        %v778 = vsub.f32 %v714, %v762
        %v779 = vsub.f32 %v715, %v763
        %v780 = vsub.f32 %v716, %v764
        %v781 = vsub.f32 %v717, %v765
        %v782 = vsub.f32 %v718, %v766
        %v783 = vsub.f32 %v719, %v767
        %v784 = vsub.f32 %v720, %v768
        %v785 = vsub.f32 %v721, %v769
        %v786 = vsub.f32 %v722, %v770
        %v787 = vsub.f32 %v723, %v771
        %v788 = vsub.f32 %v724, %v772
        %v789 = vsub.f32 %v725, %v773
        %v790 = vmul.f32 %v774, 1.442695
        %v791 = vpow.pop %v790
        %v792 = vmul.f32 %v775, 1.442695
        %v793 = vpow.pop %v792
        %v794 = vmul.f32 %v776, 1.442695
        %v795 = vpow.pop %v794
        %v796 = vmul.f32 %v777, 1.442695
        %v797 = vpow.pop %v796
        %v798 = vmul.f32 %v778, 1.442695
        %v799 = vpow.pop %v798
        %v800 = vmul.f32 %v779, 1.442695
        %v801 = vpow.pop %v800
        %v802 = vmul.f32 %v780, 1.442695
        %v803 = vpow.pop %v802
        %v804 = vmul.f32 %v781, 1.442695
        %v805 = vpow.pop %v804
        %v806 = vmul.f32 %v782, 1.442695
        %v807 = vpow.pop %v806
        %v808 = vmul.f32 %v783, 1.442695
        %v809 = vpow.pop %v808
        %v810 = vmul.f32 %v784, 1.442695
        %v811 = vpow.pop %v810
        %v812 = vmul.f32 %v785, 1.442695
        %v813 = vpow.pop %v812
        %v814 = vmul.f32 %v786, 1.442695
        %v815 = vpow.pop %v814
        %v816 = vmul.f32 %v787, 1.442695
        %v817 = vpow.pop %v816
        %v818 = vmul.f32 %v788, 1.442695
        %v819 = vpow.pop %v818
        %v820 = vmul.f32 %v789, 1.442695
        %v821 = vpow.pop %v820
        %823 = vset.pattern.permute.xlu0 0
        %824 = vperm.xlu0 %823, %v758
        %v825 = vpop.permute.xlu0 %824
        %828 = vset.pattern.permute.xlu0 0
        %829 = vperm.xlu0 %828, %v759
        %v830 = vpop.permute.xlu0 %829
        %833 = vset.pattern.permute.xlu0 0
        %834 = vperm.xlu0 %833, %v760
        %v835 = vpop.permute.xlu0 %834
        %838 = vset.pattern.permute.xlu0 0
        %839 = vperm.xlu0 %838, %v761
        %v840 = vpop.permute.xlu0 %839
        %843 = vset.pattern.permute.xlu0 0
        %844 = vperm.xlu0 %843, %v762
        %v845 = vpop.permute.xlu0 %844
        %848 = vset.pattern.permute.xlu0 0
        %849 = vperm.xlu0 %848, %v763
        %v850 = vpop.permute.xlu0 %849
        %853 = vset.pattern.permute.xlu0 0
        %854 = vperm.xlu0 %853, %v764
        %v855 = vpop.permute.xlu0 %854
        %858 = vset.pattern.permute.xlu0 0
        %859 = vperm.xlu0 %858, %v765
        %v860 = vpop.permute.xlu0 %859
        %863 = vset.pattern.permute.xlu0 0
        %864 = vperm.xlu0 %863, %v766
        %v865 = vpop.permute.xlu0 %864
        %868 = vset.pattern.permute.xlu0 0
        %869 = vperm.xlu0 %868, %v767
        %v870 = vpop.permute.xlu0 %869
        %873 = vset.pattern.permute.xlu0 0
        %874 = vperm.xlu0 %873, %v768
        %v875 = vpop.permute.xlu0 %874
        %878 = vset.pattern.permute.xlu0 0
        %879 = vperm.xlu0 %878, %v769
        %v880 = vpop.permute.xlu0 %879
        %883 = vset.pattern.permute.xlu0 0
        %884 = vperm.xlu0 %883, %v770
        %v885 = vpop.permute.xlu0 %884
        %888 = vset.pattern.permute.xlu0 0
        %889 = vperm.xlu0 %888, %v771
        %v890 = vpop.permute.xlu0 %889
        %893 = vset.pattern.permute.xlu0 0
        %894 = vperm.xlu0 %893, %v772
        %v895 = vpop.permute.xlu0 %894
        %898 = vset.pattern.permute.xlu0 0
        %899 = vperm.xlu0 %898, %v773
        %v900 = vpop.permute.xlu0 %899
        %v902 = vsub.f32 %v694, %v825
        %v903 = vsub.f32 %v695, %v830
        %v904 = vsub.f32 %v696, %v835
        %v905 = vsub.f32 %v697, %v840
        %v906 = vsub.f32 %v698, %v845
        %v907 = vsub.f32 %v699, %v850
        %v908 = vsub.f32 %v700, %v855
        %v909 = vsub.f32 %v701, %v860
        %v910 = vsub.f32 %v702, %v865
        %v911 = vsub.f32 %v703, %v870
        %v912 = vsub.f32 %v704, %v875
        %v913 = vsub.f32 %v705, %v880
        %v914 = vsub.f32 %v706, %v885
        %v915 = vsub.f32 %v707, %v890
        %v916 = vsub.f32 %v708, %v895
        %v917 = vsub.f32 %v709, %v900
        %v918 = vmul.f32 %v902, 1.442695
        %v919 = vpow.pop %v918
        %v920 = vmul.f32 %v903, 1.442695
        %v921 = vpow.pop %v920
        %v922 = vmul.f32 %v904, 1.442695
        %v923 = vpow.pop %v922
        %v924 = vmul.f32 %v905, 1.442695
        %v925 = vpow.pop %v924
        %v926 = vmul.f32 %v906, 1.442695
        %v927 = vpow.pop %v926
        %v928 = vmul.f32 %v907, 1.442695
        %v929 = vpow.pop %v928
        %v930 = vmul.f32 %v908, 1.442695
        %v931 = vpow.pop %v930
        %v932 = vmul.f32 %v909, 1.442695
        %v933 = vpow.pop %v932
        %v934 = vmul.f32 %v910, 1.442695
        %v935 = vpow.pop %v934
        %v936 = vmul.f32 %v911, 1.442695
        %v937 = vpow.pop %v936
        %v938 = vmul.f32 %v912, 1.442695
        %v939 = vpow.pop %v938
        %v940 = vmul.f32 %v913, 1.442695
        %v941 = vpow.pop %v940
        %v942 = vmul.f32 %v914, 1.442695
        %v943 = vpow.pop %v942
        %v944 = vmul.f32 %v915, 1.442695
        %v945 = vpow.pop %v944
        %v946 = vmul.f32 %v916, 1.442695
        %v947 = vpow.pop %v946
        %v948 = vmul.f32 %v917, 1.442695
        %v949 = vpow.pop %v948
        %v950 = vld [vmem:[#allocation3] sm:$0xff]
        %v951 = vld [vmem:[#allocation3 + $0x8] sm:$0xff]
        %v952 = vld [vmem:[#allocation3 + $0x10] sm:$0xff]
        %v953 = vld [vmem:[#allocation3 + $0x18] sm:$0xff]
        %v954 = vld [vmem:[#allocation3 + $0x20] sm:$0xff]
        %v955 = vld [vmem:[#allocation3 + $0x28] sm:$0xff]
        %v956 = vld [vmem:[#allocation3 + $0x30] sm:$0xff]
        %v957 = vld [vmem:[#allocation3 + $0x38] sm:$0xff]
        %v958 = vld [vmem:[#allocation3 + $0x40] sm:$0xff]
        %v959 = vld [vmem:[#allocation3 + $0x48] sm:$0xff]
        %v960 = vld [vmem:[#allocation3 + $0x50] sm:$0xff]
        %v961 = vld [vmem:[#allocation3 + $0x58] sm:$0xff]
        %v962 = vld [vmem:[#allocation3 + $0x60] sm:$0xff]
        %v963 = vld [vmem:[#allocation3 + $0x68] sm:$0xff]
        %v964 = vld [vmem:[#allocation3 + $0x70] sm:$0xff]
        %v965 = vld [vmem:[#allocation3 + $0x78] sm:$0xff]
        %v966 = vmul.f32 %v791, %v950
        %v967 = vmul.f32 %v793, %v951
        %v968 = vmul.f32 %v795, %v952
        %v969 = vmul.f32 %v797, %v953
        %v970 = vmul.f32 %v799, %v954
        %v971 = vmul.f32 %v801, %v955
        %v972 = vmul.f32 %v803, %v956
        %v973 = vmul.f32 %v805, %v957
        %v974 = vmul.f32 %v807, %v958
        %v975 = vmul.f32 %v809, %v959
        %v976 = vmul.f32 %v811, %v960
        %v977 = vmul.f32 %v813, %v961
        %v978 = vmul.f32 %v815, %v962
        %v979 = vmul.f32 %v817, %v963
        %v980 = vmul.f32 %v819, %v964
        %v981 = vmul.f32 %v821, %v965
        %982 = vadd.xlane.f32.xlu0 %v919
        %v983 = vpop.xlane.xlu0 %982
        %984 = vadd.xlane.f32.xlu0 %v921
        %v985 = vpop.xlane.xlu0 %984
        %986 = vadd.xlane.f32.xlu0 %v923
        %v987 = vpop.xlane.xlu0 %986
        %988 = vadd.xlane.f32.xlu0 %v925
        %v989 = vpop.xlane.xlu0 %988
        %990 = vadd.xlane.f32.xlu0 %v927
        %v991 = vpop.xlane.xlu0 %990
        %992 = vadd.xlane.f32.xlu0 %v929
        %v993 = vpop.xlane.xlu0 %992
        %994 = vadd.xlane.f32.xlu0 %v931
        %v995 = vpop.xlane.xlu0 %994
        %996 = vadd.xlane.f32.xlu0 %v933
        %v997 = vpop.xlane.xlu0 %996
        %998 = vadd.xlane.f32.xlu0 %v935
        %v999 = vpop.xlane.xlu0 %998
        %1000 = vadd.xlane.f32.xlu0 %v937
        %v1001 = vpop.xlane.xlu0 %1000
        %1002 = vadd.xlane.f32.xlu0 %v939
        %v1003 = vpop.xlane.xlu0 %1002
        %1004 = vadd.xlane.f32.xlu0 %v941
        %v1005 = vpop.xlane.xlu0 %1004
        %1006 = vadd.xlane.f32.xlu0 %v943
        %v1007 = vpop.xlane.xlu0 %1006
        %1008 = vadd.xlane.f32.xlu0 %v945
        %v1009 = vpop.xlane.xlu0 %1008
        %1010 = vadd.xlane.f32.xlu0 %v947
        %v1011 = vpop.xlane.xlu0 %1010
        %1012 = vadd.xlane.f32.xlu0 %v949
        %v1013 = vpop.xlane.xlu0 %1012
        %v1014 = vadd.f32 %v966, %v983
        %v1015 = vadd.f32 %v967, %v985
        %v1016 = vadd.f32 %v968, %v987
        %v1017 = vadd.f32 %v969, %v989
        %v1018 = vadd.f32 %v970, %v991
        %v1019 = vadd.f32 %v971, %v993
        %v1020 = vadd.f32 %v972, %v995
        %v1021 = vadd.f32 %v973, %v997
        %v1022 = vadd.f32 %v974, %v999
        %v1023 = vadd.f32 %v975, %v1001
        %v1024 = vadd.f32 %v976, %v1003
        %v1025 = vadd.f32 %v977, %v1005
        %v1026 = vadd.f32 %v978, %v1007
        %v1027 = vadd.f32 %v979, %v1009
        %v1028 = vadd.f32 %v980, %v1011
        %v1029 = vadd.f32 %v981, %v1013
        %vm1030 = vcmask 7168
        %1031 = vst.msk [vmem:[#allocation3] sm:$0xff] %vm1030, %v1014
        %1032 = vst.msk [vmem:[#allocation3 + $0x8] sm:$0xff] %vm1030, %v1015
        %1033 = vst.msk [vmem:[#allocation3 + $0x10] sm:$0xff] %vm1030, %v1016
        %1034 = vst.msk [vmem:[#allocation3 + $0x18] sm:$0xff] %vm1030, %v1017
        %1035 = vst.msk [vmem:[#allocation3 + $0x20] sm:$0xff] %vm1030, %v1018
        %1036 = vst.msk [vmem:[#allocation3 + $0x28] sm:$0xff] %vm1030, %v1019
        %1037 = vst.msk [vmem:[#allocation3 + $0x30] sm:$0xff] %vm1030, %v1020
        %1038 = vst.msk [vmem:[#allocation3 + $0x38] sm:$0xff] %vm1030, %v1021
        %1039 = vst.msk [vmem:[#allocation3 + $0x40] sm:$0xff] %vm1030, %v1022
        %1040 = vst.msk [vmem:[#allocation3 + $0x48] sm:$0xff] %vm1030, %v1023
        %1041 = vst.msk [vmem:[#allocation3 + $0x50] sm:$0xff] %vm1030, %v1024
        %1042 = vst.msk [vmem:[#allocation3 + $0x58] sm:$0xff] %vm1030, %v1025
        %1043 = vst.msk [vmem:[#allocation3 + $0x60] sm:$0xff] %vm1030, %v1026
        %1044 = vst.msk [vmem:[#allocation3 + $0x68] sm:$0xff] %vm1030, %v1027
        %1045 = vst.msk [vmem:[#allocation3 + $0x70] sm:$0xff] %vm1030, %v1028
        %1046 = vst.msk [vmem:[#allocation3 + $0x78] sm:$0xff] %vm1030, %v1029
        %v1047 = vld [vmem:[#allocation4] sm:$0xff]
        %v1048 = vld [vmem:[#allocation4 + $0x8] sm:$0xff]
        %v1049 = vld [vmem:[#allocation4 + $0x10] sm:$0xff]
        %v1050 = vld [vmem:[#allocation4 + $0x18] sm:$0xff]
        %v1051 = vld [vmem:[#allocation4 + $0x20] sm:$0xff]
        %v1052 = vld [vmem:[#allocation4 + $0x28] sm:$0xff]
        %v1053 = vld [vmem:[#allocation4 + $0x30] sm:$0xff]
        %v1054 = vld [vmem:[#allocation4 + $0x38] sm:$0xff]
        %v1055 = vld [vmem:[#allocation4 + $0x40] sm:$0xff]
        %v1056 = vld [vmem:[#allocation4 + $0x48] sm:$0xff]
        %v1057 = vld [vmem:[#allocation4 + $0x50] sm:$0xff]
        %v1058 = vld [vmem:[#allocation4 + $0x58] sm:$0xff]
        %v1059 = vld [vmem:[#allocation4 + $0x60] sm:$0xff]
        %v1060 = vld [vmem:[#allocation4 + $0x68] sm:$0xff]
        %v1061 = vld [vmem:[#allocation4 + $0x70] sm:$0xff]
        %v1062 = vld [vmem:[#allocation4 + $0x78] sm:$0xff]
        %1064 = vset.pattern.permute.xlu0 0
        %1065 = vperm.xlu0 %1064, %v791
        %v1066 = vpop.permute.xlu0 %1065
        %1069 = vset.pattern.permute.xlu0 0
        %1070 = vperm.xlu0 %1069, %v793
        %v1071 = vpop.permute.xlu0 %1070
        %1074 = vset.pattern.permute.xlu0 0
        %1075 = vperm.xlu0 %1074, %v795
        %v1076 = vpop.permute.xlu0 %1075
        %1079 = vset.pattern.permute.xlu0 0
        %1080 = vperm.xlu0 %1079, %v797
        %v1081 = vpop.permute.xlu0 %1080
        %1084 = vset.pattern.permute.xlu0 0
        %1085 = vperm.xlu0 %1084, %v799
        %v1086 = vpop.permute.xlu0 %1085
        %1089 = vset.pattern.permute.xlu0 0
        %1090 = vperm.xlu0 %1089, %v801
        %v1091 = vpop.permute.xlu0 %1090
        %1094 = vset.pattern.permute.xlu0 0
        %1095 = vperm.xlu0 %1094, %v803
        %v1096 = vpop.permute.xlu0 %1095
        %1099 = vset.pattern.permute.xlu0 0
        %1100 = vperm.xlu0 %1099, %v805
        %v1101 = vpop.permute.xlu0 %1100
        %1104 = vset.pattern.permute.xlu0 0
        %1105 = vperm.xlu0 %1104, %v807
        %v1106 = vpop.permute.xlu0 %1105
        %1109 = vset.pattern.permute.xlu0 0
        %1110 = vperm.xlu0 %1109, %v809
        %v1111 = vpop.permute.xlu0 %1110
        %1114 = vset.pattern.permute.xlu0 0
        %1115 = vperm.xlu0 %1114, %v811
        %v1116 = vpop.permute.xlu0 %1115
        %1119 = vset.pattern.permute.xlu0 0
        %1120 = vperm.xlu0 %1119, %v813
        %v1121 = vpop.permute.xlu0 %1120
        %1124 = vset.pattern.permute.xlu0 0
        %1125 = vperm.xlu0 %1124, %v815
        %v1126 = vpop.permute.xlu0 %1125
        %1129 = vset.pattern.permute.xlu0 0
        %1130 = vperm.xlu0 %1129, %v817
        %v1131 = vpop.permute.xlu0 %1130
        %1134 = vset.pattern.permute.xlu0 0
        %1135 = vperm.xlu0 %1134, %v819
        %v1136 = vpop.permute.xlu0 %1135
        %1139 = vset.pattern.permute.xlu0 0
        %1140 = vperm.xlu0 %1139, %v821
        %v1141 = vpop.permute.xlu0 %1140
        %v1143 = vmul.f32 %v1066, %v1047
        %v1144 = vmul.f32 %v1071, %v1048
        %v1145 = vmul.f32 %v1076, %v1049
        %v1146 = vmul.f32 %v1081, %v1050
        %v1147 = vmul.f32 %v1086, %v1051
        %v1148 = vmul.f32 %v1091, %v1052
        %v1149 = vmul.f32 %v1096, %v1053
        %v1150 = vmul.f32 %v1101, %v1054
        %v1151 = vmul.f32 %v1106, %v1055
        %v1152 = vmul.f32 %v1111, %v1056
        %v1153 = vmul.f32 %v1116, %v1057
        %v1154 = vmul.f32 %v1121, %v1058
        %v1155 = vmul.f32 %v1126, %v1059
        %v1156 = vmul.f32 %v1131, %v1060
        %v1157 = vmul.f32 %v1136, %v1061
        %v1158 = vmul.f32 %v1141, %v1062
        %v1159 = vpack.c.bf16 %v921, %v919
        %v1160 = vpack.c.bf16 %v925, %v923
        %v1161 = vpack.c.bf16 %v929, %v927
        %v1162 = vpack.c.bf16 %v933, %v931
        %v1163 = vpack.c.bf16 %v937, %v935
        %v1164 = vpack.c.bf16 %v941, %v939
        %v1165 = vpack.c.bf16 %v945, %v943
        %v1166 = vpack.c.bf16 %v949, %v947
        %v1183 = vunpack.c.l.b16 %v380
        %v1184 = vunpack.c.l.b16 %v381
        %v1185 = vunpack.c.l.b16 %v382
        %v1186 = vunpack.c.l.b16 %v383
        %v1187 = vunpack.c.l.b16 %v384
        %v1188 = vunpack.c.l.b16 %v385
        %v1189 = vunpack.c.l.b16 %v386
        %v1190 = vunpack.c.l.b16 %v387
        %v1191 = vunpack.c.l.b16 %v388
        %v1192 = vunpack.c.l.b16 %v389
        %v1193 = vunpack.c.l.b16 %v390
        %v1194 = vunpack.c.l.b16 %v391
        %v1195 = vunpack.c.l.b16 %v392
        %v1196 = vunpack.c.l.b16 %v393
        %v1197 = vunpack.c.l.b16 %v394
        %v1198 = vunpack.c.l.b16 %v395
        %v1199 = vpack.c.b16 %v1184, %v1183
        %v1200 = vpack.c.b16 %v1186, %v1185
        %v1201 = vpack.c.b16 %v1188, %v1187
        %v1202 = vpack.c.b16 %v1190, %v1189
        %v1203 = vpack.c.b16 %v1192, %v1191
        %v1204 = vpack.c.b16 %v1194, %v1193
        %v1205 = vpack.c.b16 %v1196, %v1195
        %v1206 = vpack.c.b16 %v1198, %v1197
        %1215 = vmatprep.subr.bf16.mxu0 0
        %1216 = vmatpush1.bf16.msra.mxu0 %v1206
        %1217 = vmatprep.subr.bf16.mxu0 0
        %1218 = vmatpush1.bf16.msra.mxu0 %v1205
        %1219 = vmatprep.subr.bf16.mxu0 0
        %1220 = vmatpush1.bf16.msra.mxu0 %v1204
        %1221 = vmatprep.subr.bf16.mxu0 0
        %1222 = vmatpush1.bf16.msra.mxu0 %v1203
        %1223 = vmatprep.subr.bf16.mxu0 0
        %1224 = vmatpush1.bf16.msra.mxu0 %v1202
        %1225 = vmatprep.subr.bf16.mxu0 0
        %1226 = vmatpush1.bf16.msra.mxu0 %v1201
        %1227 = vmatprep.subr.bf16.mxu0 0
        %1228 = vmatpush1.bf16.msra.mxu0 %v1200
        %1229 = vmatprep.subr.bf16.mxu0 0
        %1230 = vmatpush1.bf16.msra.mxu0 %v1199
        %1231 = vmatprep.subr.bf16.mxu0 0
        %1232 = vmatpush2.bf16.msra.mxu0 0
        %1233 = vmatprep.subr.bf16.mxu0 0
        %1234 = vmatpush2.bf16.msra.mxu0 0
        %1235 = vmatprep.subr.bf16.mxu0 0
        %1236 = vmatpush2.bf16.msra.mxu0 0
        %1237 = vmatprep.subr.bf16.mxu0 0
        %1238 = vmatpush2.bf16.msra.mxu0 0
        %1239 = vmatprep.subr.bf16.mxu0 0
        %1240 = vmatpush2.bf16.msra.mxu0 0
        %1241 = vmatprep.subr.bf16.mxu0 0
        %1242 = vmatpush2.bf16.msra.mxu0 0
        %1243 = vmatprep.subr.bf16.mxu0 0
        %1244 = vmatpush2.bf16.msra.mxu0 0
        %1245 = vmatprep.subr.bf16.mxu0 0
        %1246 = vmatpush2.bf16.msra.mxu0 0
        %1247 = vmatprep.mubr.bf16.mxu0 0
        %1248 = vmatmul.mubr.bf16.gmra.mxu0 %v1159
        %v1249 = vpop.f32.mrf.mxu0
        %v1250 = vadd.f32 0.0, %v1249
        %v1251 = vpop.f32.mrf.mxu0
        %v1252 = vpop.f32.mrf.mxu0
        %v1253 = vadd.f32 0.0, %v1252
        %v1254 = vpop.f32.mrf.mxu0
        %1255 = vmatprep.mubr.bf16.mxu0 0
        %1256 = vmatmul.mubr.bf16.gmra.mxu0 %v1160
        %v1257 = vpop.f32.mrf.mxu0
        %v1258 = vadd.f32 0.0, %v1257
        %v1259 = vpop.f32.mrf.mxu0
        %v1260 = vpop.f32.mrf.mxu0
        %v1261 = vadd.f32 0.0, %v1260
        %v1262 = vpop.f32.mrf.mxu0
        %1263 = vmatprep.mubr.bf16.mxu0 0
        %1264 = vmatmul.mubr.bf16.gmra.mxu0 %v1161
        %v1265 = vpop.f32.mrf.mxu0
        %v1266 = vadd.f32 0.0, %v1265
        %v1267 = vpop.f32.mrf.mxu0
        %v1268 = vpop.f32.mrf.mxu0
        %v1269 = vadd.f32 0.0, %v1268
        %v1270 = vpop.f32.mrf.mxu0
        %1271 = vmatprep.mubr.bf16.mxu0 0
        %1272 = vmatmul.mubr.bf16.gmra.mxu0 %v1162
        %v1273 = vpop.f32.mrf.mxu0
        %v1274 = vadd.f32 0.0, %v1273
        %v1275 = vpop.f32.mrf.mxu0
        %v1276 = vpop.f32.mrf.mxu0
        %v1277 = vadd.f32 0.0, %v1276
        %v1278 = vpop.f32.mrf.mxu0
        %1279 = vmatprep.mubr.bf16.mxu0 0
        %1280 = vmatmul.mubr.bf16.gmra.mxu0 %v1163
        %v1281 = vpop.f32.mrf.mxu0
        %v1282 = vadd.f32 0.0, %v1281
        %v1283 = vpop.f32.mrf.mxu0
        %v1284 = vpop.f32.mrf.mxu0
        %v1285 = vadd.f32 0.0, %v1284
        %v1286 = vpop.f32.mrf.mxu0
        %1287 = vmatprep.mubr.bf16.mxu0 0
        %1288 = vmatmul.mubr.bf16.gmra.mxu0 %v1164
        %v1289 = vpop.f32.mrf.mxu0
        %v1290 = vadd.f32 0.0, %v1289
        %v1291 = vpop.f32.mrf.mxu0
        %v1292 = vpop.f32.mrf.mxu0
        %v1293 = vadd.f32 0.0, %v1292
        %v1294 = vpop.f32.mrf.mxu0
        %1295 = vmatprep.mubr.bf16.mxu0 0
        %1296 = vmatmul.mubr.bf16.gmra.mxu0 %v1165
        %v1297 = vpop.f32.mrf.mxu0
        %v1298 = vadd.f32 0.0, %v1297
        %v1299 = vpop.f32.mrf.mxu0
        %v1300 = vpop.f32.mrf.mxu0
        %v1301 = vadd.f32 0.0, %v1300
        %v1302 = vpop.f32.mrf.mxu0
        %1303 = vmatprep.mubr.bf16.mxu0 0
        %1304 = vmatmul.mubr.bf16.gmra.mxu0 %v1166
        %v1305 = vpop.f32.mrf.mxu0
        %v1306 = vadd.f32 0.0, %v1305
        %v1307 = vpop.f32.mrf.mxu0
        %v1308 = vpop.f32.mrf.mxu0
        %v1309 = vadd.f32 0.0, %v1308
        %v1310 = vpop.f32.mrf.mxu0
        %1311 = vdwg.mxu0
        %v1312 = vadd.f32 %v1143, %v1250
        %v1313 = vadd.f32 %v1144, %v1253
        %v1314 = vadd.f32 %v1145, %v1258
        %v1315 = vadd.f32 %v1146, %v1261
        %v1316 = vadd.f32 %v1147, %v1266
        %v1317 = vadd.f32 %v1148, %v1269
        %v1318 = vadd.f32 %v1149, %v1274
        %v1319 = vadd.f32 %v1150, %v1277
        %v1320 = vadd.f32 %v1151, %v1282
        %v1321 = vadd.f32 %v1152, %v1285
        %v1322 = vadd.f32 %v1153, %v1290
        %v1323 = vadd.f32 %v1154, %v1293
        %v1324 = vadd.f32 %v1155, %v1298
        %v1325 = vadd.f32 %v1156, %v1301
        %v1326 = vadd.f32 %v1157, %v1306
        %v1327 = vadd.f32 %v1158, %v1309
        %1328 = vst.msk [vmem:[#allocation4] sm:$0xff] %vm476, %v1312
        %1329 = vst.msk [vmem:[#allocation4 + $0x8] sm:$0xff] %vm476, %v1313
        %1330 = vst.msk [vmem:[#allocation4 + $0x10] sm:$0xff] %vm476, %v1314
        %1331 = vst.msk [vmem:[#allocation4 + $0x18] sm:$0xff] %vm476, %v1315
        %1332 = vst.msk [vmem:[#allocation4 + $0x20] sm:$0xff] %vm476, %v1316
        %1333 = vst.msk [vmem:[#allocation4 + $0x28] sm:$0xff] %vm476, %v1317
        %1334 = vst.msk [vmem:[#allocation4 + $0x30] sm:$0xff] %vm476, %v1318
        %1335 = vst.msk [vmem:[#allocation4 + $0x38] sm:$0xff] %vm476, %v1319
        %1336 = vst.msk [vmem:[#allocation4 + $0x40] sm:$0xff] %vm476, %v1320
        %1337 = vst.msk [vmem:[#allocation4 + $0x48] sm:$0xff] %vm476, %v1321
        %1338 = vst.msk [vmem:[#allocation4 + $0x50] sm:$0xff] %vm476, %v1322
        %1339 = vst.msk [vmem:[#allocation4 + $0x58] sm:$0xff] %vm476, %v1323
        %1340 = vst.msk [vmem:[#allocation4 + $0x60] sm:$0xff] %vm476, %v1324
        %1341 = vst.msk [vmem:[#allocation4 + $0x68] sm:$0xff] %vm476, %v1325
        %1342 = vst.msk [vmem:[#allocation4 + $0x70] sm:$0xff] %vm476, %v1326
        %1343 = vst.msk [vmem:[#allocation4 + $0x78] sm:$0xff] %vm476, %v1327
        %1344 = vst.msk [vmem:[#allocation2] sm:$0xff] %vm1030, %v758
        %1345 = vst.msk [vmem:[#allocation2 + $0x8] sm:$0xff] %vm1030, %v759
        %1346 = vst.msk [vmem:[#allocation2 + $0x10] sm:$0xff] %vm1030, %v760
        %1347 = vst.msk [vmem:[#allocation2 + $0x18] sm:$0xff] %vm1030, %v761
        %1348 = vst.msk [vmem:[#allocation2 + $0x20] sm:$0xff] %vm1030, %v762
        %1349 = vst.msk [vmem:[#allocation2 + $0x28] sm:$0xff] %vm1030, %v763
        %1350 = vst.msk [vmem:[#allocation2 + $0x30] sm:$0xff] %vm1030, %v764
        %1351 = vst.msk [vmem:[#allocation2 + $0x38] sm:$0xff] %vm1030, %v765
        %1352 = vst.msk [vmem:[#allocation2 + $0x40] sm:$0xff] %vm1030, %v766
        %1353 = vst.msk [vmem:[#allocation2 + $0x48] sm:$0xff] %vm1030, %v767
        %1354 = vst.msk [vmem:[#allocation2 + $0x50] sm:$0xff] %vm1030, %v768
        %1355 = vst.msk [vmem:[#allocation2 + $0x58] sm:$0xff] %vm1030, %v769
        %1356 = vst.msk [vmem:[#allocation2 + $0x60] sm:$0xff] %vm1030, %v770
        %1357 = vst.msk [vmem:[#allocation2 + $0x68] sm:$0xff] %vm1030, %v771
        %1358 = vst.msk [vmem:[#allocation2 + $0x70] sm:$0xff] %vm1030, %v772
        %1359 = vst.msk [vmem:[#allocation2 + $0x78] sm:$0xff] %vm1030, %v773
      $region40: #{head_forward.3} parent=31 // pred_fallthru
        _
      %p1360 = scmp.eq.s32.totalorder %s21, 1
      // Predicated region
      $region41: #{head_forward.3} parent=31 // pred_check
        %p1361 = pneg %p1360
      $region42: #{head_forward.3} parent=31 // pred_check_branch
        %1363 = sbr.rel (%p1361) target = $region44
      $region43: #{head_forward.3} parent=31 // pred_region
        %v1364 = vld [vmem:[#allocation4] sm:$0xff]
        %v1365 = vld [vmem:[#allocation4 + $0x8] sm:$0xff]
        %v1366 = vld [vmem:[#allocation4 + $0x10] sm:$0xff]
        %v1367 = vld [vmem:[#allocation4 + $0x18] sm:$0xff]
        %v1368 = vld [vmem:[#allocation4 + $0x20] sm:$0xff]
        %v1369 = vld [vmem:[#allocation4 + $0x28] sm:$0xff]
        %v1370 = vld [vmem:[#allocation4 + $0x30] sm:$0xff]
        %v1371 = vld [vmem:[#allocation4 + $0x38] sm:$0xff]
        %v1372 = vld [vmem:[#allocation4 + $0x40] sm:$0xff]
        %v1373 = vld [vmem:[#allocation4 + $0x48] sm:$0xff]
        %v1374 = vld [vmem:[#allocation4 + $0x50] sm:$0xff]
        %v1375 = vld [vmem:[#allocation4 + $0x58] sm:$0xff]
        %v1376 = vld [vmem:[#allocation4 + $0x60] sm:$0xff]
        %v1377 = vld [vmem:[#allocation4 + $0x68] sm:$0xff]
        %v1378 = vld [vmem:[#allocation4 + $0x70] sm:$0xff]
        %v1379 = vld [vmem:[#allocation4 + $0x78] sm:$0xff]
        %v1380 = vld [vmem:[#allocation3] sm:$0xff]
        %v1381 = vld [vmem:[#allocation3 + $0x8] sm:$0xff]
        %v1382 = vld [vmem:[#allocation3 + $0x10] sm:$0xff]
        %v1383 = vld [vmem:[#allocation3 + $0x18] sm:$0xff]
        %v1384 = vld [vmem:[#allocation3 + $0x20] sm:$0xff]
        %v1385 = vld [vmem:[#allocation3 + $0x28] sm:$0xff]
        %v1386 = vld [vmem:[#allocation3 + $0x30] sm:$0xff]
        %v1387 = vld [vmem:[#allocation3 + $0x38] sm:$0xff]
        %v1388 = vld [vmem:[#allocation3 + $0x40] sm:$0xff]
        %v1389 = vld [vmem:[#allocation3 + $0x48] sm:$0xff]
        %v1390 = vld [vmem:[#allocation3 + $0x50] sm:$0xff]
        %v1391 = vld [vmem:[#allocation3 + $0x58] sm:$0xff]
        %v1392 = vld [vmem:[#allocation3 + $0x60] sm:$0xff]
        %v1393 = vld [vmem:[#allocation3 + $0x68] sm:$0xff]
        %v1394 = vld [vmem:[#allocation3 + $0x70] sm:$0xff]
        %v1395 = vld [vmem:[#allocation3 + $0x78] sm:$0xff]
        %v1396 = vrcp.pop %v1380
        %v1397 = vrcp.pop %v1381
        %v1398 = vrcp.pop %v1382
        %v1399 = vrcp.pop %v1383
        %v1400 = vrcp.pop %v1384
        %v1401 = vrcp.pop %v1385
        %v1402 = vrcp.pop %v1386
        %v1403 = vrcp.pop %v1387
        %v1404 = vrcp.pop %v1388
        %v1405 = vrcp.pop %v1389
        %v1406 = vrcp.pop %v1390
        %v1407 = vrcp.pop %v1391
        %v1408 = vrcp.pop %v1392
        %v1409 = vrcp.pop %v1393
        %v1410 = vrcp.pop %v1394
        %v1411 = vrcp.pop %v1395
        %1413 = vset.pattern.permute.xlu0 0
        %1414 = vperm.xlu0 %1413, %v1396
        %v1415 = vpop.permute.xlu0 %1414
        %1418 = vset.pattern.permute.xlu0 0
        %1419 = vperm.xlu0 %1418, %v1397
        %v1420 = vpop.permute.xlu0 %1419
        %1423 = vset.pattern.permute.xlu0 0
        %1424 = vperm.xlu0 %1423, %v1398
        %v1425 = vpop.permute.xlu0 %1424
        %1428 = vset.pattern.permute.xlu0 0
        %1429 = vperm.xlu0 %1428, %v1399
        %v1430 = vpop.permute.xlu0 %1429
        %1433 = vset.pattern.permute.xlu0 0
        %1434 = vperm.xlu0 %1433, %v1400
        %v1435 = vpop.permute.xlu0 %1434
        %1438 = vset.pattern.permute.xlu0 0
        %1439 = vperm.xlu0 %1438, %v1401
        %v1440 = vpop.permute.xlu0 %1439
        %1443 = vset.pattern.permute.xlu0 0
        %1444 = vperm.xlu0 %1443, %v1402
        %v1445 = vpop.permute.xlu0 %1444
        %1448 = vset.pattern.permute.xlu0 0
        %1449 = vperm.xlu0 %1448, %v1403
        %v1450 = vpop.permute.xlu0 %1449
        %1453 = vset.pattern.permute.xlu0 0
        %1454 = vperm.xlu0 %1453, %v1404
        %v1455 = vpop.permute.xlu0 %1454
        %1458 = vset.pattern.permute.xlu0 0
        %1459 = vperm.xlu0 %1458, %v1405
        %v1460 = vpop.permute.xlu0 %1459
        %1463 = vset.pattern.permute.xlu0 0
        %1464 = vperm.xlu0 %1463, %v1406
        %v1465 = vpop.permute.xlu0 %1464
        %1468 = vset.pattern.permute.xlu0 0
        %1469 = vperm.xlu0 %1468, %v1407
        %v1470 = vpop.permute.xlu0 %1469
        %1473 = vset.pattern.permute.xlu0 0
        %1474 = vperm.xlu0 %1473, %v1408
        %v1475 = vpop.permute.xlu0 %1474
        %1478 = vset.pattern.permute.xlu0 0
        %1479 = vperm.xlu0 %1478, %v1409
        %v1480 = vpop.permute.xlu0 %1479
        %1483 = vset.pattern.permute.xlu0 0
        %1484 = vperm.xlu0 %1483, %v1410
        %v1485 = vpop.permute.xlu0 %1484
        %1488 = vset.pattern.permute.xlu0 0
        %1489 = vperm.xlu0 %1488, %v1411
        %v1490 = vpop.permute.xlu0 %1489
        %v1492 = vmul.f32 %v1364, %v1415
        %v1493 = vmul.f32 %v1365, %v1420
        %v1494 = vmul.f32 %v1366, %v1425
        %v1495 = vmul.f32 %v1367, %v1430
        %v1496 = vmul.f32 %v1368, %v1435
        %v1497 = vmul.f32 %v1369, %v1440
        %v1498 = vmul.f32 %v1370, %v1445
        %v1499 = vmul.f32 %v1371, %v1450
        %v1500 = vmul.f32 %v1372, %v1455
        %v1501 = vmul.f32 %v1373, %v1460
        %v1502 = vmul.f32 %v1374, %v1465
        %v1503 = vmul.f32 %v1375, %v1470
        %v1504 = vmul.f32 %v1376, %v1475
        %v1505 = vmul.f32 %v1377, %v1480
        %v1506 = vmul.f32 %v1378, %v1485
        %v1507 = vmul.f32 %v1379, %v1490
        %vm1508 = vcmask 523264
        %1509 = vst.msk [vmem:[%s287] sm:$0xff] %vm1508, %v1492
        %1510 = vst.msk [vmem:[%s287 + $0x8] sm:$0xff] %vm1508, %v1493
        %1511 = vst.msk [vmem:[%s287 + $0x10] sm:$0xff] %vm1508, %v1494
        %1512 = vst.msk [vmem:[%s287 + $0x18] sm:$0xff] %vm1508, %v1495
        %1513 = vst.msk [vmem:[%s287 + $0x20] sm:$0xff] %vm1508, %v1496
        %1514 = vst.msk [vmem:[%s287 + $0x28] sm:$0xff] %vm1508, %v1497
        %1515 = vst.msk [vmem:[%s287 + $0x30] sm:$0xff] %vm1508, %v1498
        %1516 = vst.msk [vmem:[%s287 + $0x38] sm:$0xff] %vm1508, %v1499
        %1517 = vst.msk [vmem:[%s287 + $0x40] sm:$0xff] %vm1508, %v1500
        %1518 = vst.msk [vmem:[%s287 + $0x48] sm:$0xff] %vm1508, %v1501
        %1519 = vst.msk [vmem:[%s287 + $0x50] sm:$0xff] %vm1508, %v1502
        %1520 = vst.msk [vmem:[%s287 + $0x58] sm:$0xff] %vm1508, %v1503
        %1521 = vst.msk [vmem:[%s287 + $0x60] sm:$0xff] %vm1508, %v1504
        %1522 = vst.msk [vmem:[%s287 + $0x68] sm:$0xff] %vm1508, %v1505
        %1523 = vst.msk [vmem:[%s287 + $0x70] sm:$0xff] %vm1508, %v1506
        %1524 = vst.msk [vmem:[%s287 + $0x78] sm:$0xff] %vm1508, %v1507
      $region44: #{head_forward.3} parent=31 // pred_fallthru
        _
      %s1525 = smul.u32 16, %s20
      %p1526 = scmp.lt.s32.totalorder %s19, 1
      %s1527 = scalar_select %p1526, %s19, 1
      %p1528 = scmp.lt.s32.totalorder %s1525, 31
      %s1529 = scalar_select %p1528, %s1525, 31
      %s1530 = smul.addr %s1527, 32
      %s1531 = sadd.s32 %s1529, %s1530
      %s1532 = smul.addr %s1531, 8
      %s1533 = scalar_lea.vmem %s3, %s1532
      // Predicated region
      $region45: #{head_forward.3} parent=31 // pred_check
        %p1534 = pneg %p137
      $region46: #{head_forward.3} parent=31 // pred_check_branch
        %1536 = sbr.rel (%p1534) target = $region48
      $region47: #{head_forward.3} parent=31 // pred_region
        %s1537 = smul.u32 16, %s20
      $region48: #{head_forward.3} parent=31 // pred_fallthru
        _
    $region32: #{head_forward.3} parent=5 // pred_fallthru
      _
    %p1538 = scmp.le.s32.totalorder 2, %s9
    // Predicated region
    $region49: #{head_forward.3} parent=5 // pred_check
      %p1539 = pneg %p1538
    $region50: #{head_forward.3} parent=5 // pred_check_branch
      %1541 = sbr.rel (%p1539) target = $region52
    $region51: #{head_forward.3} parent=5 // pred_region
      %s1542 = ssub.s32 %s9, 2
      // Predicated region
      $region53: #{head_forward.3} parent=51 // pred_check
        %p1543 = pneg %p143
      $region54: #{head_forward.3} parent=51 // pred_check_branch
        %1545 = sbr.rel (%p1543) target = $region56
      $region55: #{head_forward.3} parent=51 // pred_region
        %s1546 = smul.u32 16, %s23
        %p1547 = scmp.lt.s32.totalorder %s22, 1
        %s1548 = scalar_select %p1547, %s22, 1
        %p1549 = scmp.lt.s32.totalorder %s1546, 31
        %s1550 = scalar_select %p1549, %s1546, 31
        %s1551 = smul.addr %s1548, 32
        %s1552 = sadd.s32 %s1550, %s1551
        %s1553 = smul.addr %s1552, 8
        %s1554 = scalar_lea.vmem %s3, %s1553
      $region56: #{head_forward.3} parent=51 // pred_fallthru
        _
    $region52: #{head_forward.3} parent=5 // pred_fallthru
      _
  $region6: #{head_forward.3} parent=0 // loop_footer
    %s13 = sadd.s32 1, %s9
  $region7: #{head_forward.3} parent=0 // loop_footer_branch
    %8 = sbr.rel target = $region3
  $region8: #{head_forward.3} parent=0 // loop_exit
    _

// kernel: head_forward.2
$region0: #{head_forward.2}
  #allocation0 [shape = 'u32[]', space=smem, size = 0x4, offset = 0x4, fixed_abs, tag = 'smem constant byte address 0x4 - core index']
  #allocation1 [shape = 'u32[144,128]{1,0:T(1,128)}', space=vmem, size = 0x12000, scoped, tag = 'internal scratch']
  %s0 = inlined_call_operand.hbm [shape: f32[512,384], index: 0, kind: input, shape index: {}]
  %s1 = inlined_call_operand.vmem [shape: bf16[384,192], index: 1, kind: input, shape index: {}]
  %s2 = inlined_call_operand.vmem [shape: bf16[512,64], index: 2, kind: output, shape index: {0}]
  %s3 = inlined_call_operand.vmem [shape: bf16[512,64], index: 3, kind: output, shape index: {1}]
  %s4 = inlined_call_operand.vmem [shape: bf16[512,64], index: 4, kind: output, shape index: {2}]
  %5 = xla_tuple %s2, %s3, %s4
  %s6 = sld [smem:[#allocation0]]
  $region61: #{head_forward.2} parent=0
    _
  %s8 = ssub.s32 1, %s6
  %s9 = scalar_select 0, %s8, %s6
  $region1: #{head_forward.2} parent=0
    #allocation2 [shape = 'u8[786432]{0}', space=vmem, size = 0xc0000, scoped, tag = 'input window, operand 0']
    #allocation3 [shape = 's32[2]{0}', space=sflag, size = 0x8, scoped, tag = 'scoped memory for head_forward.2']
    %10 = vsyncpa [#allocation3], 0
    %s11 = scalar_lea.sflag [#allocation3], 1
    %12 = vsyncpa %s11, 0
    loop: start=0, step=1, limit=4
    $region2: #{head_forward.2} parent=1 // loop_pre_header
      _
    $region3: #{head_forward.2} parent=1 // loop_header
      %s14 = sphi 0, %s18
      %p15 = scmp.ge.s32.totalorder %s14, 4
      %s24 = sphi 0, %s26
      %s27 = sphi 0, %s24
      %s28 = sphi 0, %s27
      %s44 = sphi 0, %s28
      %s48 = sphi 0, %s48
      %s50 = sphi 0, %s48
      %s51 = sphi 0, %s50
      %s65 = sphi 0, %s51
      %s71 = sphi 0, %s73
      %s74 = sphi 0, %s71
      %s75 = sphi 0, %s74
      %s91 = sphi 0, %s75
      %s97 = sphi 0, %s99
      %s100 = sphi 0, %s97
      %s101 = sphi 0, %s100
      %s117 = sphi 0, %s101
      %s123 = sphi 0, %s125
      %s126 = sphi 0, %s123
      %s127 = sphi 0, %s126
      %s143 = sphi 0, %s127
    $region4: #{head_forward.2} parent=1 // loop_header_branch
      %17 = sbr.rel (%p15) target = $region8
    $region5: #{head_forward.2} parent=1 // loop_body
      %s19 = ssub.s32 %s14, 1
      %s20 = ssub.s32 %s14, 2
      %s21 = sadd.s32 %s14, 1
      %s22 = ssub.s32 %s14, %s21
      %p23 = scmp.eq.s32.totalorder %s22, 0
      %s25 = sadd.s32 %s24, 1
      %s26 = scalar_select %p23, %s24, %s25
      %p29 = pneg %p23
      %p30 = scmp.eq.s32.totalorder %s14, 1
      %p31 = por %p29, %p30
      %p32 = scmp.ne.s32.totalorder %s24, %s27
      %p33 = scmp.eq.s32.totalorder %s14, 0
      %p34 = por %p32, %p33
      %p35 = scmp.ne.s32.totalorder %s24, %s27
      %p36 = scmp.eq.s32.totalorder %s19, 1
      %p37 = por %p35, %p36
      %p38 = scmp.ne.s32.totalorder %s27, %s28
      %p39 = scmp.eq.s32.totalorder %s19, 0
      %p40 = por %p38, %p39
      %p41 = scmp.ne.s32.totalorder %s27, %s28
      %p42 = scmp.eq.s32.totalorder %s20, 1
      %p43 = por %p41, %p42
      %p45 = scmp.ne.s32.totalorder %s28, %s44
      %p46 = scmp.eq.s32.totalorder %s20, 0
      %p47 = por %p45, %p46
      %s49 = sadd.s32 %s48, 1
      %p52 = scmp.eq.s32.totalorder %s14, 1
      %p53 = scmp.ne.s32.totalorder %s48, %s50
      %p54 = scmp.eq.s32.totalorder %s14, 0
      %p55 = por %p53, %p54
      %p56 = scmp.ne.s32.totalorder %s48, %s50
      %p57 = scmp.eq.s32.totalorder %s19, 1
      %p58 = por %p56, %p57
      %p59 = scmp.ne.s32.totalorder %s50, %s51
      %p60 = scmp.eq.s32.totalorder %s19, 0
      %p61 = por %p59, %p60
      %p62 = scmp.ne.s32.totalorder %s50, %s51
      %p63 = scmp.eq.s32.totalorder %s20, 1
      %p64 = por %p62, %p63
      %p66 = scmp.ne.s32.totalorder %s51, %s65
      %p67 = scmp.eq.s32.totalorder %s20, 0
      %p68 = por %p66, %p67
      %s69 = ssub.s32 %s14, %s21
      %p70 = scmp.eq.s32.totalorder %s69, 0
      %s72 = sadd.s32 %s71, 1
      %s73 = scalar_select %p70, %s71, %s72
      %p76 = pneg %p70
      %p77 = scmp.eq.s32.totalorder %s14, 1
      %p78 = por %p76, %p77
      %p79 = scmp.ne.s32.totalorder %s71, %s74
      %p80 = scmp.eq.s32.totalorder %s14, 0
      %p81 = por %p79, %p80
      %p82 = scmp.ne.s32.totalorder %s71, %s74
      %p83 = scmp.eq.s32.totalorder %s19, 1
      %p84 = por %p82, %p83
      %p85 = scmp.ne.s32.totalorder %s74, %s75
      %p86 = scmp.eq.s32.totalorder %s19, 0
      %p87 = por %p85, %p86
      %p88 = scmp.ne.s32.totalorder %s74, %s75
      %p89 = scmp.eq.s32.totalorder %s20, 1
      %p90 = por %p88, %p89
      %p92 = scmp.ne.s32.totalorder %s75, %s91
      %p93 = scmp.eq.s32.totalorder %s20, 0
      %p94 = por %p92, %p93
      %s95 = ssub.s32 %s14, %s21
      %p96 = scmp.eq.s32.totalorder %s95, 0
      %s98 = sadd.s32 %s97, 1
      %s99 = scalar_select %p96, %s97, %s98
      %p102 = pneg %p96
      %p103 = scmp.eq.s32.totalorder %s14, 1
      %p104 = por %p102, %p103
      %p105 = scmp.ne.s32.totalorder %s97, %s100
      %p106 = scmp.eq.s32.totalorder %s14, 0
      %p107 = por %p105, %p106
      %p108 = scmp.ne.s32.totalorder %s97, %s100
      %p109 = scmp.eq.s32.totalorder %s19, 1
      %p110 = por %p108, %p109
      %p111 = scmp.ne.s32.totalorder %s100, %s101
      %p112 = scmp.eq.s32.totalorder %s19, 0
      %p113 = por %p111, %p112
      %p114 = scmp.ne.s32.totalorder %s100, %s101
      %p115 = scmp.eq.s32.totalorder %s20, 1
      %p116 = por %p114, %p115
      %p118 = scmp.ne.s32.totalorder %s101, %s117
      %p119 = scmp.eq.s32.totalorder %s20, 0
      %p120 = por %p118, %p119
      %s121 = ssub.s32 %s14, %s21
      %p122 = scmp.eq.s32.totalorder %s121, 0
      %s124 = sadd.s32 %s123, 1
      %s125 = scalar_select %p122, %s123, %s124
      %p128 = pneg %p122
      %p129 = scmp.eq.s32.totalorder %s14, 1
      %p130 = por %p128, %p129
      %p131 = scmp.ne.s32.totalorder %s123, %s126
      %p132 = scmp.eq.s32.totalorder %s14, 0
      %p133 = por %p131, %p132
      %p134 = scmp.ne.s32.totalorder %s123, %s126
      %p135 = scmp.eq.s32.totalorder %s19, 1
      %p136 = por %p134, %p135
      %p137 = scmp.ne.s32.totalorder %s126, %s127
      %p138 = scmp.eq.s32.totalorder %s19, 0
      %p139 = por %p137, %p138
      %p140 = scmp.ne.s32.totalorder %s126, %s127
      %p141 = scmp.eq.s32.totalorder %s20, 1
      %p142 = por %p140, %p141
      %p144 = scmp.ne.s32.totalorder %s127, %s143
      %p145 = scmp.eq.s32.totalorder %s20, 0
      %p146 = por %p144, %p145
      %p147 = scmp.le.s32.totalorder 1, %s14
      %p148 = scmp.lt.s32.totalorder %s14, 3
      %p149 = pnand %p147, %p148
      %p150 = pneg %p149
      // Predicated region
      $region9: #{head_forward.2} parent=5 // pred_check
        _
      $region10: #{head_forward.2} parent=5 // pred_check_branch
        %152 = sbr.rel (%p149) target = $region12
      $region11: #{head_forward.2} parent=5 // pred_region
        %s153 = ssub.s32 %s14, 1
        // Predicated region
        $region13: #{head_forward.2} parent=11 // pred_check
          %p154 = pneg %p61
        $region14: #{head_forward.2} parent=11 // pred_check_branch
          %156 = sbr.rel (%p154) target = $region16
        $region15: #{head_forward.2} parent=11 // pred_region
          _
        $region16: #{head_forward.2} parent=11 // pred_fallthru
          _
      $region12: #{head_forward.2} parent=5 // pred_fallthru
        _
      %p157 = scmp.lt.s32.totalorder %s14, 2
      // Predicated region
      $region17: #{head_forward.2} parent=5 // pred_check
        %p158 = pneg %p157
      $region18: #{head_forward.2} parent=5 // pred_check_branch
        %160 = sbr.rel (%p158) target = $region20
      $region19: #{head_forward.2} parent=5 // pred_region
        // Predicated region
        $region21: #{head_forward.2} parent=19 // pred_check
          %p161 = pneg %p34
        $region22: #{head_forward.2} parent=19 // pred_check_branch
          %163 = sbr.rel (%p161) target = $region24
        $region23: #{head_forward.2} parent=19 // pred_region
          %s164 = sand.u32 %s24, 1
          %s165 = scalar_lea.sflag [#allocation3], %s164
          %s166 = sand.u32 %s24, 1
          %s167 = smul.addr %s166, 768
          %s168 = scalar_lea.vmem [#allocation2], %s167
          %s169 = smul.u32 32, %s14
          %s171 = ssub.s32 12288, 12288
          %172 = vsyncadd %s165, %s171
          %s173 = smul.addr %s169, 3
          %s174 = smul.addr %s173, 128
          %s175 = scalar_lea.hbm %s0, %s174
          %s176 = sshll.u32 %s168, 4
          %s177 = int_to_ptr.vmem [resolvable:$true] %s176
          %182 = dma.hbm_to_vmem [thread:$0]  %s175, 12288, %s177, %s165, 384, 384, 24
        $region24: #{head_forward.2} parent=19 // pred_fallthru
          _
      $region20: #{head_forward.2} parent=5 // pred_fallthru
        _
      %p183 = scmp.le.s32.totalorder 1, %s14
      %p184 = scmp.lt.s32.totalorder %s14, 3
      %p185 = pnand %p183, %p184
      %p186 = pneg %p185
      // Predicated region
      $region25: #{head_forward.2} parent=5 // pred_check
        _
      $region26: #{head_forward.2} parent=5 // pred_check_branch
        %188 = sbr.rel (%p185) target = $region28
      $region27: #{head_forward.2} parent=5 // pred_region
        %s189 = ssub.s32 %s14, 1
        %s190 = sand.u32 %s27, 1
        %s191 = scalar_lea.sflag [#allocation3], %s190
        %s192 = sand.u32 %s27, 1
        %s193 = smul.addr %s192, 768
        %s194 = scalar_lea.vmem [#allocation2], %s193
        // Predicated region
        $region29: #{head_forward.2} parent=27 // pred_check
          %p195 = pneg %p40
        $region30: #{head_forward.2} parent=27 // pred_check_branch
          %197 = sbr.rel (%p195) target = $region32
        $region31: #{head_forward.2} parent=27 // pred_region
          %198 = dma.done %s191, 12288
        $region32: #{head_forward.2} parent=27 // pred_fallthru
          _
        %s199 = sand.u32 %s27, 1
        %s200 = scalar_lea.sflag [#allocation3], %s199
        %s201 = sand.u32 %s27, 1
        %s202 = smul.addr %s201, 768
        %s203 = scalar_lea.vmem [#allocation2], %s202
        %p204 = pneg %p40
        %p205 = pneg %p37
        %p206 = pneg %p61
        %p207 = pneg %p58
        %p208 = pneg %p87
        %p209 = pneg %p84
        %s210 = smul.u32 32, %s19
        %p211 = scmp.lt.s32.totalorder %s210, 63
        %s212 = scalar_select %p211, %s210, 63
        %s213 = smul.addr %s212, 4
        %s214 = scalar_lea.vmem %s2, %s213
        %p215 = pneg %p113
        %p216 = pneg %p110
        %s217 = smul.u32 32, %s19
        %p218 = scmp.lt.s32.totalorder %s217, 63
        %s219 = scalar_select %p218, %s217, 63
        %s220 = smul.addr %s219, 4
        %s221 = scalar_lea.vmem %s3, %s220
        %p222 = pneg %p139
        %p223 = pneg %p136
        %s224 = smul.u32 32, %s19
        %p225 = scmp.lt.s32.totalorder %s224, 63
        %s226 = scalar_select %p225, %s224, 63
        %s227 = smul.addr %s226, 4
        %s228 = scalar_lea.vmem %s4, %s227
        %s229 = smul.u32 32, %s19
        %s230 = smul.u32 32, %s19
        %p231 = scmp.lt.s32.totalorder %s230, 63
        %s232 = scalar_select %p231, %s230, 63
        %s233 = smul.addr %s232, 4
        %s234 = scalar_lea.vmem %s2, %s233
        %s235 = smul.u32 32, %s19
        %s236 = smul.u32 32, %s19
        %p237 = scmp.lt.s32.totalorder %s236, 63
        %s238 = scalar_select %p237, %s236, 63
        %s239 = smul.addr %s238, 4
        %s240 = scalar_lea.vmem %s3, %s239
        %s241 = smul.u32 32, %s19
        %s242 = smul.u32 32, %s19
        %p243 = scmp.lt.s32.totalorder %s242, 63
        %s244 = scalar_select %p243, %s242, 63
        %s245 = smul.addr %s244, 4
        %s246 = scalar_lea.vmem %s4, %s245
        %s247 = smul.u32 32, %s19
        %v249 = vld [vmem:[%s194] sm:$0xff]
        %v250 = vld [vmem:[%s194 + $0x8] sm:$0xff]
        %v251 = vld [vmem:[%s194 + $0x10] sm:$0xff]
        %v252 = vld [vmem:[%s194 + $0x18] sm:$0xff]
        %v253 = vld [vmem:[%s194 + $0x20] sm:$0xff]
        %v254 = vld [vmem:[%s194 + $0x28] sm:$0xff]
        %v255 = vld [vmem:[%s194 + $0x30] sm:$0xff]
        %v256 = vld [vmem:[%s194 + $0x38] sm:$0xff]
        %v257 = vld [vmem:[%s194 + $0x40] sm:$0xff]
        %v258 = vld [vmem:[%s194 + $0x48] sm:$0xff]
        %v259 = vld [vmem:[%s194 + $0x50] sm:$0xff]
        %v260 = vld [vmem:[%s194 + $0x58] sm:$0xff]
        %v261 = vld [vmem:[%s194 + $0x60] sm:$0xff]
        %v262 = vld [vmem:[%s194 + $0x68] sm:$0xff]
        %v263 = vld [vmem:[%s194 + $0x70] sm:$0xff]
        %v264 = vld [vmem:[%s194 + $0x78] sm:$0xff]
        %v265 = vld [vmem:[%s194 + $0x80] sm:$0xff]
        %v266 = vld [vmem:[%s194 + $0x88] sm:$0xff]
        %v267 = vld [vmem:[%s194 + $0x90] sm:$0xff]
        %v268 = vld [vmem:[%s194 + $0x98] sm:$0xff]
        %v269 = vld [vmem:[%s194 + $0xa0] sm:$0xff]
        %v270 = vld [vmem:[%s194 + $0xa8] sm:$0xff]
        %v271 = vld [vmem:[%s194 + $0xb0] sm:$0xff]
        %v272 = vld [vmem:[%s194 + $0xb8] sm:$0xff]
        %v273 = vld [vmem:[%s194 + $0xc0] sm:$0xff]
        %v274 = vld [vmem:[%s194 + $0xc8] sm:$0xff]
        %v275 = vld [vmem:[%s194 + $0xd0] sm:$0xff]
        %v276 = vld [vmem:[%s194 + $0xd8] sm:$0xff]
        %v277 = vld [vmem:[%s194 + $0xe0] sm:$0xff]
        %v278 = vld [vmem:[%s194 + $0xe8] sm:$0xff]
        %v279 = vld [vmem:[%s194 + $0xf0] sm:$0xff]
        %v280 = vld [vmem:[%s194 + $0xf8] sm:$0xff]
        %v281 = vld [vmem:[%s194 + $0x100] sm:$0xff]
        %v282 = vld [vmem:[%s194 + $0x108] sm:$0xff]
        %v283 = vld [vmem:[%s194 + $0x110] sm:$0xff]
        %v284 = vld [vmem:[%s194 + $0x118] sm:$0xff]
        %v285 = vld [vmem:[%s194 + $0x120] sm:$0xff]
        %v286 = vld [vmem:[%s194 + $0x128] sm:$0xff]
        %v287 = vld [vmem:[%s194 + $0x130] sm:$0xff]
        %v288 = vld [vmem:[%s194 + $0x138] sm:$0xff]
        %v289 = vld [vmem:[%s194 + $0x140] sm:$0xff]
        %v290 = vld [vmem:[%s194 + $0x148] sm:$0xff]
        %v291 = vld [vmem:[%s194 + $0x150] sm:$0xff]
        %v292 = vld [vmem:[%s194 + $0x158] sm:$0xff]
        %v293 = vld [vmem:[%s194 + $0x160] sm:$0xff]
        %v294 = vld [vmem:[%s194 + $0x168] sm:$0xff]
        %v295 = vld [vmem:[%s194 + $0x170] sm:$0xff]
        %v296 = vld [vmem:[%s194 + $0x178] sm:$0xff]
        %v297 = vld [vmem:[%s194 + $0x180] sm:$0xff]
        %v298 = vld [vmem:[%s194 + $0x188] sm:$0xff]
        %v299 = vld [vmem:[%s194 + $0x190] sm:$0xff]
        %v300 = vld [vmem:[%s194 + $0x198] sm:$0xff]
        %v301 = vld [vmem:[%s194 + $0x1a0] sm:$0xff]
        %v302 = vld [vmem:[%s194 + $0x1a8] sm:$0xff]
        %v303 = vld [vmem:[%s194 + $0x1b0] sm:$0xff]
        %v304 = vld [vmem:[%s194 + $0x1b8] sm:$0xff]
        %v305 = vld [vmem:[%s194 + $0x1c0] sm:$0xff]
        %v306 = vld [vmem:[%s194 + $0x1c8] sm:$0xff]
        %v307 = vld [vmem:[%s194 + $0x1d0] sm:$0xff]
        %v308 = vld [vmem:[%s194 + $0x1d8] sm:$0xff]
        %v309 = vld [vmem:[%s194 + $0x1e0] sm:$0xff]
        %v310 = vld [vmem:[%s194 + $0x1e8] sm:$0xff]
        %v311 = vld [vmem:[%s194 + $0x1f0] sm:$0xff]
        %v312 = vld [vmem:[%s194 + $0x1f8] sm:$0xff]
        %v313 = vld [vmem:[%s194 + $0x200] sm:$0xff]
        %v314 = vld [vmem:[%s194 + $0x208] sm:$0xff]
        %v315 = vld [vmem:[%s194 + $0x210] sm:$0xff]
        %v316 = vld [vmem:[%s194 + $0x218] sm:$0xff]
        %v317 = vld [vmem:[%s194 + $0x220] sm:$0xff]
        %v318 = vld [vmem:[%s194 + $0x228] sm:$0xff]
        %v319 = vld [vmem:[%s194 + $0x230] sm:$0xff]
        %v320 = vld [vmem:[%s194 + $0x238] sm:$0xff]
        %v321 = vld [vmem:[%s194 + $0x240] sm:$0xff]
        %v322 = vld [vmem:[%s194 + $0x248] sm:$0xff]
        %v323 = vld [vmem:[%s194 + $0x250] sm:$0xff]
        %v324 = vld [vmem:[%s194 + $0x258] sm:$0xff]
        %v325 = vld [vmem:[%s194 + $0x260] sm:$0xff]
        %v326 = vld [vmem:[%s194 + $0x268] sm:$0xff]
        %v327 = vld [vmem:[%s194 + $0x270] sm:$0xff]
        %v328 = vld [vmem:[%s194 + $0x278] sm:$0xff]
        %v329 = vld [vmem:[%s194 + $0x280] sm:$0xff]
        %v330 = vld [vmem:[%s194 + $0x288] sm:$0xff]
        %v331 = vld [vmem:[%s194 + $0x290] sm:$0xff]
        %v332 = vld [vmem:[%s194 + $0x298] sm:$0xff]
        %v333 = vld [vmem:[%s194 + $0x2a0] sm:$0xff]
        %v334 = vld [vmem:[%s194 + $0x2a8] sm:$0xff]
        %v335 = vld [vmem:[%s194 + $0x2b0] sm:$0xff]
        %v336 = vld [vmem:[%s194 + $0x2b8] sm:$0xff]
        %v337 = vld [vmem:[%s194 + $0x2c0] sm:$0xff]
        %v338 = vld [vmem:[%s194 + $0x2c8] sm:$0xff]
        %v339 = vld [vmem:[%s194 + $0x2d0] sm:$0xff]
        %v340 = vld [vmem:[%s194 + $0x2d8] sm:$0xff]
        %v341 = vld [vmem:[%s194 + $0x2e0] sm:$0xff]
        %v342 = vld [vmem:[%s194 + $0x2e8] sm:$0xff]
        %v343 = vld [vmem:[%s194 + $0x2f0] sm:$0xff]
        %v344 = vld [vmem:[%s194 + $0x2f8] sm:$0xff]
        %v345 = vpack.c.bf16 %v252, %v249
        %v346 = vpack.c.bf16 %v253, %v250
        %v347 = vpack.c.bf16 %v254, %v251
        %v348 = vpack.c.bf16 %v258, %v255
        %v349 = vpack.c.bf16 %v259, %v256
        %v350 = vpack.c.bf16 %v260, %v257
        %v351 = vpack.c.bf16 %v264, %v261
        %v352 = vpack.c.bf16 %v265, %v262
        %v353 = vpack.c.bf16 %v266, %v263
        %v354 = vpack.c.bf16 %v270, %v267
        %v355 = vpack.c.bf16 %v271, %v268
        %v356 = vpack.c.bf16 %v272, %v269
        %v357 = vpack.c.bf16 %v276, %v273
        %v358 = vpack.c.bf16 %v277, %v274
        %v359 = vpack.c.bf16 %v278, %v275
        %v360 = vpack.c.bf16 %v282, %v279
        %v361 = vpack.c.bf16 %v283, %v280
        %v362 = vpack.c.bf16 %v284, %v281
        %v363 = vpack.c.bf16 %v288, %v285
        %v364 = vpack.c.bf16 %v289, %v286
        %v365 = vpack.c.bf16 %v290, %v287
        %v366 = vpack.c.bf16 %v294, %v291
        %v367 = vpack.c.bf16 %v295, %v292
        %v368 = vpack.c.bf16 %v296, %v293
        %v369 = vpack.c.bf16 %v300, %v297
        %v370 = vpack.c.bf16 %v301, %v298
        %v371 = vpack.c.bf16 %v302, %v299
        %v372 = vpack.c.bf16 %v306, %v303
        %v373 = vpack.c.bf16 %v307, %v304
        %v374 = vpack.c.bf16 %v308, %v305
        %v375 = vpack.c.bf16 %v312, %v309
        %v376 = vpack.c.bf16 %v313, %v310
        %v377 = vpack.c.bf16 %v314, %v311
        %v378 = vpack.c.bf16 %v318, %v315
        %v379 = vpack.c.bf16 %v319, %v316
        %v380 = vpack.c.bf16 %v320, %v317
        %v381 = vpack.c.bf16 %v324, %v321
        %v382 = vpack.c.bf16 %v325, %v322
        %v383 = vpack.c.bf16 %v326, %v323
        %v384 = vpack.c.bf16 %v330, %v327
        %v385 = vpack.c.bf16 %v331, %v328
        %v386 = vpack.c.bf16 %v332, %v329
        %v387 = vpack.c.bf16 %v336, %v333
        %v388 = vpack.c.bf16 %v337, %v334
        %v389 = vpack.c.bf16 %v338, %v335
        %v390 = vpack.c.bf16 %v342, %v339
        %v391 = vpack.c.bf16 %v343, %v340
        %v392 = vpack.c.bf16 %v344, %v341
        %v393 = vld [vmem:[%s1] sm:$0xff]
        %v394 = vld [vmem:[%s1 + $0x8] sm:$0xff]
        %v395 = vld [vmem:[%s1 + $0x10] sm:$0xff]
        %v396 = vld [vmem:[%s1 + $0x18] sm:$0xff]
        %v397 = vld [vmem:[%s1 + $0x20] sm:$0xff]
        %v398 = vld [vmem:[%s1 + $0x28] sm:$0xff]
        %v399 = vld [vmem:[%s1 + $0x30] sm:$0xff]
        %v400 = vld [vmem:[%s1 + $0x38] sm:$0xff]
        %v401 = vld [vmem:[%s1 + $0x40] sm:$0xff]
        %v402 = vld [vmem:[%s1 + $0x48] sm:$0xff]
        %v403 = vld [vmem:[%s1 + $0x50] sm:$0xff]
        %v404 = vld [vmem:[%s1 + $0x58] sm:$0xff]
        %v405 = vld [vmem:[%s1 + $0x60] sm:$0xff]
        %v406 = vld [vmem:[%s1 + $0x68] sm:$0xff]
        %v407 = vld [vmem:[%s1 + $0x70] sm:$0xff]
        %v408 = vld [vmem:[%s1 + $0x78] sm:$0xff]
        %v409 = vld [vmem:[%s1 + $0x80] sm:$0xff]
        %v410 = vld [vmem:[%s1 + $0x88] sm:$0xff]
        %v411 = vld [vmem:[%s1 + $0x90] sm:$0xff]
        %v412 = vld [vmem:[%s1 + $0x98] sm:$0xff]
        %v413 = vld [vmem:[%s1 + $0xa0] sm:$0xff]
        %v414 = vld [vmem:[%s1 + $0xa8] sm:$0xff]
        %v415 = vld [vmem:[%s1 + $0xb0] sm:$0xff]
        %v416 = vld [vmem:[%s1 + $0xb8] sm:$0xff]
        %v417 = vld [vmem:[%s1 + $0xc0] sm:$0xff]
        %v418 = vld [vmem:[%s1 + $0xc8] sm:$0xff]
        %v419 = vld [vmem:[%s1 + $0xd0] sm:$0xff]
        %v420 = vld [vmem:[%s1 + $0xd8] sm:$0xff]
        %v421 = vld [vmem:[%s1 + $0xe0] sm:$0xff]
        %v422 = vld [vmem:[%s1 + $0xe8] sm:$0xff]
        %v423 = vld [vmem:[%s1 + $0xf0] sm:$0xff]
        %v424 = vld [vmem:[%s1 + $0xf8] sm:$0xff]
        %v425 = vld [vmem:[%s1 + $0x100] sm:$0xff]
        %v426 = vld [vmem:[%s1 + $0x108] sm:$0xff]
        %v427 = vld [vmem:[%s1 + $0x110] sm:$0xff]
        %v428 = vld [vmem:[%s1 + $0x118] sm:$0xff]
        %v429 = vld [vmem:[%s1 + $0x120] sm:$0xff]
        %v430 = vld [vmem:[%s1 + $0x128] sm:$0xff]
        %v431 = vld [vmem:[%s1 + $0x130] sm:$0xff]
        %v432 = vld [vmem:[%s1 + $0x138] sm:$0xff]
        %v433 = vld [vmem:[%s1 + $0x140] sm:$0xff]
        %v434 = vld [vmem:[%s1 + $0x148] sm:$0xff]
        %v435 = vld [vmem:[%s1 + $0x150] sm:$0xff]
        %v436 = vld [vmem:[%s1 + $0x158] sm:$0xff]
        %v437 = vld [vmem:[%s1 + $0x160] sm:$0xff]
        %v438 = vld [vmem:[%s1 + $0x168] sm:$0xff]
        %v439 = vld [vmem:[%s1 + $0x170] sm:$0xff]
        %v440 = vld [vmem:[%s1 + $0x178] sm:$0xff]
        %v489 = vunpack.c.l.b16 %v393
        %v490 = vunpack.c.h.b16 %v393
        %v491 = vunpack.c.l.b16 %v394
        %v492 = vunpack.c.h.b16 %v394
        %v493 = vunpack.c.l.b16 %v395
        %v494 = vunpack.c.h.b16 %v395
        %v495 = vunpack.c.l.b16 %v396
        %v496 = vunpack.c.h.b16 %v396
        %v497 = vunpack.c.l.b16 %v397
        %v498 = vunpack.c.h.b16 %v397
        %v499 = vunpack.c.l.b16 %v398
        %v500 = vunpack.c.h.b16 %v398
        %v501 = vunpack.c.l.b16 %v399
        %v502 = vunpack.c.h.b16 %v399
        %v503 = vunpack.c.l.b16 %v400
        %v504 = vunpack.c.h.b16 %v400
        %v505 = vunpack.c.l.b16 %v401
        %v506 = vunpack.c.h.b16 %v401
        %v507 = vunpack.c.l.b16 %v402
        %v508 = vunpack.c.h.b16 %v402
        %v509 = vunpack.c.l.b16 %v403
        %v510 = vunpack.c.h.b16 %v403
        %v511 = vunpack.c.l.b16 %v404
        %v512 = vunpack.c.h.b16 %v404
        %v513 = vunpack.c.l.b16 %v405
        %v514 = vunpack.c.h.b16 %v405
        %v515 = vunpack.c.l.b16 %v406
        %v516 = vunpack.c.h.b16 %v406
        %v517 = vunpack.c.l.b16 %v407
        %v518 = vunpack.c.h.b16 %v407
        %v519 = vunpack.c.l.b16 %v408
        %v520 = vunpack.c.h.b16 %v408
        %v521 = vunpack.c.l.b16 %v409
        %v522 = vunpack.c.h.b16 %v409
        %v523 = vunpack.c.l.b16 %v410
        %v524 = vunpack.c.h.b16 %v410
        %v525 = vunpack.c.l.b16 %v411
        %v526 = vunpack.c.h.b16 %v411
        %v527 = vunpack.c.l.b16 %v412
        %v528 = vunpack.c.h.b16 %v412
        %v529 = vunpack.c.l.b16 %v413
        %v530 = vunpack.c.h.b16 %v413
        %v531 = vunpack.c.l.b16 %v414
        %v532 = vunpack.c.h.b16 %v414
        %v533 = vunpack.c.l.b16 %v415
        %v534 = vunpack.c.h.b16 %v415
        %v535 = vunpack.c.l.b16 %v416
        %v536 = vunpack.c.h.b16 %v416
        %v537 = vunpack.c.l.b16 %v417
        %v538 = vunpack.c.h.b16 %v417
        %v539 = vunpack.c.l.b16 %v418
        %v540 = vunpack.c.h.b16 %v418
        %v541 = vunpack.c.l.b16 %v419
        %v542 = vunpack.c.h.b16 %v419
        %v543 = vunpack.c.l.b16 %v420
        %v544 = vunpack.c.h.b16 %v420
        %v545 = vunpack.c.l.b16 %v421
        %v546 = vunpack.c.h.b16 %v421
        %v547 = vunpack.c.l.b16 %v422
        %v548 = vunpack.c.h.b16 %v422
        %v549 = vunpack.c.l.b16 %v423
        %v550 = vunpack.c.h.b16 %v423
        %v551 = vunpack.c.l.b16 %v424
        %v552 = vunpack.c.h.b16 %v424
        %v553 = vunpack.c.l.b16 %v425
        %v554 = vunpack.c.h.b16 %v425
        %v555 = vunpack.c.l.b16 %v426
        %v556 = vunpack.c.h.b16 %v426
        %v557 = vunpack.c.l.b16 %v427
        %v558 = vunpack.c.h.b16 %v427
        %v559 = vunpack.c.l.b16 %v428
        %v560 = vunpack.c.h.b16 %v428
        %v561 = vunpack.c.l.b16 %v429
        %v562 = vunpack.c.h.b16 %v429
        %v563 = vunpack.c.l.b16 %v430
        %v564 = vunpack.c.h.b16 %v430
        %v565 = vunpack.c.l.b16 %v431
        %v566 = vunpack.c.h.b16 %v431
        %v567 = vunpack.c.l.b16 %v432
        %v568 = vunpack.c.h.b16 %v432
        %v569 = vunpack.c.l.b16 %v433
        %v570 = vunpack.c.h.b16 %v433
        %v571 = vunpack.c.l.b16 %v434
        %v572 = vunpack.c.h.b16 %v434
        %v573 = vunpack.c.l.b16 %v435
        %v574 = vunpack.c.h.b16 %v435
        %v575 = vunpack.c.l.b16 %v436
        %v576 = vunpack.c.h.b16 %v436
        %v577 = vunpack.c.l.b16 %v437
        %v578 = vunpack.c.h.b16 %v437
        %v579 = vunpack.c.l.b16 %v438
        %v580 = vunpack.c.h.b16 %v438
        %v581 = vunpack.c.l.b16 %v439
        %v582 = vunpack.c.h.b16 %v439
        %v583 = vunpack.c.l.b16 %v440
        %v584 = vunpack.c.h.b16 %v440
        %v585 = vpack.c.b16 %v491, %v489
        %v586 = vpack.c.b16 %v492, %v490
        %v587 = vpack.c.b16 %v495, %v493
        %v588 = vpack.c.b16 %v496, %v494
        %v589 = vpack.c.b16 %v499, %v497
        %v590 = vpack.c.b16 %v500, %v498
        %v591 = vpack.c.b16 %v503, %v501
        %v592 = vpack.c.b16 %v504, %v502
        %v593 = vpack.c.b16 %v507, %v505
        %v594 = vpack.c.b16 %v508, %v506
        %v595 = vpack.c.b16 %v511, %v509
        %v596 = vpack.c.b16 %v512, %v510
        %v597 = vpack.c.b16 %v515, %v513
        %v598 = vpack.c.b16 %v516, %v514
        %v599 = vpack.c.b16 %v519, %v517
        %v600 = vpack.c.b16 %v520, %v518
        %v601 = vpack.c.b16 %v523, %v521
        %v602 = vpack.c.b16 %v524, %v522
        %v603 = vpack.c.b16 %v527, %v525
        %v604 = vpack.c.b16 %v528, %v526
        %v605 = vpack.c.b16 %v531, %v529
        %v606 = vpack.c.b16 %v532, %v530
        %v607 = vpack.c.b16 %v535, %v533
        %v608 = vpack.c.b16 %v536, %v534
        %v609 = vpack.c.b16 %v539, %v537
        %v610 = vpack.c.b16 %v540, %v538
        %v611 = vpack.c.b16 %v543, %v541
        %v612 = vpack.c.b16 %v544, %v542
        %v613 = vpack.c.b16 %v547, %v545
        %v614 = vpack.c.b16 %v548, %v546
        %v615 = vpack.c.b16 %v551, %v549
        %v616 = vpack.c.b16 %v552, %v550
        %v617 = vpack.c.b16 %v555, %v553
        %v618 = vpack.c.b16 %v556, %v554
        %v619 = vpack.c.b16 %v559, %v557
        %v620 = vpack.c.b16 %v560, %v558
        %v621 = vpack.c.b16 %v563, %v561
        %v622 = vpack.c.b16 %v564, %v562
        %v623 = vpack.c.b16 %v567, %v565
        %v624 = vpack.c.b16 %v568, %v566
        %v625 = vpack.c.b16 %v571, %v569
        %v626 = vpack.c.b16 %v572, %v570
        %v627 = vpack.c.b16 %v575, %v573
        %v628 = vpack.c.b16 %v576, %v574
        %v629 = vpack.c.b16 %v579, %v577
        %v630 = vpack.c.b16 %v580, %v578
        %v631 = vpack.c.b16 %v583, %v581
        %v632 = vpack.c.b16 %v584, %v582
        %681 = vmatprep.subr.bf16.mxu0 %v600
        %682 = vmatpush1.bf16.msra.mxu0 %v599
        %683 = vmatprep.subr.bf16.mxu0 %v598
        %684 = vmatpush1.bf16.msra.mxu0 %v597
        %685 = vmatprep.subr.bf16.mxu0 %v596
        %686 = vmatpush1.bf16.msra.mxu0 %v595
        %687 = vmatprep.subr.bf16.mxu0 %v594
        %688 = vmatpush1.bf16.msra.mxu0 %v593
        %689 = vmatprep.subr.bf16.mxu0 %v592
        %690 = vmatpush1.bf16.msra.mxu0 %v591
        %691 = vmatprep.subr.bf16.mxu0 %v590
        %692 = vmatpush1.bf16.msra.mxu0 %v589
        %693 = vmatprep.subr.bf16.mxu0 %v588
        %694 = vmatpush1.bf16.msra.mxu0 %v587
        %695 = vmatprep.subr.bf16.mxu0 %v586
        %696 = vmatpush1.bf16.msra.mxu0 %v585
        %697 = vmatprep.subr.bf16.mxu0 %v616
        %698 = vmatpush2.bf16.msra.mxu0 %v615
        %699 = vmatprep.subr.bf16.mxu0 %v614
        %700 = vmatpush2.bf16.msra.mxu0 %v613
        %701 = vmatprep.subr.bf16.mxu0 %v612
        %702 = vmatpush2.bf16.msra.mxu0 %v611
        %703 = vmatprep.subr.bf16.mxu0 %v610
        %704 = vmatpush2.bf16.msra.mxu0 %v609
        %705 = vmatprep.subr.bf16.mxu0 %v608
        %706 = vmatpush2.bf16.msra.mxu0 %v607
        %707 = vmatprep.subr.bf16.mxu0 %v606
        %708 = vmatpush2.bf16.msra.mxu0 %v605
        %709 = vmatprep.subr.bf16.mxu0 %v604
        %710 = vmatpush2.bf16.msra.mxu0 %v603
        %711 = vmatprep.subr.bf16.mxu0 %v602
        %712 = vmatpush2.bf16.msra.mxu0 %v601
        %713 = vmatprep.mubr.bf16.mxu0 %v346
        %714 = vmatmul.mubr.bf16.gmra.mxu0 %v345
        %v715 = vpop.f32.mrf.mxu0
        %v716 = vadd.f32 0.0, %v715
        %v717 = vpop.f32.mrf.mxu0
        %v718 = vadd.f32 0.0, %v717
        %v719 = vpop.f32.mrf.mxu0
        %v720 = vadd.f32 0.0, %v719
        %v721 = vpop.f32.mrf.mxu0
        %v722 = vadd.f32 0.0, %v721
        %723 = vmatprep.mubr.bf16.mxu0 %v349
        %724 = vmatmul.mubr.bf16.gmra.mxu0 %v348
        %v725 = vpop.f32.mrf.mxu0
        %v726 = vadd.f32 0.0, %v725
        %v727 = vpop.f32.mrf.mxu0
        %v728 = vadd.f32 0.0, %v727
        %v729 = vpop.f32.mrf.mxu0
        %v730 = vadd.f32 0.0, %v729
        %v731 = vpop.f32.mrf.mxu0
        %v732 = vadd.f32 0.0, %v731
        %733 = vmatprep.mubr.bf16.mxu0 %v352
        %734 = vmatmul.mubr.bf16.gmra.mxu0 %v351
        %v735 = vpop.f32.mrf.mxu0
        %v736 = vadd.f32 0.0, %v735
        %v737 = vpop.f32.mrf.mxu0
        %v738 = vadd.f32 0.0, %v737
        %v739 = vpop.f32.mrf.mxu0
        %v740 = vadd.f32 0.0, %v739
        %v741 = vpop.f32.mrf.mxu0
        %v742 = vadd.f32 0.0, %v741
        %743 = vmatprep.mubr.bf16.mxu0 %v355
        %744 = vmatmul.mubr.bf16.gmra.mxu0 %v354
        %v745 = vpop.f32.mrf.mxu0
        %v746 = vadd.f32 0.0, %v745
        %v747 = vpop.f32.mrf.mxu0
        %v748 = vadd.f32 0.0, %v747
        %v749 = vpop.f32.mrf.mxu0
        %v750 = vadd.f32 0.0, %v749
        %v751 = vpop.f32.mrf.mxu0
        %v752 = vadd.f32 0.0, %v751
        %753 = vmatprep.mubr.bf16.mxu0 %v358
        %754 = vmatmul.mubr.bf16.gmra.mxu0 %v357
        %v755 = vpop.f32.mrf.mxu0
        %v756 = vadd.f32 0.0, %v755
        %v757 = vpop.f32.mrf.mxu0
        %v758 = vadd.f32 0.0, %v757
        %v759 = vpop.f32.mrf.mxu0
        %v760 = vadd.f32 0.0, %v759
        %v761 = vpop.f32.mrf.mxu0
        %v762 = vadd.f32 0.0, %v761
        %763 = vmatprep.mubr.bf16.mxu0 %v361
        %764 = vmatmul.mubr.bf16.gmra.mxu0 %v360
        %v765 = vpop.f32.mrf.mxu0
        %v766 = vadd.f32 0.0, %v765
        %v767 = vpop.f32.mrf.mxu0
        %v768 = vadd.f32 0.0, %v767
        %v769 = vpop.f32.mrf.mxu0
        %v770 = vadd.f32 0.0, %v769
        %v771 = vpop.f32.mrf.mxu0
        %v772 = vadd.f32 0.0, %v771
        %773 = vmatprep.mubr.bf16.mxu0 %v364
        %774 = vmatmul.mubr.bf16.gmra.mxu0 %v363
        %v775 = vpop.f32.mrf.mxu0
        %v776 = vadd.f32 0.0, %v775
        %v777 = vpop.f32.mrf.mxu0
        %v778 = vadd.f32 0.0, %v777
        %v779 = vpop.f32.mrf.mxu0
        %v780 = vadd.f32 0.0, %v779
        %v781 = vpop.f32.mrf.mxu0
        %v782 = vadd.f32 0.0, %v781
        %783 = vmatprep.mubr.bf16.mxu0 %v367
        %784 = vmatmul.mubr.bf16.gmra.mxu0 %v366
        %v785 = vpop.f32.mrf.mxu0
        %v786 = vadd.f32 0.0, %v785
        %v787 = vpop.f32.mrf.mxu0
        %v788 = vadd.f32 0.0, %v787
        %v789 = vpop.f32.mrf.mxu0
        %v790 = vadd.f32 0.0, %v789
        %v791 = vpop.f32.mrf.mxu0
        %v792 = vadd.f32 0.0, %v791
        %793 = vmatprep.mubr.bf16.mxu0 %v370
        %794 = vmatmul.mubr.bf16.gmra.mxu0 %v369
        %v795 = vpop.f32.mrf.mxu0
        %v796 = vadd.f32 0.0, %v795
        %v797 = vpop.f32.mrf.mxu0
        %v798 = vadd.f32 0.0, %v797
        %v799 = vpop.f32.mrf.mxu0
        %v800 = vadd.f32 0.0, %v799
        %v801 = vpop.f32.mrf.mxu0
        %v802 = vadd.f32 0.0, %v801
        %803 = vmatprep.mubr.bf16.mxu0 %v373
        %804 = vmatmul.mubr.bf16.gmra.mxu0 %v372
        %v805 = vpop.f32.mrf.mxu0
        %v806 = vadd.f32 0.0, %v805
        %v807 = vpop.f32.mrf.mxu0
        %v808 = vadd.f32 0.0, %v807
        %v809 = vpop.f32.mrf.mxu0
        %v810 = vadd.f32 0.0, %v809
        %v811 = vpop.f32.mrf.mxu0
        %v812 = vadd.f32 0.0, %v811
        %813 = vmatprep.mubr.bf16.mxu0 %v376
        %814 = vmatmul.mubr.bf16.gmra.mxu0 %v375
        %v815 = vpop.f32.mrf.mxu0
        %v816 = vadd.f32 0.0, %v815
        %v817 = vpop.f32.mrf.mxu0
        %v818 = vadd.f32 0.0, %v817
        %v819 = vpop.f32.mrf.mxu0
        %v820 = vadd.f32 0.0, %v819
        %v821 = vpop.f32.mrf.mxu0
        %v822 = vadd.f32 0.0, %v821
        %823 = vmatprep.mubr.bf16.mxu0 %v379
        %824 = vmatmul.mubr.bf16.gmra.mxu0 %v378
        %v825 = vpop.f32.mrf.mxu0
        %v826 = vadd.f32 0.0, %v825
        %v827 = vpop.f32.mrf.mxu0
        %v828 = vadd.f32 0.0, %v827
        %v829 = vpop.f32.mrf.mxu0
        %v830 = vadd.f32 0.0, %v829
        %v831 = vpop.f32.mrf.mxu0
        %v832 = vadd.f32 0.0, %v831
        %833 = vmatprep.mubr.bf16.mxu0 %v382
        %834 = vmatmul.mubr.bf16.gmra.mxu0 %v381
        %v835 = vpop.f32.mrf.mxu0
        %v836 = vadd.f32 0.0, %v835
        %v837 = vpop.f32.mrf.mxu0
        %v838 = vadd.f32 0.0, %v837
        %v839 = vpop.f32.mrf.mxu0
        %v840 = vadd.f32 0.0, %v839
        %v841 = vpop.f32.mrf.mxu0
        %v842 = vadd.f32 0.0, %v841
        %843 = vmatprep.mubr.bf16.mxu0 %v385
        %844 = vmatmul.mubr.bf16.gmra.mxu0 %v384
        %v845 = vpop.f32.mrf.mxu0
        %v846 = vadd.f32 0.0, %v845
        %v847 = vpop.f32.mrf.mxu0
        %v848 = vadd.f32 0.0, %v847
        %v849 = vpop.f32.mrf.mxu0
        %v850 = vadd.f32 0.0, %v849
        %v851 = vpop.f32.mrf.mxu0
        %v852 = vadd.f32 0.0, %v851
        %853 = vmatprep.mubr.bf16.mxu0 %v388
        %854 = vmatmul.mubr.bf16.gmra.mxu0 %v387
        %v855 = vpop.f32.mrf.mxu0
        %v856 = vadd.f32 0.0, %v855
        %v857 = vpop.f32.mrf.mxu0
        %v858 = vadd.f32 0.0, %v857
        %v859 = vpop.f32.mrf.mxu0
        %v860 = vadd.f32 0.0, %v859
        %v861 = vpop.f32.mrf.mxu0
        %v862 = vadd.f32 0.0, %v861
        %863 = vmatprep.mubr.bf16.mxu0 %v391
        %864 = vmatmul.mubr.bf16.gmra.mxu0 %v390
        %v865 = vpop.f32.mrf.mxu0
        %v866 = vadd.f32 0.0, %v865
        %v867 = vpop.f32.mrf.mxu0
        %v868 = vadd.f32 0.0, %v867
        %v869 = vpop.f32.mrf.mxu0
        %v870 = vadd.f32 0.0, %v869
        %v871 = vpop.f32.mrf.mxu0
        %v872 = vadd.f32 0.0, %v871
        %873 = vdwg.mxu0
        %874 = vmatprep.subr.bf16.mxu0 %v632
        %875 = vmatpush1.bf16.msra.mxu0 %v631
        %876 = vmatprep.subr.bf16.mxu0 %v630
        %877 = vmatpush1.bf16.msra.mxu0 %v629
        %878 = vmatprep.subr.bf16.mxu0 %v628
        %879 = vmatpush1.bf16.msra.mxu0 %v627
        %880 = vmatprep.subr.bf16.mxu0 %v626
        %881 = vmatpush1.bf16.msra.mxu0 %v625
        %882 = vmatprep.subr.bf16.mxu0 %v624
        %883 = vmatpush1.bf16.msra.mxu0 %v623
        %884 = vmatprep.subr.bf16.mxu0 %v622
        %885 = vmatpush1.bf16.msra.mxu0 %v621
        %886 = vmatprep.subr.bf16.mxu0 %v620
        %887 = vmatpush1.bf16.msra.mxu0 %v619
        %888 = vmatprep.subr.bf16.mxu0 %v618
        %889 = vmatpush1.bf16.msra.mxu0 %v617
        %890 = vmatprep.subr.bf16.mxu0 0
        %891 = vmatpush2.bf16.msra.mxu0 0
        %892 = vmatprep.subr.bf16.mxu0 0
        %893 = vmatpush2.bf16.msra.mxu0 0
        %894 = vmatprep.subr.bf16.mxu0 0
        %895 = vmatpush2.bf16.msra.mxu0 0
        %896 = vmatprep.subr.bf16.mxu0 0
        %897 = vmatpush2.bf16.msra.mxu0 0
        %898 = vmatprep.subr.bf16.mxu0 0
        %899 = vmatpush2.bf16.msra.mxu0 0
        %900 = vmatprep.subr.bf16.mxu0 0
        %901 = vmatpush2.bf16.msra.mxu0 0
        %902 = vmatprep.subr.bf16.mxu0 0
        %903 = vmatpush2.bf16.msra.mxu0 0
        %904 = vmatprep.subr.bf16.mxu0 0
        %905 = vmatpush2.bf16.msra.mxu0 0
        %906 = vmatprep.mubr.bf16.mxu0 0
        %907 = vmatmul.mubr.bf16.gmra.mxu0 %v347
        %v908 = vpop.f32.mrf.mxu0
        %v909 = vadd.f32 %v716, %v908
        %v910 = vpop.f32.mrf.mxu0
        %v911 = vadd.f32 %v718, %v910
        %v912 = vpop.f32.mrf.mxu0
        %v913 = vadd.f32 %v720, %v912
        %v914 = vpop.f32.mrf.mxu0
        %v915 = vadd.f32 %v722, %v914
        %916 = vmatprep.mubr.bf16.mxu0 0
        %917 = vmatmul.mubr.bf16.gmra.mxu0 %v350
        %v918 = vpop.f32.mrf.mxu0
        %v919 = vadd.f32 %v726, %v918
        %v920 = vpop.f32.mrf.mxu0
        %v921 = vadd.f32 %v728, %v920
        %v922 = vpop.f32.mrf.mxu0
        %v923 = vadd.f32 %v730, %v922
        %v924 = vpop.f32.mrf.mxu0
        %v925 = vadd.f32 %v732, %v924
        %926 = vmatprep.mubr.bf16.mxu0 0
        %927 = vmatmul.mubr.bf16.gmra.mxu0 %v353
        %v928 = vpop.f32.mrf.mxu0
        %v929 = vadd.f32 %v736, %v928
        %v930 = vpop.f32.mrf.mxu0
        %v931 = vadd.f32 %v738, %v930
        %v932 = vpop.f32.mrf.mxu0
        %v933 = vadd.f32 %v740, %v932
        %v934 = vpop.f32.mrf.mxu0
        %v935 = vadd.f32 %v742, %v934
        %936 = vmatprep.mubr.bf16.mxu0 0
        %937 = vmatmul.mubr.bf16.gmra.mxu0 %v356
        %v938 = vpop.f32.mrf.mxu0
        %v939 = vadd.f32 %v746, %v938
        %v940 = vpop.f32.mrf.mxu0
        %v941 = vadd.f32 %v748, %v940
        %v942 = vpop.f32.mrf.mxu0
        %v943 = vadd.f32 %v750, %v942
        %v944 = vpop.f32.mrf.mxu0
        %v945 = vadd.f32 %v752, %v944
        %946 = vmatprep.mubr.bf16.mxu0 0
        %947 = vmatmul.mubr.bf16.gmra.mxu0 %v359
        %v948 = vpop.f32.mrf.mxu0
        %v949 = vadd.f32 %v756, %v948
        %v950 = vpop.f32.mrf.mxu0
        %v951 = vadd.f32 %v758, %v950
        %v952 = vpop.f32.mrf.mxu0
        %v953 = vadd.f32 %v760, %v952
        %v954 = vpop.f32.mrf.mxu0
        %v955 = vadd.f32 %v762, %v954
        %956 = vmatprep.mubr.bf16.mxu0 0
        %957 = vmatmul.mubr.bf16.gmra.mxu0 %v362
        %v958 = vpop.f32.mrf.mxu0
        %v959 = vadd.f32 %v766, %v958
        %v960 = vpop.f32.mrf.mxu0
        %v961 = vadd.f32 %v768, %v960
        %v962 = vpop.f32.mrf.mxu0
        %v963 = vadd.f32 %v770, %v962
        %v964 = vpop.f32.mrf.mxu0
        %v965 = vadd.f32 %v772, %v964
        %966 = vmatprep.mubr.bf16.mxu0 0
        %967 = vmatmul.mubr.bf16.gmra.mxu0 %v365
        %v968 = vpop.f32.mrf.mxu0
        %v969 = vadd.f32 %v776, %v968
        %v970 = vpop.f32.mrf.mxu0
        %v971 = vadd.f32 %v778, %v970
        %v972 = vpop.f32.mrf.mxu0
        %v973 = vadd.f32 %v780, %v972
        %v974 = vpop.f32.mrf.mxu0
        %v975 = vadd.f32 %v782, %v974
        %976 = vmatprep.mubr.bf16.mxu0 0
        %977 = vmatmul.mubr.bf16.gmra.mxu0 %v368
        %v978 = vpop.f32.mrf.mxu0
        %v979 = vadd.f32 %v786, %v978
        %v980 = vpop.f32.mrf.mxu0
        %v981 = vadd.f32 %v788, %v980
        %v982 = vpop.f32.mrf.mxu0
        %v983 = vadd.f32 %v790, %v982
        %v984 = vpop.f32.mrf.mxu0
        %v985 = vadd.f32 %v792, %v984
        %986 = vmatprep.mubr.bf16.mxu0 0
        %987 = vmatmul.mubr.bf16.gmra.mxu0 %v371
        %v988 = vpop.f32.mrf.mxu0
        %v989 = vadd.f32 %v796, %v988
        %v990 = vpop.f32.mrf.mxu0
        %v991 = vadd.f32 %v798, %v990
        %v992 = vpop.f32.mrf.mxu0
        %v993 = vadd.f32 %v800, %v992
        %v994 = vpop.f32.mrf.mxu0
        %v995 = vadd.f32 %v802, %v994
        %996 = vmatprep.mubr.bf16.mxu0 0
        %997 = vmatmul.mubr.bf16.gmra.mxu0 %v374
        %v998 = vpop.f32.mrf.mxu0
        %v999 = vadd.f32 %v806, %v998
        %v1000 = vpop.f32.mrf.mxu0
        %v1001 = vadd.f32 %v808, %v1000
        %v1002 = vpop.f32.mrf.mxu0
        %v1003 = vadd.f32 %v810, %v1002
        %v1004 = vpop.f32.mrf.mxu0
        %v1005 = vadd.f32 %v812, %v1004
        %1006 = vmatprep.mubr.bf16.mxu0 0
        %1007 = vmatmul.mubr.bf16.gmra.mxu0 %v377
        %v1008 = vpop.f32.mrf.mxu0
        %v1009 = vadd.f32 %v816, %v1008
        %v1010 = vpop.f32.mrf.mxu0
        %v1011 = vadd.f32 %v818, %v1010
        %v1012 = vpop.f32.mrf.mxu0
        %v1013 = vadd.f32 %v820, %v1012
        %v1014 = vpop.f32.mrf.mxu0
        %v1015 = vadd.f32 %v822, %v1014
        %1016 = vmatprep.mubr.bf16.mxu0 0
        %1017 = vmatmul.mubr.bf16.gmra.mxu0 %v380
        %v1018 = vpop.f32.mrf.mxu0
        %v1019 = vadd.f32 %v826, %v1018
        %v1020 = vpop.f32.mrf.mxu0
        %v1021 = vadd.f32 %v828, %v1020
        %v1022 = vpop.f32.mrf.mxu0
        %v1023 = vadd.f32 %v830, %v1022
        %v1024 = vpop.f32.mrf.mxu0
        %v1025 = vadd.f32 %v832, %v1024
        %1026 = vmatprep.mubr.bf16.mxu0 0
        %1027 = vmatmul.mubr.bf16.gmra.mxu0 %v383
        %v1028 = vpop.f32.mrf.mxu0
        %v1029 = vadd.f32 %v836, %v1028
        %v1030 = vpop.f32.mrf.mxu0
        %v1031 = vadd.f32 %v838, %v1030
        %v1032 = vpop.f32.mrf.mxu0
        %v1033 = vadd.f32 %v840, %v1032
        %v1034 = vpop.f32.mrf.mxu0
        %v1035 = vadd.f32 %v842, %v1034
        %1036 = vmatprep.mubr.bf16.mxu0 0
        %1037 = vmatmul.mubr.bf16.gmra.mxu0 %v386
        %v1038 = vpop.f32.mrf.mxu0
        %v1039 = vadd.f32 %v846, %v1038
        %v1040 = vpop.f32.mrf.mxu0
        %v1041 = vadd.f32 %v848, %v1040
        %v1042 = vpop.f32.mrf.mxu0
        %v1043 = vadd.f32 %v850, %v1042
        %v1044 = vpop.f32.mrf.mxu0
        %v1045 = vadd.f32 %v852, %v1044
        %1046 = vmatprep.mubr.bf16.mxu0 0
        %1047 = vmatmul.mubr.bf16.gmra.mxu0 %v389
        %v1048 = vpop.f32.mrf.mxu0
        %v1049 = vadd.f32 %v856, %v1048
        %v1050 = vpop.f32.mrf.mxu0
        %v1051 = vadd.f32 %v858, %v1050
        %v1052 = vpop.f32.mrf.mxu0
        %v1053 = vadd.f32 %v860, %v1052
        %v1054 = vpop.f32.mrf.mxu0
        %v1055 = vadd.f32 %v862, %v1054
        %1056 = vmatprep.mubr.bf16.mxu0 0
        %1057 = vmatmul.mubr.bf16.gmra.mxu0 %v392
        %v1058 = vpop.f32.mrf.mxu0
        %v1059 = vadd.f32 %v866, %v1058
        %v1060 = vpop.f32.mrf.mxu0
        %v1061 = vadd.f32 %v868, %v1060
        %v1062 = vpop.f32.mrf.mxu0
        %v1063 = vadd.f32 %v870, %v1062
        %v1064 = vpop.f32.mrf.mxu0
        %v1065 = vadd.f32 %v872, %v1064
        %1066 = vdwg.mxu0
        %v1067 = vpack.c.bf16 %v913, %v909
        %v1068 = vpack.c.bf16 %v923, %v919
        %v1069 = vpack.c.bf16 %v933, %v929
        %v1070 = vpack.c.bf16 %v943, %v939
        %v1071 = vpack.c.bf16 %v953, %v949
        %v1072 = vpack.c.bf16 %v963, %v959
        %v1073 = vpack.c.bf16 %v973, %v969
        %v1074 = vpack.c.bf16 %v983, %v979
        %v1075 = vpack.c.bf16 %v993, %v989
        %v1076 = vpack.c.bf16 %v1003, %v999
        %v1077 = vpack.c.bf16 %v1013, %v1009
        %v1078 = vpack.c.bf16 %v1023, %v1019
        %v1079 = vpack.c.bf16 %v1033, %v1029
        %v1080 = vpack.c.bf16 %v1043, %v1039
        %v1081 = vpack.c.bf16 %v1053, %v1049
        %v1082 = vpack.c.bf16 %v1063, %v1059
        %v1099 = vunpack.c.l.b16 %v1067
        %v1100 = vunpack.c.h.b16 %v1067
        %v1101 = vunpack.c.l.b16 %v1068
        %v1102 = vunpack.c.h.b16 %v1068
        %v1103 = vunpack.c.l.b16 %v1069
        %v1104 = vunpack.c.h.b16 %v1069
        %v1105 = vunpack.c.l.b16 %v1070
        %v1106 = vunpack.c.h.b16 %v1070
        %v1107 = vunpack.c.l.b16 %v1071
        %v1108 = vunpack.c.h.b16 %v1071
        %v1109 = vunpack.c.l.b16 %v1072
        %v1110 = vunpack.c.h.b16 %v1072
        %v1111 = vunpack.c.l.b16 %v1073
        %v1112 = vunpack.c.h.b16 %v1073
        %v1113 = vunpack.c.l.b16 %v1074
        %v1114 = vunpack.c.h.b16 %v1074
        %v1115 = vunpack.c.l.b16 %v1075
        %v1116 = vunpack.c.h.b16 %v1075
        %v1117 = vunpack.c.l.b16 %v1076
        %v1118 = vunpack.c.h.b16 %v1076
        %v1119 = vunpack.c.l.b16 %v1077
        %v1120 = vunpack.c.h.b16 %v1077
        %v1121 = vunpack.c.l.b16 %v1078
        %v1122 = vunpack.c.h.b16 %v1078
        %v1123 = vunpack.c.l.b16 %v1079
        %v1124 = vunpack.c.h.b16 %v1079
        %v1125 = vunpack.c.l.b16 %v1080
        %v1126 = vunpack.c.h.b16 %v1080
        %v1127 = vunpack.c.l.b16 %v1081
        %v1128 = vunpack.c.h.b16 %v1081
        %v1129 = vunpack.c.l.b16 %v1082
        %v1130 = vunpack.c.h.b16 %v1082
        %v1131 = vpack.c.b16 %v1099, %v1099
        %v1132 = vpack.c.b16 %v1100, %v1100
        %v1133 = vpack.c.b16 %v1101, %v1101
        %v1134 = vpack.c.b16 %v1102, %v1102
        %v1135 = vpack.c.b16 %v1103, %v1103
        %v1136 = vpack.c.b16 %v1104, %v1104
        %v1137 = vpack.c.b16 %v1105, %v1105
        %v1138 = vpack.c.b16 %v1106, %v1106
        %v1139 = vpack.c.b16 %v1107, %v1107
        %v1140 = vpack.c.b16 %v1108, %v1108
        %v1141 = vpack.c.b16 %v1109, %v1109
        %v1142 = vpack.c.b16 %v1110, %v1110
        %v1143 = vpack.c.b16 %v1111, %v1111
        %v1144 = vpack.c.b16 %v1112, %v1112
        %v1145 = vpack.c.b16 %v1113, %v1113
        %v1146 = vpack.c.b16 %v1114, %v1114
        %v1147 = vpack.c.b16 %v1115, %v1115
        %v1148 = vpack.c.b16 %v1116, %v1116
        %v1149 = vpack.c.b16 %v1117, %v1117
        %v1150 = vpack.c.b16 %v1118, %v1118
        %v1151 = vpack.c.b16 %v1119, %v1119
        %v1152 = vpack.c.b16 %v1120, %v1120
        %v1153 = vpack.c.b16 %v1121, %v1121
        %v1154 = vpack.c.b16 %v1122, %v1122
        %v1155 = vpack.c.b16 %v1123, %v1123
        %v1156 = vpack.c.b16 %v1124, %v1124
        %v1157 = vpack.c.b16 %v1125, %v1125
        %v1158 = vpack.c.b16 %v1126, %v1126
        %v1159 = vpack.c.b16 %v1127, %v1127
        %v1160 = vpack.c.b16 %v1128, %v1128
        %v1161 = vpack.c.b16 %v1129, %v1129
        %v1162 = vpack.c.b16 %v1130, %v1130
        %vm1195 = vcmask 519168
        %1196 = vst.msk [vmem:[%s234] sm:$0xf] %vm1195, %v1131
        %1197 = vst.msk [vmem:[%s234 + $0x4] sm:$0xf] %vm1195, %v1132
        %1198 = vst.msk [vmem:[%s234 + $0x8] sm:$0xf] %vm1195, %v1133
        %1199 = vst.msk [vmem:[%s234 + $0xc] sm:$0xf] %vm1195, %v1134
        %1200 = vst.msk [vmem:[%s234 + $0x10] sm:$0xf] %vm1195, %v1135
        %1201 = vst.msk [vmem:[%s234 + $0x14] sm:$0xf] %vm1195, %v1136
        %1202 = vst.msk [vmem:[%s234 + $0x18] sm:$0xf] %vm1195, %v1137
        %1203 = vst.msk [vmem:[%s234 + $0x1c] sm:$0xf] %vm1195, %v1138
        %1204 = vst.msk [vmem:[%s234 + $0x20] sm:$0xf] %vm1195, %v1139
        %1205 = vst.msk [vmem:[%s234 + $0x24] sm:$0xf] %vm1195, %v1140
        %1206 = vst.msk [vmem:[%s234 + $0x28] sm:$0xf] %vm1195, %v1141
        %1207 = vst.msk [vmem:[%s234 + $0x2c] sm:$0xf] %vm1195, %v1142
        %1208 = vst.msk [vmem:[%s234 + $0x30] sm:$0xf] %vm1195, %v1143
        %1209 = vst.msk [vmem:[%s234 + $0x34] sm:$0xf] %vm1195, %v1144
        %1210 = vst.msk [vmem:[%s234 + $0x38] sm:$0xf] %vm1195, %v1145
        %1211 = vst.msk [vmem:[%s234 + $0x3c] sm:$0xf] %vm1195, %v1146
        %1212 = vst.msk [vmem:[%s234 + $0x40] sm:$0xf] %vm1195, %v1147
        %1213 = vst.msk [vmem:[%s234 + $0x44] sm:$0xf] %vm1195, %v1148
        %1214 = vst.msk [vmem:[%s234 + $0x48] sm:$0xf] %vm1195, %v1149
        %1215 = vst.msk [vmem:[%s234 + $0x4c] sm:$0xf] %vm1195, %v1150
        %1216 = vst.msk [vmem:[%s234 + $0x50] sm:$0xf] %vm1195, %v1151
        %1217 = vst.msk [vmem:[%s234 + $0x54] sm:$0xf] %vm1195, %v1152
        %1218 = vst.msk [vmem:[%s234 + $0x58] sm:$0xf] %vm1195, %v1153
        %1219 = vst.msk [vmem:[%s234 + $0x5c] sm:$0xf] %vm1195, %v1154
        %1220 = vst.msk [vmem:[%s234 + $0x60] sm:$0xf] %vm1195, %v1155
        %1221 = vst.msk [vmem:[%s234 + $0x64] sm:$0xf] %vm1195, %v1156
        %1222 = vst.msk [vmem:[%s234 + $0x68] sm:$0xf] %vm1195, %v1157
        %1223 = vst.msk [vmem:[%s234 + $0x6c] sm:$0xf] %vm1195, %v1158
        %1224 = vst.msk [vmem:[%s234 + $0x70] sm:$0xf] %vm1195, %v1159
        %1225 = vst.msk [vmem:[%s234 + $0x74] sm:$0xf] %vm1195, %v1160
        %1226 = vst.msk [vmem:[%s234 + $0x78] sm:$0xf] %vm1195, %v1161
        %1227 = vst.msk [vmem:[%s234 + $0x7c] sm:$0xf] %vm1195, %v1162
        %1228 = vrot.lane.b32.xlu0 %v1131, 64
        %v1229 = vpop.permute.xlu0 %1228
        %1230 = vrot.lane.b32.xlu0 %v1132, 64
        %v1231 = vpop.permute.xlu0 %1230
        %1232 = vrot.lane.b32.xlu0 %v1133, 64
        %v1233 = vpop.permute.xlu0 %1232
        %1234 = vrot.lane.b32.xlu0 %v1134, 64
        %v1235 = vpop.permute.xlu0 %1234
        %1236 = vrot.lane.b32.xlu0 %v1135, 64
        %v1237 = vpop.permute.xlu0 %1236
        %1238 = vrot.lane.b32.xlu0 %v1136, 64
        %v1239 = vpop.permute.xlu0 %1238
        %1240 = vrot.lane.b32.xlu0 %v1137, 64
        %v1241 = vpop.permute.xlu0 %1240
        %1242 = vrot.lane.b32.xlu0 %v1138, 64
        %v1243 = vpop.permute.xlu0 %1242
        %1244 = vrot.lane.b32.xlu0 %v1139, 64
        %v1245 = vpop.permute.xlu0 %1244
        %1246 = vrot.lane.b32.xlu0 %v1140, 64
        %v1247 = vpop.permute.xlu0 %1246
        %1248 = vrot.lane.b32.xlu0 %v1141, 64
        %v1249 = vpop.permute.xlu0 %1248
        %1250 = vrot.lane.b32.xlu0 %v1142, 64
        %v1251 = vpop.permute.xlu0 %1250
        %1252 = vrot.lane.b32.xlu0 %v1143, 64
        %v1253 = vpop.permute.xlu0 %1252
        %1254 = vrot.lane.b32.xlu0 %v1144, 64
        %v1255 = vpop.permute.xlu0 %1254
        %1256 = vrot.lane.b32.xlu0 %v1145, 64
        %v1257 = vpop.permute.xlu0 %1256
        %1258 = vrot.lane.b32.xlu0 %v1146, 64
        %v1259 = vpop.permute.xlu0 %1258
        %1260 = vrot.lane.b32.xlu0 %v1147, 64
        %v1261 = vpop.permute.xlu0 %1260
        %1262 = vrot.lane.b32.xlu0 %v1148, 64
        %v1263 = vpop.permute.xlu0 %1262
        %1264 = vrot.lane.b32.xlu0 %v1149, 64
        %v1265 = vpop.permute.xlu0 %1264
        %1266 = vrot.lane.b32.xlu0 %v1150, 64
        %v1267 = vpop.permute.xlu0 %1266
        %1268 = vrot.lane.b32.xlu0 %v1151, 64
        %v1269 = vpop.permute.xlu0 %1268
        %1270 = vrot.lane.b32.xlu0 %v1152, 64
        %v1271 = vpop.permute.xlu0 %1270
        %1272 = vrot.lane.b32.xlu0 %v1153, 64
        %v1273 = vpop.permute.xlu0 %1272
        %1274 = vrot.lane.b32.xlu0 %v1154, 64
        %v1275 = vpop.permute.xlu0 %1274
        %1276 = vrot.lane.b32.xlu0 %v1155, 64
        %v1277 = vpop.permute.xlu0 %1276
        %1278 = vrot.lane.b32.xlu0 %v1156, 64
        %v1279 = vpop.permute.xlu0 %1278
        %1280 = vrot.lane.b32.xlu0 %v1157, 64
        %v1281 = vpop.permute.xlu0 %1280
        %1282 = vrot.lane.b32.xlu0 %v1158, 64
        %v1283 = vpop.permute.xlu0 %1282
        %1284 = vrot.lane.b32.xlu0 %v1159, 64
        %v1285 = vpop.permute.xlu0 %1284
        %1286 = vrot.lane.b32.xlu0 %v1160, 64
        %v1287 = vpop.permute.xlu0 %1286
        %1288 = vrot.lane.b32.xlu0 %v1161, 64
        %v1289 = vpop.permute.xlu0 %1288
        %1290 = vrot.lane.b32.xlu0 %v1162, 64
        %v1291 = vpop.permute.xlu0 %1290
        %1324 = vst.msk [vmem:[%s240] sm:$0xf] %vm1195, %v1229
        %1325 = vst.msk [vmem:[%s240 + $0x4] sm:$0xf] %vm1195, %v1231
        %1326 = vst.msk [vmem:[%s240 + $0x8] sm:$0xf] %vm1195, %v1233
        %1327 = vst.msk [vmem:[%s240 + $0xc] sm:$0xf] %vm1195, %v1235
        %1328 = vst.msk [vmem:[%s240 + $0x10] sm:$0xf] %vm1195, %v1237
        %1329 = vst.msk [vmem:[%s240 + $0x14] sm:$0xf] %vm1195, %v1239
        %1330 = vst.msk [vmem:[%s240 + $0x18] sm:$0xf] %vm1195, %v1241
        %1331 = vst.msk [vmem:[%s240 + $0x1c] sm:$0xf] %vm1195, %v1243
        %1332 = vst.msk [vmem:[%s240 + $0x20] sm:$0xf] %vm1195, %v1245
        %1333 = vst.msk [vmem:[%s240 + $0x24] sm:$0xf] %vm1195, %v1247
        %1334 = vst.msk [vmem:[%s240 + $0x28] sm:$0xf] %vm1195, %v1249
        %1335 = vst.msk [vmem:[%s240 + $0x2c] sm:$0xf] %vm1195, %v1251
        %1336 = vst.msk [vmem:[%s240 + $0x30] sm:$0xf] %vm1195, %v1253
        %1337 = vst.msk [vmem:[%s240 + $0x34] sm:$0xf] %vm1195, %v1255
        %1338 = vst.msk [vmem:[%s240 + $0x38] sm:$0xf] %vm1195, %v1257
        %1339 = vst.msk [vmem:[%s240 + $0x3c] sm:$0xf] %vm1195, %v1259
        %1340 = vst.msk [vmem:[%s240 + $0x40] sm:$0xf] %vm1195, %v1261
        %1341 = vst.msk [vmem:[%s240 + $0x44] sm:$0xf] %vm1195, %v1263
        %1342 = vst.msk [vmem:[%s240 + $0x48] sm:$0xf] %vm1195, %v1265
        %1343 = vst.msk [vmem:[%s240 + $0x4c] sm:$0xf] %vm1195, %v1267
        %1344 = vst.msk [vmem:[%s240 + $0x50] sm:$0xf] %vm1195, %v1269
        %1345 = vst.msk [vmem:[%s240 + $0x54] sm:$0xf] %vm1195, %v1271
        %1346 = vst.msk [vmem:[%s240 + $0x58] sm:$0xf] %vm1195, %v1273
        %1347 = vst.msk [vmem:[%s240 + $0x5c] sm:$0xf] %vm1195, %v1275
        %1348 = vst.msk [vmem:[%s240 + $0x60] sm:$0xf] %vm1195, %v1277
        %1349 = vst.msk [vmem:[%s240 + $0x64] sm:$0xf] %vm1195, %v1279
        %1350 = vst.msk [vmem:[%s240 + $0x68] sm:$0xf] %vm1195, %v1281
        %1351 = vst.msk [vmem:[%s240 + $0x6c] sm:$0xf] %vm1195, %v1283
        %1352 = vst.msk [vmem:[%s240 + $0x70] sm:$0xf] %vm1195, %v1285
        %1353 = vst.msk [vmem:[%s240 + $0x74] sm:$0xf] %vm1195, %v1287
        %1354 = vst.msk [vmem:[%s240 + $0x78] sm:$0xf] %vm1195, %v1289
        %1355 = vst.msk [vmem:[%s240 + $0x7c] sm:$0xf] %vm1195, %v1291
        %v1356 = vpack.c.bf16 %v915, %v911
        %v1357 = vpack.c.bf16 %v925, %v921
        %v1358 = vpack.c.bf16 %v935, %v931
        %v1359 = vpack.c.bf16 %v945, %v941
        %v1360 = vpack.c.bf16 %v955, %v951
        %v1361 = vpack.c.bf16 %v965, %v961
        %v1362 = vpack.c.bf16 %v975, %v971
        %v1363 = vpack.c.bf16 %v985, %v981
        %v1364 = vpack.c.bf16 %v995, %v991
        %v1365 = vpack.c.bf16 %v1005, %v1001
        %v1366 = vpack.c.bf16 %v1015, %v1011
        %v1367 = vpack.c.bf16 %v1025, %v1021
        %v1368 = vpack.c.bf16 %v1035, %v1031
        %v1369 = vpack.c.bf16 %v1045, %v1041
        %v1370 = vpack.c.bf16 %v1055, %v1051
        %v1371 = vpack.c.bf16 %v1065, %v1061
        %v1388 = vunpack.c.l.b16 %v1356
        %v1389 = vunpack.c.h.b16 %v1356
        %v1390 = vunpack.c.l.b16 %v1357
        %v1391 = vunpack.c.h.b16 %v1357
        %v1392 = vunpack.c.l.b16 %v1358
        %v1393 = vunpack.c.h.b16 %v1358
        %v1394 = vunpack.c.l.b16 %v1359
        %v1395 = vunpack.c.h.b16 %v1359
        %v1396 = vunpack.c.l.b16 %v1360
        %v1397 = vunpack.c.h.b16 %v1360
        %v1398 = vunpack.c.l.b16 %v1361
        %v1399 = vunpack.c.h.b16 %v1361
        %v1400 = vunpack.c.l.b16 %v1362
        %v1401 = vunpack.c.h.b16 %v1362
        %v1402 = vunpack.c.l.b16 %v1363
        %v1403 = vunpack.c.h.b16 %v1363
        %v1404 = vunpack.c.l.b16 %v1364
        %v1405 = vunpack.c.h.b16 %v1364
        %v1406 = vunpack.c.l.b16 %v1365
        %v1407 = vunpack.c.h.b16 %v1365
        %v1408 = vunpack.c.l.b16 %v1366
        %v1409 = vunpack.c.h.b16 %v1366
        %v1410 = vunpack.c.l.b16 %v1367
        %v1411 = vunpack.c.h.b16 %v1367
        %v1412 = vunpack.c.l.b16 %v1368
        %v1413 = vunpack.c.h.b16 %v1368
        %v1414 = vunpack.c.l.b16 %v1369
        %v1415 = vunpack.c.h.b16 %v1369
        %v1416 = vunpack.c.l.b16 %v1370
        %v1417 = vunpack.c.h.b16 %v1370
        %v1418 = vunpack.c.l.b16 %v1371
        %v1419 = vunpack.c.h.b16 %v1371
        %v1420 = vpack.c.b16 %v1388, %v1388
        %v1421 = vpack.c.b16 %v1389, %v1389
        %v1422 = vpack.c.b16 %v1390, %v1390
        %v1423 = vpack.c.b16 %v1391, %v1391
        %v1424 = vpack.c.b16 %v1392, %v1392
        %v1425 = vpack.c.b16 %v1393, %v1393
        %v1426 = vpack.c.b16 %v1394, %v1394
        %v1427 = vpack.c.b16 %v1395, %v1395
        %v1428 = vpack.c.b16 %v1396, %v1396
        %v1429 = vpack.c.b16 %v1397, %v1397
        %v1430 = vpack.c.b16 %v1398, %v1398
        %v1431 = vpack.c.b16 %v1399, %v1399
        %v1432 = vpack.c.b16 %v1400, %v1400
        %v1433 = vpack.c.b16 %v1401, %v1401
        %v1434 = vpack.c.b16 %v1402, %v1402
        %v1435 = vpack.c.b16 %v1403, %v1403
        %v1436 = vpack.c.b16 %v1404, %v1404
        %v1437 = vpack.c.b16 %v1405, %v1405
        %v1438 = vpack.c.b16 %v1406, %v1406
        %v1439 = vpack.c.b16 %v1407, %v1407
        %v1440 = vpack.c.b16 %v1408, %v1408
        %v1441 = vpack.c.b16 %v1409, %v1409
        %v1442 = vpack.c.b16 %v1410, %v1410
        %v1443 = vpack.c.b16 %v1411, %v1411
        %v1444 = vpack.c.b16 %v1412, %v1412
        %v1445 = vpack.c.b16 %v1413, %v1413
        %v1446 = vpack.c.b16 %v1414, %v1414
        %v1447 = vpack.c.b16 %v1415, %v1415
        %v1448 = vpack.c.b16 %v1416, %v1416
        %v1449 = vpack.c.b16 %v1417, %v1417
        %v1450 = vpack.c.b16 %v1418, %v1418
        %v1451 = vpack.c.b16 %v1419, %v1419
        %1484 = vst.msk [vmem:[%s246] sm:$0xf] %vm1195, %v1420
        %1485 = vst.msk [vmem:[%s246 + $0x4] sm:$0xf] %vm1195, %v1421
        %1486 = vst.msk [vmem:[%s246 + $0x8] sm:$0xf] %vm1195, %v1422
        %1487 = vst.msk [vmem:[%s246 + $0xc] sm:$0xf] %vm1195, %v1423
        %1488 = vst.msk [vmem:[%s246 + $0x10] sm:$0xf] %vm1195, %v1424
        %1489 = vst.msk [vmem:[%s246 + $0x14] sm:$0xf] %vm1195, %v1425
        %1490 = vst.msk [vmem:[%s246 + $0x18] sm:$0xf] %vm1195, %v1426
        %1491 = vst.msk [vmem:[%s246 + $0x1c] sm:$0xf] %vm1195, %v1427
        %1492 = vst.msk [vmem:[%s246 + $0x20] sm:$0xf] %vm1195, %v1428
        %1493 = vst.msk [vmem:[%s246 + $0x24] sm:$0xf] %vm1195, %v1429
        %1494 = vst.msk [vmem:[%s246 + $0x28] sm:$0xf] %vm1195, %v1430
        %1495 = vst.msk [vmem:[%s246 + $0x2c] sm:$0xf] %vm1195, %v1431
        %1496 = vst.msk [vmem:[%s246 + $0x30] sm:$0xf] %vm1195, %v1432
        %1497 = vst.msk [vmem:[%s246 + $0x34] sm:$0xf] %vm1195, %v1433
        %1498 = vst.msk [vmem:[%s246 + $0x38] sm:$0xf] %vm1195, %v1434
        %1499 = vst.msk [vmem:[%s246 + $0x3c] sm:$0xf] %vm1195, %v1435
        %1500 = vst.msk [vmem:[%s246 + $0x40] sm:$0xf] %vm1195, %v1436
        %1501 = vst.msk [vmem:[%s246 + $0x44] sm:$0xf] %vm1195, %v1437
        %1502 = vst.msk [vmem:[%s246 + $0x48] sm:$0xf] %vm1195, %v1438
        %1503 = vst.msk [vmem:[%s246 + $0x4c] sm:$0xf] %vm1195, %v1439
        %1504 = vst.msk [vmem:[%s246 + $0x50] sm:$0xf] %vm1195, %v1440
        %1505 = vst.msk [vmem:[%s246 + $0x54] sm:$0xf] %vm1195, %v1441
        %1506 = vst.msk [vmem:[%s246 + $0x58] sm:$0xf] %vm1195, %v1442
        %1507 = vst.msk [vmem:[%s246 + $0x5c] sm:$0xf] %vm1195, %v1443
        %1508 = vst.msk [vmem:[%s246 + $0x60] sm:$0xf] %vm1195, %v1444
        %1509 = vst.msk [vmem:[%s246 + $0x64] sm:$0xf] %vm1195, %v1445
        %1510 = vst.msk [vmem:[%s246 + $0x68] sm:$0xf] %vm1195, %v1446
        %1511 = vst.msk [vmem:[%s246 + $0x6c] sm:$0xf] %vm1195, %v1447
        %1512 = vst.msk [vmem:[%s246 + $0x70] sm:$0xf] %vm1195, %v1448
        %1513 = vst.msk [vmem:[%s246 + $0x74] sm:$0xf] %vm1195, %v1449
        %1514 = vst.msk [vmem:[%s246 + $0x78] sm:$0xf] %vm1195, %v1450
        %1515 = vst.msk [vmem:[%s246 + $0x7c] sm:$0xf] %vm1195, %v1451
        %s1516 = smul.u32 32, %s19
        %p1517 = scmp.lt.s32.totalorder %s1516, 63
        %s1518 = scalar_select %p1517, %s1516, 63
        %s1519 = smul.addr %s1518, 4
        %s1520 = scalar_lea.vmem %s2, %s1519
        %s1521 = smul.u32 32, %s19
        %p1522 = scmp.lt.s32.totalorder %s1521, 63
        %s1523 = scalar_select %p1522, %s1521, 63
        %s1524 = smul.addr %s1523, 4
        %s1525 = scalar_lea.vmem %s3, %s1524
        %s1526 = smul.u32 32, %s19
        %p1527 = scmp.lt.s32.totalorder %s1526, 63
        %s1528 = scalar_select %p1527, %s1526, 63
        %s1529 = smul.addr %s1528, 4
        %s1530 = scalar_lea.vmem %s4, %s1529
        // Predicated region
        $region33: #{head_forward.2} parent=27 // pred_check
          %p1531 = pneg %p84
        $region34: #{head_forward.2} parent=27 // pred_check_branch
          %1533 = sbr.rel (%p1531) target = $region36
        $region35: #{head_forward.2} parent=27 // pred_region
          %s1534 = smul.u32 32, %s19
        $region36: #{head_forward.2} parent=27 // pred_fallthru
          _
        // Predicated region
        $region37: #{head_forward.2} parent=27 // pred_check
          %p1535 = pneg %p110
        $region38: #{head_forward.2} parent=27 // pred_check_branch
          %1537 = sbr.rel (%p1535) target = $region40
        $region39: #{head_forward.2} parent=27 // pred_region
          %s1538 = smul.u32 32, %s19
        $region40: #{head_forward.2} parent=27 // pred_fallthru
          _
        // Predicated region
        $region41: #{head_forward.2} parent=27 // pred_check
          %p1539 = pneg %p136
        $region42: #{head_forward.2} parent=27 // pred_check_branch
          %1541 = sbr.rel (%p1539) target = $region44
        $region43: #{head_forward.2} parent=27 // pred_region
          %s1542 = smul.u32 32, %s19
        $region44: #{head_forward.2} parent=27 // pred_fallthru
          _
      $region28: #{head_forward.2} parent=5 // pred_fallthru
        _
      %p1543 = scmp.le.s32.totalorder 2, %s14
      // Predicated region
      $region45: #{head_forward.2} parent=5 // pred_check
        %p1544 = pneg %p1543
      $region46: #{head_forward.2} parent=5 // pred_check_branch
        %1546 = sbr.rel (%p1544) target = $region48
      $region47: #{head_forward.2} parent=5 // pred_region
        %s1547 = ssub.s32 %s14, 2
        // Predicated region
        $region49: #{head_forward.2} parent=47 // pred_check
          %p1548 = pneg %p90
        $region50: #{head_forward.2} parent=47 // pred_check_branch
          %1550 = sbr.rel (%p1548) target = $region52
        $region51: #{head_forward.2} parent=47 // pred_region
          %s1551 = smul.u32 32, %s20
          %p1552 = scmp.lt.s32.totalorder %s1551, 63
          %s1553 = scalar_select %p1552, %s1551, 63
          %s1554 = smul.addr %s1553, 4
          %s1555 = scalar_lea.vmem %s2, %s1554
        $region52: #{head_forward.2} parent=47 // pred_fallthru
          _
        // Predicated region
        $region53: #{head_forward.2} parent=47 // pred_check
          %p1556 = pneg %p116
        $region54: #{head_forward.2} parent=47 // pred_check_branch
          %1558 = sbr.rel (%p1556) target = $region56
        $region55: #{head_forward.2} parent=47 // pred_region
          %s1559 = smul.u32 32, %s20
          %p1560 = scmp.lt.s32.totalorder %s1559, 63
          %s1561 = scalar_select %p1560, %s1559, 63
          %s1562 = smul.addr %s1561, 4
          %s1563 = scalar_lea.vmem %s3, %s1562
        $region56: #{head_forward.2} parent=47 // pred_fallthru
          _
        // Predicated region
        $region57: #{head_forward.2} parent=47 // pred_check
          %p1564 = pneg %p142
        $region58: #{head_forward.2} parent=47 // pred_check_branch
          %1566 = sbr.rel (%p1564) target = $region60
        $region59: #{head_forward.2} parent=47 // pred_region
          %s1567 = smul.u32 32, %s20
          %p1568 = scmp.lt.s32.totalorder %s1567, 63
          %s1569 = scalar_select %p1568, %s1567, 63
          %s1570 = smul.addr %s1569, 4
          %s1571 = scalar_lea.vmem %s4, %s1570
        $region60: #{head_forward.2} parent=47 // pred_fallthru
          _
      $region48: #{head_forward.2} parent=5 // pred_fallthru
        _
    $region6: #{head_forward.2} parent=1 // loop_footer
      %s18 = sadd.s32 1, %s14
    $region7: #{head_forward.2} parent=1 // loop_footer_branch
      %13 = sbr.rel target = $region3
    $region8: #{head_forward.2} parent=1 // loop_exit
      _
    %1572 = vsyncpa [#allocation3], 1
    %s1573 = scalar_lea.sflag [#allocation3], 1
    %1574 = vsyncpa %s1573, 1

</llo_original>
